<compile_context>
chip_gen: v7x
topology: tpu7x:2x2x1
jax: 0.10.0
libtpu: 0.0.40
codegen_flags: <defaults>
</compile_context>

<pallas_src>
import jax
import jax.numpy as jnp
import numpy as np
from jax.experimental import pallas as pl
from jax.experimental.pallas import tpu as pltpu


def odelstm_seq_kernel(x_ref, ts_ref, h0_ref, c0_ref,
                       w_ih_ref, w_hh_ref, b_gates_ref,
                       w1_ref, b1_ref, w2_ref, b2_ref,
                       h_out_ref, c_out_ref,
                       h_scr, c_scr):
    t = pl.program_id(0)
    B, H = h_scr.shape

    # Carry initialization: h/c live in VMEM scratch for the whole sequence.
    @pl.when(t == 0)
    def _():
        h_scr[...] = h0_ref[...]
        c_scr[...] = c0_ref[...]

    h = h_scr[...]
    c = c_scr[...]
    x = x_ref[0]                                             # [B, I]

    # ---- nn.LSTMCell gates: two accumulating MXU matmuls (no [x|h] concat) --
    gates = (jnp.dot(x, w_ih_ref[...], preferred_element_type=jnp.float32)
             + jnp.dot(h, w_hh_ref[...], preferred_element_type=jnp.float32)
             + b_gates_ref[...])                             # [B, 4H]

    # ONE transcendental pass: sigmoid(z) = 0.5 + 0.5*tanh(0.5*z).
    lane = jax.lax.broadcasted_iota(jnp.int32, gates.shape, dimension=1)
    is_g = jnp.logical_and(lane >= 2 * H, lane < 3 * H)
    pre = jnp.where(is_g, gates, 0.5 * gates)                # scale BEFORE tanh
    th = jnp.tanh(pre)
    act = jnp.where(is_g, th, 0.5 * th + 0.5)

    i_g = act[:, 0 * H:1 * H]
    f_g = act[:, 1 * H:2 * H]
    g_g = act[:, 2 * H:3 * H]
    o_g = act[:, 3 * H:4 * H]
    new_c = f_g * c + i_g * g_g
    new_h = o_g * jnp.tanh(new_c)

    # Store new_c right away: its carry update + output writeback complete
    # underneath the long serial RK4 chain below.
    c_scr[...] = new_c
    c_out_ref[0] = new_c

    # ---- f_node = Linear(H,H) -> Tanh -> Linear(H,H) ------------------------
    # Hoist weight loads / bias broadcasts out of the 12 evaluations.
    w1 = w1_ref[...]
    w2 = w2_ref[...]
    b1 = jnp.broadcast_to(b1_ref[...], (B, H))
    b2 = jnp.broadcast_to(b2_ref[...], (B, H))

    def f_node(y):
        z = jnp.tanh(jnp.dot(y, w1, preferred_element_type=jnp.float32) + b1)
        return jnp.dot(z, w2, preferred_element_type=jnp.float32) + b2

    # ---- solve_fixed: 3 substeps of rk4 with dt = ts/3 -----------------------
    dt = jnp.broadcast_to(ts_ref[0] * (1.0 / 3.0), (B, H))
    dt_half = dt * 0.5
    dt_over_6 = dt * (1.0 / 6.0)

    y = new_h
    for _ in range(3):                       # static unroll (matches PyTorch loop)
        k1 = f_node(y)
        k2 = f_node(y + k1 * dt_half)
        k3 = f_node(y + k2 * dt_half)
        k4 = f_node(y + k3 * dt)
        y = y + dt_over_6 * (k1 + 2.0 * (k2 + k3) + k4)

    h_scr[...] = y
    h_out_ref[0] = y


def prepare_params(params):
    """One-time weight packing (hoisted out of the per-call wrapper)."""
    H = params["w_hh"].shape[1]
    return {
        "w_ihT": jnp.asarray(params["w_ih"]).T,                          # [I, 4H]
        "w_hhT": jnp.asarray(params["w_hh"]).T,                          # [H, 4H]
        "b_gates": (params["b_ih"] + params["b_hh"]).reshape(1, 4 * H),  # [1, 4H]
        "w1T": jnp.asarray(params["w1"]).T,                              # [H, H]
        "b1": params["b1"].reshape(1, H),                                # [1, H]
        "w2T": jnp.asarray(params["w2"]).T,                              # [H, H]
        "b2": params["b2"].reshape(1, H),                                # [1, H]
    }


def _odelstm_sequence_pallas(xs, ts, h0, c0, packed):
    """xs: [T, B, I], ts: [T, B], h0/c0: [B, H]. Returns (hs, cs): [T, B, H]."""
    T, B, I = xs.shape
    H = h0.shape[1]
    ts3 = ts.reshape(T, B, 1)

    def full_spec(shape):
        return pl.BlockSpec(shape, lambda t, _n=len(shape): (0,) * _n)

    hs, cs = pl.pallas_call(
        odelstm_seq_kernel,
        out_shape=(jax.ShapeDtypeStruct((T, B, H), jnp.float32),
                   jax.ShapeDtypeStruct((T, B, H), jnp.float32)),
        grid=(T,),
        in_specs=[
            pl.BlockSpec((1, B, I), lambda t: (t, 0, 0)),   # x[t]  (streamed)
            pl.BlockSpec((1, B, 1), lambda t: (t, 0, 0)),   # ts[t] (streamed)
            full_spec((B, H)),                              # h0 (read at t==0)
            full_spec((B, H)),                              # c0 (read at t==0)
            full_spec((I, 4 * H)),                          # W_ih^T  (resident)
            full_spec((H, 4 * H)),                          # W_hh^T  (resident)
            full_spec((1, 4 * H)),                          # b_ih+b_hh
            full_spec((H, H)),                              # W1^T
            full_spec((1, H)),                              # b1
            full_spec((H, H)),                              # W2^T
            full_spec((1, H)),                              # b2
        ],
        out_specs=(pl.BlockSpec((1, B, H), lambda t: (t, 0, 0)),
                   pl.BlockSpec((1, B, H), lambda t: (t, 0, 0))),
        scratch_shapes=[pltpu.VMEM((B, H), jnp.float32),    # h carry
                        pltpu.VMEM((B, H), jnp.float32)],   # c carry
        compiler_params=pltpu.CompilerParams(
            dimension_semantics=("arbitrary",)),            # sequential carry
    )(xs, ts3, h0, c0,
      packed["w_ihT"], packed["w_hhT"], packed["b_gates"],
      packed["w1T"], packed["b1"], packed["w2T"], packed["b2"])
    return hs, cs


odelstm_sequence_pallas = jax.jit(_odelstm_sequence_pallas)


def odelstm_cell_pallas(x, h0, c0, ts, packed):
    """Single-step module forward (T == 1 special case). Returns (new_h, new_c)."""
    hs, cs = odelstm_sequence_pallas(x[None], ts[None], h0, c0, packed)
    return hs[0], cs[0]


def odelstm_cell_ref(x, h0, c0, ts, params):
    """Pure-JAX reference mirroring the PyTorch forward (fixed_rk4)."""
    H = h0.shape[1]
    gates = (x @ params["w_ih"].T + params["b_ih"]
             + h0 @ params["w_hh"].T + params["b_hh"])
    i_g = jax.nn.sigmoid(gates[:, 0 * H:1 * H])
    f_g = jax.nn.sigmoid(gates[:, 1 * H:2 * H])
    g_g = jnp.tanh(gates[:, 2 * H:3 * H])
    o_g = jax.nn.sigmoid(gates[:, 3 * H:4 * H])
    new_c = f_g * c0 + i_g * g_g
    new_h = o_g * jnp.tanh(new_c)

    def f_node(y):
        return jnp.tanh(y @ params["w1"].T + params["b1"]) @ params["w2"].T + params["b2"]

    dt = ts.reshape(-1, 1) * (1.0 / 3.0)
    y = new_h
    for _ in range(3):
        k1 = f_node(y)
        k2 = f_node(y + k1 * dt * 0.5)
        k3 = f_node(y + k2 * dt * 0.5)
        k4 = f_node(y + k3 * dt)
        y = y + dt * (k1 + 2 * k2 + 2 * k3 + k4) / 6.0
    return y, new_c


if __name__ == "__main__":
    T, B, I, H = 8, 8, 16, 32
    key = jax.random.PRNGKey(0)
    ks = jax.random.split(key, 12)

    # Deterministic parameter init, U(-1/sqrt(H), 1/sqrt(H)) like PyTorch.
    s = 1.0 / np.sqrt(H)
    params = {
        "w_ih": jax.random.uniform(ks[0], (4 * H, I), jnp.float32, -s, s),
        "w_hh": jax.random.uniform(ks[1], (4 * H, H), jnp.float32, -s, s),
        "b_ih": jax.random.uniform(ks[2], (4 * H,), jnp.float32, -s, s),
        "b_hh": jax.random.uniform(ks[3], (4 * H,), jnp.float32, -s, s),
        "w1":   jax.random.uniform(ks[4], (H, H), jnp.float32, -s, s),
        "b1":   jax.random.uniform(ks[5], (H,), jnp.float32, -s, s),
        "w2":   jax.random.uniform(ks[6], (H, H), jnp.float32, -s, s),
        "b2":   jax.random.uniform(ks[7], (H,), jnp.float32, -s, s),
    }

    xs = jax.random.normal(ks[8], (T, B, I), jnp.float32)
    h0 = jax.random.normal(ks[9], (B, H), jnp.float32)
    c0 = jax.random.normal(ks[10], (B, H), jnp.float32)
    ts = jax.random.uniform(ks[11], (T, B), jnp.float32, 0.1, 1.0)

    packed = prepare_params(params)   # one-time weight packing

    # Sequence-folded kernel: one pallas_call, grid=(T,), h/c resident in VMEM.
    hs, cs = odelstm_sequence_pallas(xs, ts, h0, c0, packed)
    jax.block_until_ready((hs, cs))

    # Pure-JAX reference: drive the single-step cell over the sequence.
    ref_hs, ref_cs = [], []
    h, c = h0, c0
    for t in range(T):
        h, c = odelstm_cell_ref(xs[t], h, c, ts[t], params)
        ref_hs.append(h)
        ref_cs.append(c)
    ref_hs = jnp.stack(ref_hs)
    ref_cs = jnp.stack(ref_cs)
    np.testing.assert_allclose(np.asarray(hs), np.asarray(ref_hs), rtol=1e-4, atol=1e-4)
    np.testing.assert_allclose(np.asarray(cs), np.asarray(ref_cs), rtol=1e-4, atol=1e-4)

    # Single-step path (exact module forward semantics).
    h1, c1 = odelstm_cell_pallas(xs[0], h0, c0, ts[0], packed)
    jax.block_until_ready((h1, c1))
    ref_h1, ref_c1 = odelstm_cell_ref(xs[0], h0, c0, ts[0], params)
    np.testing.assert_allclose(np.asarray(h1), np.asarray(ref_h1), rtol=1e-4, atol=1e-4)
    np.testing.assert_allclose(np.asarray(c1), np.asarray(ref_c1), rtol=1e-4, atol=1e-4)

    # TODO(synk): the non-fixed solver path (torchdyn NeuralODE.trajectory with
    # dopri5 adaptive stepping + argsort gather) has no clean Pallas equivalent;
    # only the fixed-step solver family is implemented (fixed_rk4 here).
    print("KERNEL_OK")
</pallas_src>

<mosaic_0001>
module attributes {stable_mosaic.version = 11 : i64} {
  func.func @odelstm_seq_kernel(%arg0: i32, %arg1: memref<1x8x16xf32, #tpu.memory_space<vmem>>, %arg2: memref<1x8x1xf32, #tpu.memory_space<vmem>>, %arg3: memref<8x32xf32, #tpu.memory_space<vmem>>, %arg4: memref<8x32xf32, #tpu.memory_space<vmem>>, %arg5: memref<16x128xf32, #tpu.memory_space<vmem>>, %arg6: memref<32x128xf32, #tpu.memory_space<vmem>>, %arg7: memref<1x128xf32, #tpu.memory_space<vmem>>, %arg8: memref<32x32xf32, #tpu.memory_space<vmem>>, %arg9: memref<1x32xf32, #tpu.memory_space<vmem>>, %arg10: memref<32x32xf32, #tpu.memory_space<vmem>>, %arg11: memref<1x32xf32, #tpu.memory_space<vmem>>, %arg12: memref<1x8x32xf32, #tpu.memory_space<vmem>>, %arg13: memref<1x8x32xf32, #tpu.memory_space<vmem>>, %arg14: memref<8x32xf32, #tpu.memory_space<vmem>>, %arg15: memref<8x32xf32, #tpu.memory_space<vmem>>) attributes {dimension_semantics = [#tpu.dimension_semantics<arbitrary>], iteration_bounds = array<i64: 8>, scalar_prefetch = 0 : i64, scratch_operands = 2 : i64, tpu.core_type = #tpu.core_type<tc>, window_params = [{transform_indices = @transform_0, window_bounds = array<i64: 1, 8, 16>}, {transform_indices = @transform_1, window_bounds = array<i64: 1, 8, 1>}, {pipeline_mode = #tpu.pipeline_mode<synchronous>, transform_indices = @transform_2, window_bounds = array<i64: 8, 32>}, {pipeline_mode = #tpu.pipeline_mode<synchronous>, transform_indices = @transform_3, window_bounds = array<i64: 8, 32>}, {pipeline_mode = #tpu.pipeline_mode<synchronous>, transform_indices = @transform_4, window_bounds = array<i64: 16, 128>}, {pipeline_mode = #tpu.pipeline_mode<synchronous>, transform_indices = @transform_5, window_bounds = array<i64: 32, 128>}, {pipeline_mode = #tpu.pipeline_mode<synchronous>, transform_indices = @transform_6, window_bounds = array<i64: 1, 128>}, {pipeline_mode = #tpu.pipeline_mode<synchronous>, transform_indices = @transform_7, window_bounds = array<i64: 32, 32>}, {pipeline_mode = #tpu.pipeline_mode<synchronous>, transform_indices = @transform_8, window_bounds = array<i64: 1, 32>}, {pipeline_mode = #tpu.pipeline_mode<synchronous>, transform_indices = @transform_9, window_bounds = array<i64: 32, 32>}, {pipeline_mode = #tpu.pipeline_mode<synchronous>, transform_indices = @transform_10, window_bounds = array<i64: 1, 32>}, {transform_indices = @transform_11, window_bounds = array<i64: 1, 8, 32>}, {transform_indices = @transform_12, window_bounds = array<i64: 1, 8, 32>}]} {
    %c0_i32 = arith.constant 0 : i32
    %0 = arith.cmpi eq, %arg0, %c0_i32 : i32
    %1 = arith.extui %0 : i1 to i32
    %c0_i32_0 = arith.constant 0 : i32
    %2 = arith.cmpi ne, %1, %c0_i32_0 : i32
    scf.if %2 {
      %c0_68 = arith.constant 0 : index
      %c0_69 = arith.constant 0 : index
      %164 = vector.load %arg3[%c0_68, %c0_69] : memref<8x32xf32, #tpu.memory_space<vmem>>, vector<8x32xf32>
      %c0_70 = arith.constant 0 : index
      %c0_71 = arith.constant 0 : index
      %165 = vector.load %arg14[%c0_70, %c0_71] : memref<8x32xf32, #tpu.memory_space<vmem>>, vector<8x32xf32>
      tpu.vector_store %arg14[%c0_70, %c0_71], %164 {strides = array<i32>} : memref<8x32xf32, #tpu.memory_space<vmem>>, vector<8x32xf32>,
      %c0_72 = arith.constant 0 : index
      %c0_73 = arith.constant 0 : index
      %166 = vector.load %arg4[%c0_72, %c0_73] : memref<8x32xf32, #tpu.memory_space<vmem>>, vector<8x32xf32>
      %c0_74 = arith.constant 0 : index
      %c0_75 = arith.constant 0 : index
      %167 = vector.load %arg15[%c0_74, %c0_75] : memref<8x32xf32, #tpu.memory_space<vmem>>, vector<8x32xf32>
      tpu.vector_store %arg15[%c0_74, %c0_75], %166 {strides = array<i32>} : memref<8x32xf32, #tpu.memory_space<vmem>>, vector<8x32xf32>,
    } else {
    }
    %c0 = arith.constant 0 : index
    %c0_1 = arith.constant 0 : index
    %3 = vector.load %arg14[%c0, %c0_1] : memref<8x32xf32, #tpu.memory_space<vmem>>, vector<8x32xf32>
    %c0_2 = arith.constant 0 : index
    %c0_3 = arith.constant 0 : index
    %4 = vector.load %arg15[%c0_2, %c0_3] : memref<8x32xf32, #tpu.memory_space<vmem>>, vector<8x32xf32>
    %c0_4 = arith.constant 0 : index
    %c0_5 = arith.constant 0 : index
    %c0_6 = arith.constant 0 : index
    %5 = vector.load %arg1[%c0_4, %c0_5, %c0_6] : memref<1x8x16xf32, #tpu.memory_space<vmem>>, vector<1x8x16xf32>
    %6 = vector.shape_cast %5 : vector<1x8x16xf32> to vector<8x16xf32>
    %c0_7 = arith.constant 0 : index
    %c0_8 = arith.constant 0 : index
    %7 = vector.load %arg5[%c0_7, %c0_8] : memref<16x128xf32, #tpu.memory_space<vmem>>, vector<16x128xf32>
    %cst = arith.constant dense<0.000000e+00> : vector<8x128xf32>
    %8 = tpu.matmul %6, %7, %cst {dimension_numbers = #tpu.dot_dimension_numbers<[1], [0], [0], [1], [0, 0, 1, 1], [], []>} : vector<8x16xf32>, vector<16x128xf32>, vector<8x128xf32> -> vector<8x128xf32>
    %c0_9 = arith.constant 0 : index
    %c0_10 = arith.constant 0 : index
    %9 = vector.load %arg6[%c0_9, %c0_10] : memref<32x128xf32, #tpu.memory_space<vmem>>, vector<32x128xf32>
    %cst_11 = arith.constant dense<0.000000e+00> : vector<8x128xf32>
    %10 = tpu.matmul %3, %9, %cst_11 {dimension_numbers = #tpu.dot_dimension_numbers<[1], [0], [0], [1], [0, 0, 1, 1], [], []>} : vector<8x32xf32>, vector<32x128xf32>, vector<8x128xf32> -> vector<8x128xf32>
    %11 = arith.addf %8, %10 : vector<8x128xf32>
    %c0_12 = arith.constant 0 : index
    %c0_13 = arith.constant 0 : index
    %12 = vector.load %arg7[%c0_12, %c0_13] : memref<1x128xf32, #tpu.memory_space<vmem>>, vector<1x128xf32>
    %13 = vector.broadcast %12 : vector<1x128xf32> to vector<8x128xf32>
    %14 = arith.addf %11, %13 : vector<8x128xf32>
    %15 = tpu.iota {dimensions = array<i32: 1>} : vector<8x128xi32>
    %c64_i32 = arith.constant 64 : i32
    %16 = vector.broadcast %c64_i32 : i32 to vector<8x128xi32>
    %17 = arith.cmpi sge, %15, %16 : vector<8x128xi32>
    %c96_i32 = arith.constant 96 : i32
    %18 = vector.broadcast %c96_i32 : i32 to vector<8x128xi32>
    %19 = arith.cmpi slt, %15, %18 : vector<8x128xi32>
    %20 = arith.andi %17, %19 : vector<8x128xi1>
    %cst_14 = arith.constant 5.000000e-01 : f32
    %21 = vector.broadcast %cst_14 : f32 to vector<8x128xf32>
    %22 = arith.mulf %21, %14 : vector<8x128xf32>
    %23 = arith.select %20, %14, %22 : vector<8x128xi1>, vector<8x128xf32>
    %24 = math.tanh %23 : vector<8x128xf32>
    %cst_15 = arith.constant 5.000000e-01 : f32
    %25 = vector.broadcast %cst_15 : f32 to vector<8x128xf32>
    %26 = arith.mulf %25, %24 : vector<8x128xf32>
    %cst_16 = arith.constant 5.000000e-01 : f32
    %27 = vector.broadcast %cst_16 : f32 to vector<8x128xf32>
    %28 = arith.addf %26, %27 : vector<8x128xf32>
    %29 = arith.select %20, %24, %28 : vector<8x128xi1>, vector<8x128xf32>
    %30 = vector.extract_strided_slice %29 {offsets = [0, 0], sizes = [8, 32], strides = [1, 1]} : vector<8x128xf32> to vector<8x32xf32>
    %31 = vector.extract_strided_slice %29 {offsets = [0, 32], sizes = [8, 32], strides = [1, 1]} : vector<8x128xf32> to vector<8x32xf32>
    %32 = vector.extract_strided_slice %29 {offsets = [0, 64], sizes = [8, 32], strides = [1, 1]} : vector<8x128xf32> to vector<8x32xf32>
    %33 = vector.extract_strided_slice %29 {offsets = [0, 96], sizes = [8, 32], strides = [1, 1]} : vector<8x128xf32> to vector<8x32xf32>
    %34 = arith.mulf %31, %4 : vector<8x32xf32>
    %35 = arith.mulf %30, %32 : vector<8x32xf32>
    %36 = arith.addf %34, %35 : vector<8x32xf32>
    %37 = math.tanh %36 : vector<8x32xf32>
    %38 = arith.mulf %33, %37 : vector<8x32xf32>
    %c0_17 = arith.constant 0 : index
    %c0_18 = arith.constant 0 : index
    %39 = vector.load %arg15[%c0_17, %c0_18] : memref<8x32xf32, #tpu.memory_space<vmem>>, vector<8x32xf32>
    tpu.vector_store %arg15[%c0_17, %c0_18], %36 {strides = array<i32>} : memref<8x32xf32, #tpu.memory_space<vmem>>, vector<8x32xf32>,
    %c0_19 = arith.constant 0 : index
    %c0_20 = arith.constant 0 : index
    %c0_21 = arith.constant 0 : index
    %40 = vector.load %arg13[%c0_19, %c0_20, %c0_21] : memref<1x8x32xf32, #tpu.memory_space<vmem>>, vector<1x8x32xf32>
    %41 = vector.shape_cast %40 : vector<1x8x32xf32> to vector<8x32xf32>
    %42 = vector.shape_cast %36 : vector<8x32xf32> to vector<1x8x32xf32>
    tpu.vector_store %arg13[%c0_19, %c0_20, %c0_21], %42 {strides = array<i32>} : memref<1x8x32xf32, #tpu.memory_space<vmem>>, vector<1x8x32xf32>,
    %c0_22 = arith.constant 0 : index
    %c0_23 = arith.constant 0 : index
    %43 = vector.load %arg8[%c0_22, %c0_23] : memref<32x32xf32, #tpu.memory_space<vmem>>, vector<32x32xf32>
    %c0_24 = arith.constant 0 : index
    %c0_25 = arith.constant 0 : index
    %44 = vector.load %arg10[%c0_24, %c0_25] : memref<32x32xf32, #tpu.memory_space<vmem>>, vector<32x32xf32>
    %c0_26 = arith.constant 0 : index
    %c0_27 = arith.constant 0 : index
    %45 = vector.load %arg9[%c0_26, %c0_27] : memref<1x32xf32, #tpu.memory_space<vmem>>, vector<1x32xf32>
    %46 = vector.shape_cast %45 : vector<1x32xf32> to vector<1x32xf32>
    %47 = vector.broadcast %46 : vector<1x32xf32> to vector<8x32xf32>
    %c0_28 = arith.constant 0 : index
    %c0_29 = arith.constant 0 : index
    %48 = vector.load %arg11[%c0_28, %c0_29] : memref<1x32xf32, #tpu.memory_space<vmem>>, vector<1x32xf32>
    %49 = vector.shape_cast %48 : vector<1x32xf32> to vector<1x32xf32>
    %50 = vector.broadcast %49 : vector<1x32xf32> to vector<8x32xf32>
    %c0_30 = arith.constant 0 : index
    %c0_31 = arith.constant 0 : index
    %c0_32 = arith.constant 0 : index
    %51 = vector.load %arg2[%c0_30, %c0_31, %c0_32] : memref<1x8x1xf32, #tpu.memory_space<vmem>>, vector<1x8x1xf32>
    %52 = vector.shape_cast %51 : vector<1x8x1xf32> to vector<8x1xf32>
    %cst_33 = arith.constant 0.333333343 : f32
    %53 = vector.broadcast %cst_33 : f32 to vector<8x1xf32>
    %54 = arith.mulf %52, %53 : vector<8x1xf32>
    %55 = vector.shape_cast %54 : vector<8x1xf32> to vector<8x1xf32>
    %56 = vector.broadcast %55 : vector<8x1xf32> to vector<8x32xf32>
    %cst_34 = arith.constant 5.000000e-01 : f32
    %57 = vector.broadcast %cst_34 : f32 to vector<8x32xf32>
    %58 = arith.mulf %56, %57 : vector<8x32xf32>
    %cst_35 = arith.constant 0.166666672 : f32
    %59 = vector.broadcast %cst_35 : f32 to vector<8x32xf32>
    %60 = arith.mulf %56, %59 : vector<8x32xf32>
    %cst_36 = arith.constant dense<0.000000e+00> : vector<8x32xf32>
    %61 = tpu.matmul %38, %43, %cst_36 {dimension_numbers = #tpu.dot_dimension_numbers<[1], [0], [0], [1], [0, 0, 1, 1], [], []>} : vector<8x32xf32>, vector<32x32xf32>, vector<8x32xf32> -> vector<8x32xf32>
    %62 = arith.addf %61, %47 : vector<8x32xf32>
    %63 = math.tanh %62 : vector<8x32xf32>
    %cst_37 = arith.constant dense<0.000000e+00> : vector<8x32xf32>
    %64 = tpu.matmul %63, %44, %cst_37 {dimension_numbers = #tpu.dot_dimension_numbers<[1], [0], [0], [1], [0, 0, 1, 1], [], []>} : vector<8x32xf32>, vector<32x32xf32>, vector<8x32xf32> -> vector<8x32xf32>
    %65 = arith.addf %64, %50 : vector<8x32xf32>
    %66 = arith.mulf %65, %58 : vector<8x32xf32>
    %67 = arith.addf %38, %66 : vector<8x32xf32>
    %cst_38 = arith.constant dense<0.000000e+00> : vector<8x32xf32>
    %68 = tpu.matmul %67, %43, %cst_38 {dimension_numbers = #tpu.dot_dimension_numbers<[1], [0], [0], [1], [0, 0, 1, 1], [], []>} : vector<8x32xf32>, vector<32x32xf32>, vector<8x32xf32> -> vector<8x32xf32>
    %69 = arith.addf %68, %47 : vector<8x32xf32>
    %70 = math.tanh %69 : vector<8x32xf32>
    %cst_39 = arith.constant dense<0.000000e+00> : vector<8x32xf32>
    %71 = tpu.matmul %70, %44, %cst_39 {dimension_numbers = #tpu.dot_dimension_numbers<[1], [0], [0], [1], [0, 0, 1, 1], [], []>} : vector<8x32xf32>, vector<32x32xf32>, vector<8x32xf32> -> vector<8x32xf32>
    %72 = arith.addf %71, %50 : vector<8x32xf32>
    %73 = arith.mulf %72, %58 : vector<8x32xf32>
    %74 = arith.addf %38, %73 : vector<8x32xf32>
    %cst_40 = arith.constant dense<0.000000e+00> : vector<8x32xf32>
    %75 = tpu.matmul %74, %43, %cst_40 {dimension_numbers = #tpu.dot_dimension_numbers<[1], [0], [0], [1], [0, 0, 1, 1], [], []>} : vector<8x32xf32>, vector<32x32xf32>, vector<8x32xf32> -> vector<8x32xf32>
    %76 = arith.addf %75, %47 : vector<8x32xf32>
    %77 = math.tanh %76 : vector<8x32xf32>
    %cst_41 = arith.constant dense<0.000000e+00> : vector<8x32xf32>
    %78 = tpu.matmul %77, %44, %cst_41 {dimension_numbers = #tpu.dot_dimension_numbers<[1], [0], [0], [1], [0, 0, 1, 1], [], []>} : vector<8x32xf32>, vector<32x32xf32>, vector<8x32xf32> -> vector<8x32xf32>
    %79 = arith.addf %78, %50 : vector<8x32xf32>
    %80 = arith.mulf %79, %56 : vector<8x32xf32>
    %81 = arith.addf %38, %80 : vector<8x32xf32>
    %cst_42 = arith.constant dense<0.000000e+00> : vector<8x32xf32>
    %82 = tpu.matmul %81, %43, %cst_42 {dimension_numbers = #tpu.dot_dimension_numbers<[1], [0], [0], [1], [0, 0, 1, 1], [], []>} : vector<8x32xf32>, vector<32x32xf32>, vector<8x32xf32> -> vector<8x32xf32>
    %83 = arith.addf %82, %47 : vector<8x32xf32>
    %84 = math.tanh %83 : vector<8x32xf32>
    %cst_43 = arith.constant dense<0.000000e+00> : vector<8x32xf32>
    %85 = tpu.matmul %84, %44, %cst_43 {dimension_numbers = #tpu.dot_dimension_numbers<[1], [0], [0], [1], [0, 0, 1, 1], [], []>} : vector<8x32xf32>, vector<32x32xf32>, vector<8x32xf32> -> vector<8x32xf32>
    %86 = arith.addf %85, %50 : vector<8x32xf32>
    %87 = arith.addf %72, %79 : vector<8x32xf32>
    %cst_44 = arith.constant 2.000000e+00 : f32
    %88 = vector.broadcast %cst_44 : f32 to vector<8x32xf32>
    %89 = arith.mulf %88, %87 : vector<8x32xf32>
    %90 = arith.addf %65, %89 : vector<8x32xf32>
    %91 = arith.addf %90, %86 : vector<8x32xf32>
    %92 = arith.mulf %60, %91 : vector<8x32xf32>
    %93 = arith.addf %38, %92 : vector<8x32xf32>
    %cst_45 = arith.constant dense<0.000000e+00> : vector<8x32xf32>
    %94 = tpu.matmul %93, %43, %cst_45 {dimension_numbers = #tpu.dot_dimension_numbers<[1], [0], [0], [1], [0, 0, 1, 1], [], []>} : vector<8x32xf32>, vector<32x32xf32>, vector<8x32xf32> -> vector<8x32xf32>
    %95 = arith.addf %94, %47 : vector<8x32xf32>
    %96 = math.tanh %95 : vector<8x32xf32>
    %cst_46 = arith.constant dense<0.000000e+00> : vector<8x32xf32>
    %97 = tpu.matmul %96, %44, %cst_46 {dimension_numbers = #tpu.dot_dimension_numbers<[1], [0], [0], [1], [0, 0, 1, 1], [], []>} : vector<8x32xf32>, vector<32x32xf32>, vector<8x32xf32> -> vector<8x32xf32>
    %98 = arith.addf %97, %50 : vector<8x32xf32>
    %99 = arith.mulf %98, %58 : vector<8x32xf32>
    %100 = arith.addf %93, %99 : vector<8x32xf32>
    %cst_47 = arith.constant dense<0.000000e+00> : vector<8x32xf32>
    %101 = tpu.matmul %100, %43, %cst_47 {dimension_numbers = #tpu.dot_dimension_numbers<[1], [0], [0], [1], [0, 0, 1, 1], [], []>} : vector<8x32xf32>, vector<32x32xf32>, vector<8x32xf32> -> vector<8x32xf32>
    %102 = arith.addf %101, %47 : vector<8x32xf32>
    %103 = math.tanh %102 : vector<8x32xf32>
    %cst_48 = arith.constant dense<0.000000e+00> : vector<8x32xf32>
    %104 = tpu.matmul %103, %44, %cst_48 {dimension_numbers = #tpu.dot_dimension_numbers<[1], [0], [0], [1], [0, 0, 1, 1], [], []>} : vector<8x32xf32>, vector<32x32xf32>, vector<8x32xf32> -> vector<8x32xf32>
    %105 = arith.addf %104, %50 : vector<8x32xf32>
    %106 = arith.mulf %105, %58 : vector<8x32xf32>
    %107 = arith.addf %93, %106 : vector<8x32xf32>
    %cst_49 = arith.constant dense<0.000000e+00> : vector<8x32xf32>
    %108 = tpu.matmul %107, %43, %cst_49 {dimension_numbers = #tpu.dot_dimension_numbers<[1], [0], [0], [1], [0, 0, 1, 1], [], []>} : vector<8x32xf32>, vector<32x32xf32>, vector<8x32xf32> -> vector<8x32xf32>
    %109 = arith.addf %108, %47 : vector<8x32xf32>
    %110 = math.tanh %109 : vector<8x32xf32>
    %cst_50 = arith.constant dense<0.000000e+00> : vector<8x32xf32>
    %111 = tpu.matmul %110, %44, %cst_50 {dimension_numbers = #tpu.dot_dimension_numbers<[1], [0], [0], [1], [0, 0, 1, 1], [], []>} : vector<8x32xf32>, vector<32x32xf32>, vector<8x32xf32> -> vector<8x32xf32>
    %112 = arith.addf %111, %50 : vector<8x32xf32>
    %113 = arith.mulf %112, %56 : vector<8x32xf32>
    %114 = arith.addf %93, %113 : vector<8x32xf32>
    %cst_51 = arith.constant dense<0.000000e+00> : vector<8x32xf32>
    %115 = tpu.matmul %114, %43, %cst_51 {dimension_numbers = #tpu.dot_dimension_numbers<[1], [0], [0], [1], [0, 0, 1, 1], [], []>} : vector<8x32xf32>, vector<32x32xf32>, vector<8x32xf32> -> vector<8x32xf32>
    %116 = arith.addf %115, %47 : vector<8x32xf32>
    %117 = math.tanh %116 : vector<8x32xf32>
    %cst_52 = arith.constant dense<0.000000e+00> : vector<8x32xf32>
    %118 = tpu.matmul %117, %44, %cst_52 {dimension_numbers = #tpu.dot_dimension_numbers<[1], [0], [0], [1], [0, 0, 1, 1], [], []>} : vector<8x32xf32>, vector<32x32xf32>, vector<8x32xf32> -> vector<8x32xf32>
    %119 = arith.addf %118, %50 : vector<8x32xf32>
    %120 = arith.addf %105, %112 : vector<8x32xf32>
    %cst_53 = arith.constant 2.000000e+00 : f32
    %121 = vector.broadcast %cst_53 : f32 to vector<8x32xf32>
    %122 = arith.mulf %121, %120 : vector<8x32xf32>
    %123 = arith.addf %98, %122 : vector<8x32xf32>
    %124 = arith.addf %123, %119 : vector<8x32xf32>
    %125 = arith.mulf %60, %124 : vector<8x32xf32>
    %126 = arith.addf %93, %125 : vector<8x32xf32>
    %cst_54 = arith.constant dense<0.000000e+00> : vector<8x32xf32>
    %127 = tpu.matmul %126, %43, %cst_54 {dimension_numbers = #tpu.dot_dimension_numbers<[1], [0], [0], [1], [0, 0, 1, 1], [], []>} : vector<8x32xf32>, vector<32x32xf32>, vector<8x32xf32> -> vector<8x32xf32>
    %128 = arith.addf %127, %47 : vector<8x32xf32>
    %129 = math.tanh %128 : vector<8x32xf32>
    %cst_55 = arith.constant dense<0.000000e+00> : vector<8x32xf32>
    %130 = tpu.matmul %129, %44, %cst_55 {dimension_numbers = #tpu.dot_dimension_numbers<[1], [0], [0], [1], [0, 0, 1, 1], [], []>} : vector<8x32xf32>, vector<32x32xf32>, vector<8x32xf32> -> vector<8x32xf32>
    %131 = arith.addf %130, %50 : vector<8x32xf32>
    %132 = arith.mulf %131, %58 : vector<8x32xf32>
    %133 = arith.addf %126, %132 : vector<8x32xf32>
    %cst_56 = arith.constant dense<0.000000e+00> : vector<8x32xf32>
    %134 = tpu.matmul %133, %43, %cst_56 {dimension_numbers = #tpu.dot_dimension_numbers<[1], [0], [0], [1], [0, 0, 1, 1], [], []>} : vector<8x32xf32>, vector<32x32xf32>, vector<8x32xf32> -> vector<8x32xf32>
    %135 = arith.addf %134, %47 : vector<8x32xf32>
    %136 = math.tanh %135 : vector<8x32xf32>
    %cst_57 = arith.constant dense<0.000000e+00> : vector<8x32xf32>
    %137 = tpu.matmul %136, %44, %cst_57 {dimension_numbers = #tpu.dot_dimension_numbers<[1], [0], [0], [1], [0, 0, 1, 1], [], []>} : vector<8x32xf32>, vector<32x32xf32>, vector<8x32xf32> -> vector<8x32xf32>
    %138 = arith.addf %137, %50 : vector<8x32xf32>
    %139 = arith.mulf %138, %58 : vector<8x32xf32>
    %140 = arith.addf %126, %139 : vector<8x32xf32>
    %cst_58 = arith.constant dense<0.000000e+00> : vector<8x32xf32>
    %141 = tpu.matmul %140, %43, %cst_58 {dimension_numbers = #tpu.dot_dimension_numbers<[1], [0], [0], [1], [0, 0, 1, 1], [], []>} : vector<8x32xf32>, vector<32x32xf32>, vector<8x32xf32> -> vector<8x32xf32>
    %142 = arith.addf %141, %47 : vector<8x32xf32>
    %143 = math.tanh %142 : vector<8x32xf32>
    %cst_59 = arith.constant dense<0.000000e+00> : vector<8x32xf32>
    %144 = tpu.matmul %143, %44, %cst_59 {dimension_numbers = #tpu.dot_dimension_numbers<[1], [0], [0], [1], [0, 0, 1, 1], [], []>} : vector<8x32xf32>, vector<32x32xf32>, vector<8x32xf32> -> vector<8x32xf32>
    %145 = arith.addf %144, %50 : vector<8x32xf32>
    %146 = arith.mulf %145, %56 : vector<8x32xf32>
    %147 = arith.addf %126, %146 : vector<8x32xf32>
    %cst_60 = arith.constant dense<0.000000e+00> : vector<8x32xf32>
    %148 = tpu.matmul %147, %43, %cst_60 {dimension_numbers = #tpu.dot_dimension_numbers<[1], [0], [0], [1], [0, 0, 1, 1], [], []>} : vector<8x32xf32>, vector<32x32xf32>, vector<8x32xf32> -> vector<8x32xf32>
    %149 = arith.addf %148, %47 : vector<8x32xf32>
    %150 = math.tanh %149 : vector<8x32xf32>
    %cst_61 = arith.constant dense<0.000000e+00> : vector<8x32xf32>
    %151 = tpu.matmul %150, %44, %cst_61 {dimension_numbers = #tpu.dot_dimension_numbers<[1], [0], [0], [1], [0, 0, 1, 1], [], []>} : vector<8x32xf32>, vector<32x32xf32>, vector<8x32xf32> -> vector<8x32xf32>
    %152 = arith.addf %151, %50 : vector<8x32xf32>
    %153 = arith.addf %138, %145 : vector<8x32xf32>
    %cst_62 = arith.constant 2.000000e+00 : f32
    %154 = vector.broadcast %cst_62 : f32 to vector<8x32xf32>
    %155 = arith.mulf %154, %153 : vector<8x32xf32>
    %156 = arith.addf %131, %155 : vector<8x32xf32>
    %157 = arith.addf %156, %152 : vector<8x32xf32>
    %158 = arith.mulf %60, %157 : vector<8x32xf32>
    %159 = arith.addf %126, %158 : vector<8x32xf32>
    %c0_63 = arith.constant 0 : index
    %c0_64 = arith.constant 0 : index
    %160 = vector.load %arg14[%c0_63, %c0_64] : memref<8x32xf32, #tpu.memory_space<vmem>>, vector<8x32xf32>
    tpu.vector_store %arg14[%c0_63, %c0_64], %159 {strides = array<i32>} : memref<8x32xf32, #tpu.memory_space<vmem>>, vector<8x32xf32>,
    %c0_65 = arith.constant 0 : index
    %c0_66 = arith.constant 0 : index
    %c0_67 = arith.constant 0 : index
    %161 = vector.load %arg12[%c0_65, %c0_66, %c0_67] : memref<1x8x32xf32, #tpu.memory_space<vmem>>, vector<1x8x32xf32>
    %162 = vector.shape_cast %161 : vector<1x8x32xf32> to vector<8x32xf32>
    %163 = vector.shape_cast %159 : vector<8x32xf32> to vector<1x8x32xf32>
    tpu.vector_store %arg12[%c0_65, %c0_66, %c0_67], %163 {strides = array<i32>} : memref<1x8x32xf32, #tpu.memory_space<vmem>>, vector<1x8x32xf32>,
    return
  }
  func.func @transform_0(%arg0: i32) -> (i32, i32, i32) {
    %c0_i32 = arith.constant 0 : i32
    %c0_i32_0 = arith.constant 0 : i32
    %c0_i32_1 = arith.constant 0 : i32
    return %arg0, %c0_i32, %c0_i32_0 : i32, i32, i32
  }
  func.func @transform_1(%arg0: i32) -> (i32, i32, i32) {
    %c0_i32 = arith.constant 0 : i32
    %c0_i32_0 = arith.constant 0 : i32
    %c0_i32_1 = arith.constant 0 : i32
    return %arg0, %c0_i32, %c0_i32_0 : i32, i32, i32
  }
  func.func @transform_2(%arg0: i32) -> (i32, i32) {
    %c0_i32 = arith.constant 0 : i32
    %c0_i32_0 = arith.constant 0 : i32
    %c0_i32_1 = arith.constant 0 : i32
    return %c0_i32, %c0_i32_0 : i32, i32
  }
  func.func @transform_3(%arg0: i32) -> (i32, i32) {
    %c0_i32 = arith.constant 0 : i32
    %c0_i32_0 = arith.constant 0 : i32
    %c0_i32_1 = arith.constant 0 : i32
    return %c0_i32, %c0_i32_0 : i32, i32
  }
  func.func @transform_4(%arg0: i32) -> (i32, i32) {
    %c0_i32 = arith.constant 0 : i32
    %c0_i32_0 = arith.constant 0 : i32
    %c0_i32_1 = arith.constant 0 : i32
    return %c0_i32, %c0_i32_0 : i32, i32
  }
  func.func @transform_5(%arg0: i32) -> (i32, i32) {
    %c0_i32 = arith.constant 0 : i32
    %c0_i32_0 = arith.constant 0 : i32
    %c0_i32_1 = arith.constant 0 : i32
    return %c0_i32, %c0_i32_0 : i32, i32
  }
  func.func @transform_6(%arg0: i32) -> (i32, i32) {
    %c0_i32 = arith.constant 0 : i32
    %c0_i32_0 = arith.constant 0 : i32
    %c0_i32_1 = arith.constant 0 : i32
    return %c0_i32, %c0_i32_0 : i32, i32
  }
  func.func @transform_7(%arg0: i32) -> (i32, i32) {
    %c0_i32 = arith.constant 0 : i32
    %c0_i32_0 = arith.constant 0 : i32
    %c0_i32_1 = arith.constant 0 : i32
    return %c0_i32, %c0_i32_0 : i32, i32
  }
  func.func @transform_8(%arg0: i32) -> (i32, i32) {
    %c0_i32 = arith.constant 0 : i32
    %c0_i32_0 = arith.constant 0 : i32
    %c0_i32_1 = arith.constant 0 : i32
    return %c0_i32, %c0_i32_0 : i32, i32
  }
  func.func @transform_9(%arg0: i32) -> (i32, i32) {
    %c0_i32 = arith.constant 0 : i32
    %c0_i32_0 = arith.constant 0 : i32
    %c0_i32_1 = arith.constant 0 : i32
    return %c0_i32, %c0_i32_0 : i32, i32
  }
  func.func @transform_10(%arg0: i32) -> (i32, i32) {
    %c0_i32 = arith.constant 0 : i32
    %c0_i32_0 = arith.constant 0 : i32
    %c0_i32_1 = arith.constant 0 : i32
    return %c0_i32, %c0_i32_0 : i32, i32
  }
  func.func @transform_11(%arg0: i32) -> (i32, i32, i32) {
    %c0_i32 = arith.constant 0 : i32
    %c0_i32_0 = arith.constant 0 : i32
    %c0_i32_1 = arith.constant 0 : i32
    return %arg0, %c0_i32, %c0_i32_0 : i32, i32, i32
  }
  func.func @transform_12(%arg0: i32) -> (i32, i32, i32) {
    %c0_i32 = arith.constant 0 : i32
    %c0_i32_0 = arith.constant 0 : i32
    %c0_i32_1 = arith.constant 0 : i32
    return %arg0, %c0_i32, %c0_i32_0 : i32, i32, i32
  }
}

</mosaic_0001>

<llo_original>
// kernel: _odelstm_sequence_pallas.1
$region0: #{_odelstm_sequence_pallas.1}
  #allocation0 [shape = 'u32[]', space=smem, size = 0x4, offset = 0x4, fixed_abs, tag = 'smem constant byte address 0x4 - core index']
  #allocation1 [shape = 'u32[144,128]{1,0:T(1,128)}', space=vmem, size = 0x12000, scoped, tag = 'internal scratch']
  #allocation2 [shape = 'f32[8,32]{1,0:T(8,128)}', space=vmem, size = 0x1000, scoped, tag = 'scratch operand']
  #allocation3 [shape = 'f32[8,32]{1,0:T(8,128)}', space=vmem, size = 0x1000, scoped, tag = 'scratch operand']
  %s0 = inlined_call_operand.vmem [shape: f32[8,8,16], index: 0, kind: input, shape index: {}]
  %s1 = inlined_call_operand.vmem [shape: f32[8,8,1], index: 1, kind: input, shape index: {}]
  %s2 = inlined_call_operand.hbm [shape: f32[8,32], index: 2, kind: input, shape index: {}]
  %s3 = inlined_call_operand.hbm [shape: f32[8,32], index: 3, kind: input, shape index: {}]
  %s4 = inlined_call_operand.vmem [shape: f32[16,128], index: 4, kind: input, shape index: {}]
  %s5 = inlined_call_operand.vmem [shape: f32[32,128], index: 5, kind: input, shape index: {}]
  %s6 = inlined_call_operand.vmem [shape: f32[1,128], index: 6, kind: input, shape index: {}]
  %s7 = inlined_call_operand.hbm [shape: f32[32,32], index: 7, kind: input, shape index: {}]
  %s8 = inlined_call_operand.hbm [shape: f32[1,32], index: 8, kind: input, shape index: {}]
  %s9 = inlined_call_operand.hbm [shape: f32[32,32], index: 9, kind: input, shape index: {}]
  %s10 = inlined_call_operand.hbm [shape: f32[1,32], index: 10, kind: input, shape index: {}]
  %s11 = inlined_call_operand.hbm [shape: f32[8,8,32], index: 11, kind: output, shape index: {0}]
  %s12 = inlined_call_operand.hbm [shape: f32[8,8,32], index: 12, kind: output, shape index: {1}]
  %13 = xla_tuple %s11, %s12
  %s14 = sld [smem:[#allocation0]]
  $region113: #{_odelstm_sequence_pallas.1} parent=0
    _
  %s16 = ssub.s32 1, %s14
  %s17 = scalar_select 0, %s16, %s14
  $region1: #{_odelstm_sequence_pallas.1} parent=0
    #allocation4 [shape = 'u8[4096]{0}', space=vmem, size = 0x1000, scoped, tag = 'input window, operand 2, single buffered']
    #allocation5 [shape = 's32[2]{0}', space=sflag, size = 0x8, scoped, tag = 'scoped memory for _odelstm_sequence_pallas.1']
    #allocation6 [shape = 's32[2]{0}', space=sflag, size = 0x8, scoped, tag = 'scoped memory for _odelstm_sequence_pallas.1']
    #allocation7 [shape = 'u8[4096]{0}', space=vmem, size = 0x1000, scoped, tag = 'input window, operand 3, single buffered']
    #allocation8 [shape = 's32[1]{0}', space=sflag, size = 0x4, scoped, tag = 'scoped memory for _odelstm_sequence_pallas.1']
    #allocation9 [shape = 'u8[16384]{0}', space=vmem, size = 0x4000, scoped, tag = 'input window, operand 7, single buffered']
    #allocation10 [shape = 'u8[512]{0}', space=vmem, size = 0x400, scoped, tag = 'input window, operand 8, single buffered']
    #allocation11 [shape = 's32[1]{0}', space=sflag, size = 0x4, scoped, tag = 'scoped memory for _odelstm_sequence_pallas.1']
    #allocation12 [shape = 'u8[16384]{0}', space=vmem, size = 0x4000, scoped, tag = 'input window, operand 9, single buffered']
    #allocation13 [shape = 'u8[512]{0}', space=vmem, size = 0x400, scoped, tag = 'input window, operand 10, single buffered']
    #allocation14 [shape = 's32[1]{0}', space=sflag, size = 0x4, scoped, tag = 'scoped memory for _odelstm_sequence_pallas.1']
    #allocation15 [shape = 'u8[8192]{0}', space=vmem, size = 0x2000, scoped, tag = 'output window, operand 0']
    #allocation16 [shape = 'u8[8192]{0}', space=vmem, size = 0x2000, scoped, tag = 'output window, operand 1']
    #allocation17 [shape = 's32[2]{0}', space=sflag, size = 0x8, scoped, tag = 'scoped memory for _odelstm_sequence_pallas.1']
    %18 = vsyncpa [#allocation5], 0
    %19 = vsyncpa [#allocation8], 0
    %20 = vsyncpa [#allocation11], 0
    %21 = vsyncpa [#allocation14], 0
    %22 = vsyncpa [#allocation6], 0
    %s23 = scalar_lea.sflag [#allocation6], 1
    %24 = vsyncpa %s23, 0
    %25 = vsyncpa [#allocation17], 0
    %s26 = scalar_lea.sflag [#allocation17], 1
    %27 = vsyncpa %s26, 0
    loop: start=0, step=1, limit=10
    $region2: #{_odelstm_sequence_pallas.1} parent=1 // loop_pre_header
      _
    $region3: #{_odelstm_sequence_pallas.1} parent=1 // loop_header
      %s29 = sphi 0, %s33
      %p30 = scmp.ge.s32.totalorder %s29, 10
      %s39 = sphi 0, %s41
      %s42 = sphi 0, %s39
      %s43 = sphi 0, %s42
      %s59 = sphi 0, %s43
      %s65 = sphi 0, %s67
      %s68 = sphi 0, %s65
      %s69 = sphi 0, %s68
      %s85 = sphi 0, %s69
      %s89 = sphi 0, %s89
      %s91 = sphi 0, %s89
      %s92 = sphi 0, %s91
      %s106 = sphi 0, %s92
      %s110 = sphi 0, %s110
      %s112 = sphi 0, %s110
      %s113 = sphi 0, %s112
      %s127 = sphi 0, %s113
      %s131 = sphi 0, %s131
      %s133 = sphi 0, %s131
      %s134 = sphi 0, %s133
      %s148 = sphi 0, %s134
      %s152 = sphi 0, %s152
      %s154 = sphi 0, %s152
      %s155 = sphi 0, %s154
      %s169 = sphi 0, %s155
      %s173 = sphi 0, %s173
      %s175 = sphi 0, %s173
      %s176 = sphi 0, %s175
      %s190 = sphi 0, %s176
      %s194 = sphi 0, %s194
      %s196 = sphi 0, %s194
      %s197 = sphi 0, %s196
      %s211 = sphi 0, %s197
      %s215 = sphi 0, %s215
      %s217 = sphi 0, %s215
      %s218 = sphi 0, %s217
      %s232 = sphi 0, %s218
      %s236 = sphi 0, %s236
      %s238 = sphi 0, %s236
      %s239 = sphi 0, %s238
      %s253 = sphi 0, %s239
      %s257 = sphi 0, %s257
      %s259 = sphi 0, %s257
      %s260 = sphi 0, %s259
      %s274 = sphi 0, %s260
      %s280 = sphi 0, %s282
      %s283 = sphi 0, %s280
      %s284 = sphi 0, %s283
      %s300 = sphi 0, %s284
      %s306 = sphi 0, %s308
      %s309 = sphi 0, %s306
      %s310 = sphi 0, %s309
      %s326 = sphi 0, %s310
    $region4: #{_odelstm_sequence_pallas.1} parent=1 // loop_header_branch
      %32 = sbr.rel (%p30) target = $region8
    $region5: #{_odelstm_sequence_pallas.1} parent=1 // loop_body
      %s34 = ssub.s32 %s29, 1
      %s35 = ssub.s32 %s29, 2
      %s36 = sadd.s32 %s29, 1
      %s37 = ssub.s32 %s29, %s36
      %p38 = scmp.eq.s32.totalorder %s37, 0
      %s40 = sadd.s32 %s39, 1
      %s41 = scalar_select %p38, %s39, %s40
      %p44 = pneg %p38
      %p45 = scmp.eq.s32.totalorder %s29, 7
      %p46 = por %p44, %p45
      %p47 = scmp.ne.s32.totalorder %s39, %s42
      %p48 = scmp.eq.s32.totalorder %s29, 0
      %p49 = por %p47, %p48
      %p50 = scmp.ne.s32.totalorder %s39, %s42
      %p51 = scmp.eq.s32.totalorder %s34, 7
      %p52 = por %p50, %p51
      %p53 = scmp.ne.s32.totalorder %s42, %s43
      %p54 = scmp.eq.s32.totalorder %s34, 0
      %p55 = por %p53, %p54
      %p56 = scmp.ne.s32.totalorder %s42, %s43
      %p57 = scmp.eq.s32.totalorder %s35, 7
      %p58 = por %p56, %p57
      %p60 = scmp.ne.s32.totalorder %s43, %s59
      %p61 = scmp.eq.s32.totalorder %s35, 0
      %p62 = por %p60, %p61
      %s63 = ssub.s32 %s29, %s36
      %p64 = scmp.eq.s32.totalorder %s63, 0
      %s66 = sadd.s32 %s65, 1
      %s67 = scalar_select %p64, %s65, %s66
      %p70 = pneg %p64
      %p71 = scmp.eq.s32.totalorder %s29, 7
      %p72 = por %p70, %p71
      %p73 = scmp.ne.s32.totalorder %s65, %s68
      %p74 = scmp.eq.s32.totalorder %s29, 0
      %p75 = por %p73, %p74
      %p76 = scmp.ne.s32.totalorder %s65, %s68
      %p77 = scmp.eq.s32.totalorder %s34, 7
      %p78 = por %p76, %p77
      %p79 = scmp.ne.s32.totalorder %s68, %s69
      %p80 = scmp.eq.s32.totalorder %s34, 0
      %p81 = por %p79, %p80
      %p82 = scmp.ne.s32.totalorder %s68, %s69
      %p83 = scmp.eq.s32.totalorder %s35, 7
      %p84 = por %p82, %p83
      %p86 = scmp.ne.s32.totalorder %s69, %s85
      %p87 = scmp.eq.s32.totalorder %s35, 0
      %p88 = por %p86, %p87
      %s90 = sadd.s32 %s89, 1
      %p93 = scmp.eq.s32.totalorder %s29, 7
      %p94 = scmp.ne.s32.totalorder %s89, %s91
      %p95 = scmp.eq.s32.totalorder %s29, 0
      %p96 = por %p94, %p95
      %p97 = scmp.ne.s32.totalorder %s89, %s91
      %p98 = scmp.eq.s32.totalorder %s34, 7
      %p99 = por %p97, %p98
      %p100 = scmp.ne.s32.totalorder %s91, %s92
      %p101 = scmp.eq.s32.totalorder %s34, 0
      %p102 = por %p100, %p101
      %p103 = scmp.ne.s32.totalorder %s91, %s92
      %p104 = scmp.eq.s32.totalorder %s35, 7
      %p105 = por %p103, %p104
      %p107 = scmp.ne.s32.totalorder %s92, %s106
      %p108 = scmp.eq.s32.totalorder %s35, 0
      %p109 = por %p107, %p108
      %s111 = sadd.s32 %s110, 1
      %p114 = scmp.eq.s32.totalorder %s29, 7
      %p115 = scmp.ne.s32.totalorder %s110, %s112
      %p116 = scmp.eq.s32.totalorder %s29, 0
      %p117 = por %p115, %p116
      %p118 = scmp.ne.s32.totalorder %s110, %s112
      %p119 = scmp.eq.s32.totalorder %s34, 7
      %p120 = por %p118, %p119
      %p121 = scmp.ne.s32.totalorder %s112, %s113
      %p122 = scmp.eq.s32.totalorder %s34, 0
      %p123 = por %p121, %p122
      %p124 = scmp.ne.s32.totalorder %s112, %s113
      %p125 = scmp.eq.s32.totalorder %s35, 7
      %p126 = por %p124, %p125
      %p128 = scmp.ne.s32.totalorder %s113, %s127
      %p129 = scmp.eq.s32.totalorder %s35, 0
      %p130 = por %p128, %p129
      %s132 = sadd.s32 %s131, 1
      %p135 = scmp.eq.s32.totalorder %s29, 7
      %p136 = scmp.ne.s32.totalorder %s131, %s133
      %p137 = scmp.eq.s32.totalorder %s29, 0
      %p138 = por %p136, %p137
      %p139 = scmp.ne.s32.totalorder %s131, %s133
      %p140 = scmp.eq.s32.totalorder %s34, 7
      %p141 = por %p139, %p140
      %p142 = scmp.ne.s32.totalorder %s133, %s134
      %p143 = scmp.eq.s32.totalorder %s34, 0
      %p144 = por %p142, %p143
      %p145 = scmp.ne.s32.totalorder %s133, %s134
      %p146 = scmp.eq.s32.totalorder %s35, 7
      %p147 = por %p145, %p146
      %p149 = scmp.ne.s32.totalorder %s134, %s148
      %p150 = scmp.eq.s32.totalorder %s35, 0
      %p151 = por %p149, %p150
      %s153 = sadd.s32 %s152, 1
      %p156 = scmp.eq.s32.totalorder %s29, 7
      %p157 = scmp.ne.s32.totalorder %s152, %s154
      %p158 = scmp.eq.s32.totalorder %s29, 0
      %p159 = por %p157, %p158
      %p160 = scmp.ne.s32.totalorder %s152, %s154
      %p161 = scmp.eq.s32.totalorder %s34, 7
      %p162 = por %p160, %p161
      %p163 = scmp.ne.s32.totalorder %s154, %s155
      %p164 = scmp.eq.s32.totalorder %s34, 0
      %p165 = por %p163, %p164
      %p166 = scmp.ne.s32.totalorder %s154, %s155
      %p167 = scmp.eq.s32.totalorder %s35, 7
      %p168 = por %p166, %p167
      %p170 = scmp.ne.s32.totalorder %s155, %s169
      %p171 = scmp.eq.s32.totalorder %s35, 0
      %p172 = por %p170, %p171
      %s174 = sadd.s32 %s173, 1
      %p177 = scmp.eq.s32.totalorder %s29, 7
      %p178 = scmp.ne.s32.totalorder %s173, %s175
      %p179 = scmp.eq.s32.totalorder %s29, 0
      %p180 = por %p178, %p179
      %p181 = scmp.ne.s32.totalorder %s173, %s175
      %p182 = scmp.eq.s32.totalorder %s34, 7
      %p183 = por %p181, %p182
      %p184 = scmp.ne.s32.totalorder %s175, %s176
      %p185 = scmp.eq.s32.totalorder %s34, 0
      %p186 = por %p184, %p185
      %p187 = scmp.ne.s32.totalorder %s175, %s176
      %p188 = scmp.eq.s32.totalorder %s35, 7
      %p189 = por %p187, %p188
      %p191 = scmp.ne.s32.totalorder %s176, %s190
      %p192 = scmp.eq.s32.totalorder %s35, 0
      %p193 = por %p191, %p192
      %s195 = sadd.s32 %s194, 1
      %p198 = scmp.eq.s32.totalorder %s29, 7
      %p199 = scmp.ne.s32.totalorder %s194, %s196
      %p200 = scmp.eq.s32.totalorder %s29, 0
      %p201 = por %p199, %p200
      %p202 = scmp.ne.s32.totalorder %s194, %s196
      %p203 = scmp.eq.s32.totalorder %s34, 7
      %p204 = por %p202, %p203
      %p205 = scmp.ne.s32.totalorder %s196, %s197
      %p206 = scmp.eq.s32.totalorder %s34, 0
      %p207 = por %p205, %p206
      %p208 = scmp.ne.s32.totalorder %s196, %s197
      %p209 = scmp.eq.s32.totalorder %s35, 7
      %p210 = por %p208, %p209
      %p212 = scmp.ne.s32.totalorder %s197, %s211
      %p213 = scmp.eq.s32.totalorder %s35, 0
      %p214 = por %p212, %p213
      %s216 = sadd.s32 %s215, 1
      %p219 = scmp.eq.s32.totalorder %s29, 7
      %p220 = scmp.ne.s32.totalorder %s215, %s217
      %p221 = scmp.eq.s32.totalorder %s29, 0
      %p222 = por %p220, %p221
      %p223 = scmp.ne.s32.totalorder %s215, %s217
      %p224 = scmp.eq.s32.totalorder %s34, 7
      %p225 = por %p223, %p224
      %p226 = scmp.ne.s32.totalorder %s217, %s218
      %p227 = scmp.eq.s32.totalorder %s34, 0
      %p228 = por %p226, %p227
      %p229 = scmp.ne.s32.totalorder %s217, %s218
      %p230 = scmp.eq.s32.totalorder %s35, 7
      %p231 = por %p229, %p230
      %p233 = scmp.ne.s32.totalorder %s218, %s232
      %p234 = scmp.eq.s32.totalorder %s35, 0
      %p235 = por %p233, %p234
      %s237 = sadd.s32 %s236, 1
      %p240 = scmp.eq.s32.totalorder %s29, 7
      %p241 = scmp.ne.s32.totalorder %s236, %s238
      %p242 = scmp.eq.s32.totalorder %s29, 0
      %p243 = por %p241, %p242
      %p244 = scmp.ne.s32.totalorder %s236, %s238
      %p245 = scmp.eq.s32.totalorder %s34, 7
      %p246 = por %p244, %p245
      %p247 = scmp.ne.s32.totalorder %s238, %s239
      %p248 = scmp.eq.s32.totalorder %s34, 0
      %p249 = por %p247, %p248
      %p250 = scmp.ne.s32.totalorder %s238, %s239
      %p251 = scmp.eq.s32.totalorder %s35, 7
      %p252 = por %p250, %p251
      %p254 = scmp.ne.s32.totalorder %s239, %s253
      %p255 = scmp.eq.s32.totalorder %s35, 0
      %p256 = por %p254, %p255
      %s258 = sadd.s32 %s257, 1
      %p261 = scmp.eq.s32.totalorder %s29, 7
      %p262 = scmp.ne.s32.totalorder %s257, %s259
      %p263 = scmp.eq.s32.totalorder %s29, 0
      %p264 = por %p262, %p263
      %p265 = scmp.ne.s32.totalorder %s257, %s259
      %p266 = scmp.eq.s32.totalorder %s34, 7
      %p267 = por %p265, %p266
      %p268 = scmp.ne.s32.totalorder %s259, %s260
      %p269 = scmp.eq.s32.totalorder %s34, 0
      %p270 = por %p268, %p269
      %p271 = scmp.ne.s32.totalorder %s259, %s260
      %p272 = scmp.eq.s32.totalorder %s35, 7
      %p273 = por %p271, %p272
      %p275 = scmp.ne.s32.totalorder %s260, %s274
      %p276 = scmp.eq.s32.totalorder %s35, 0
      %p277 = por %p275, %p276
      %s278 = ssub.s32 %s29, %s36
      %p279 = scmp.eq.s32.totalorder %s278, 0
      %s281 = sadd.s32 %s280, 1
      %s282 = scalar_select %p279, %s280, %s281
      %p285 = pneg %p279
      %p286 = scmp.eq.s32.totalorder %s29, 7
      %p287 = por %p285, %p286
      %p288 = scmp.ne.s32.totalorder %s280, %s283
      %p289 = scmp.eq.s32.totalorder %s29, 0
      %p290 = por %p288, %p289
      %p291 = scmp.ne.s32.totalorder %s280, %s283
      %p292 = scmp.eq.s32.totalorder %s34, 7
      %p293 = por %p291, %p292
      %p294 = scmp.ne.s32.totalorder %s283, %s284
      %p295 = scmp.eq.s32.totalorder %s34, 0
      %p296 = por %p294, %p295
      %p297 = scmp.ne.s32.totalorder %s283, %s284
      %p298 = scmp.eq.s32.totalorder %s35, 7
      %p299 = por %p297, %p298
      %p301 = scmp.ne.s32.totalorder %s284, %s300
      %p302 = scmp.eq.s32.totalorder %s35, 0
      %p303 = por %p301, %p302
      %s304 = ssub.s32 %s29, %s36
      %p305 = scmp.eq.s32.totalorder %s304, 0
      %s307 = sadd.s32 %s306, 1
      %s308 = scalar_select %p305, %s306, %s307
      %p311 = pneg %p305
      %p312 = scmp.eq.s32.totalorder %s29, 7
      %p313 = por %p311, %p312
      %p314 = scmp.ne.s32.totalorder %s306, %s309
      %p315 = scmp.eq.s32.totalorder %s29, 0
      %p316 = por %p314, %p315
      %p317 = scmp.ne.s32.totalorder %s306, %s309
      %p318 = scmp.eq.s32.totalorder %s34, 7
      %p319 = por %p317, %p318
      %p320 = scmp.ne.s32.totalorder %s309, %s310
      %p321 = scmp.eq.s32.totalorder %s34, 0
      %p322 = por %p320, %p321
      %p323 = scmp.ne.s32.totalorder %s309, %s310
      %p324 = scmp.eq.s32.totalorder %s35, 7
      %p325 = por %p323, %p324
      %p327 = scmp.ne.s32.totalorder %s310, %s326
      %p328 = scmp.eq.s32.totalorder %s35, 0
      %p329 = por %p327, %p328
      %p330 = scmp.le.s32.totalorder 1, %s29
      %p331 = scmp.lt.s32.totalorder %s29, 9
      %p332 = pnand %p330, %p331
      %p333 = pneg %p332
      // Predicated region
      $region9: #{_odelstm_sequence_pallas.1} parent=5 // pred_check
        _
      $region10: #{_odelstm_sequence_pallas.1} parent=5 // pred_check_branch
        %335 = sbr.rel (%p332) target = $region12
      $region11: #{_odelstm_sequence_pallas.1} parent=5 // pred_region
        %s336 = ssub.s32 %s29, 1
        // Predicated region
        $region13: #{_odelstm_sequence_pallas.1} parent=11 // pred_check
          %p337 = pneg %p102
        $region14: #{_odelstm_sequence_pallas.1} parent=11 // pred_check_branch
          %339 = sbr.rel (%p337) target = $region16
        $region15: #{_odelstm_sequence_pallas.1} parent=11 // pred_region
          %s341 = ssub.s32 128, 128
          %342 = vsyncadd [#allocation5], %s341
          %s344 = sshll.u32 [#allocation4], 4
          %s345 = int_to_ptr.vmem [resolvable:$true] %s344
          %347 = dma.hbm_to_vmem [thread:$0]  %s2, 128, %s345, [#allocation5]
        $region16: #{_odelstm_sequence_pallas.1} parent=11 // pred_fallthru
          _
        // Predicated region
        $region17: #{_odelstm_sequence_pallas.1} parent=11 // pred_check
          %p348 = pneg %p123
        $region18: #{_odelstm_sequence_pallas.1} parent=11 // pred_check_branch
          %350 = sbr.rel (%p348) target = $region20
        $region19: #{_odelstm_sequence_pallas.1} parent=11 // pred_region
          %s352 = ssub.s32 128, 128
          %353 = vsyncadd [#allocation8], %s352
          %s355 = sshll.u32 [#allocation7], 4
          %s356 = int_to_ptr.vmem [resolvable:$true] %s355
          %358 = dma.hbm_to_vmem [thread:$0]  %s3, 128, %s356, [#allocation8]
        $region20: #{_odelstm_sequence_pallas.1} parent=11 // pred_fallthru
          _
        // Predicated region
        $region21: #{_odelstm_sequence_pallas.1} parent=11 // pred_check
          %p359 = pneg %p144
        $region22: #{_odelstm_sequence_pallas.1} parent=11 // pred_check_branch
          %361 = sbr.rel (%p359) target = $region24
        $region23: #{_odelstm_sequence_pallas.1} parent=11 // pred_region
          _
        $region24: #{_odelstm_sequence_pallas.1} parent=11 // pred_fallthru
          _
        // Predicated region
        $region25: #{_odelstm_sequence_pallas.1} parent=11 // pred_check
          %p362 = pneg %p165
        $region26: #{_odelstm_sequence_pallas.1} parent=11 // pred_check_branch
          %364 = sbr.rel (%p362) target = $region28
        $region27: #{_odelstm_sequence_pallas.1} parent=11 // pred_region
          _
        $region28: #{_odelstm_sequence_pallas.1} parent=11 // pred_fallthru
          _
        // Predicated region
        $region29: #{_odelstm_sequence_pallas.1} parent=11 // pred_check
          %p365 = pneg %p186
        $region30: #{_odelstm_sequence_pallas.1} parent=11 // pred_check_branch
          %367 = sbr.rel (%p365) target = $region32
        $region31: #{_odelstm_sequence_pallas.1} parent=11 // pred_region
          _
        $region32: #{_odelstm_sequence_pallas.1} parent=11 // pred_fallthru
          _
        // Predicated region
        $region33: #{_odelstm_sequence_pallas.1} parent=11 // pred_check
          %p368 = pneg %p207
        $region34: #{_odelstm_sequence_pallas.1} parent=11 // pred_check_branch
          %370 = sbr.rel (%p368) target = $region36
        $region35: #{_odelstm_sequence_pallas.1} parent=11 // pred_region
          %s372 = ssub.s32 512, 512
          %373 = vsyncadd [#allocation8], %s372
          %s374 = sshll.u32 [#allocation9], 4
          %s375 = int_to_ptr.vmem [resolvable:$true] %s374
          %380 = dma.hbm_to_vmem [thread:$0]  %s7, 512, %s375, [#allocation8], 128, 128, 8
        $region36: #{_odelstm_sequence_pallas.1} parent=11 // pred_fallthru
          _
        // Predicated region
        $region37: #{_odelstm_sequence_pallas.1} parent=11 // pred_check
          %p381 = pneg %p228
        $region38: #{_odelstm_sequence_pallas.1} parent=11 // pred_check_branch
          %383 = sbr.rel (%p381) target = $region40
        $region39: #{_odelstm_sequence_pallas.1} parent=11 // pred_region
          %s385 = ssub.s32 16, 16
          %386 = vsyncadd [#allocation11], %s385
          %s388 = sshll.u32 [#allocation10], 4
          %s389 = int_to_ptr.vmem [resolvable:$true] %s388
          %391 = dma.hbm_to_vmem [thread:$0]  %s8, 16, %s389, [#allocation11]
        $region40: #{_odelstm_sequence_pallas.1} parent=11 // pred_fallthru
          _
        // Predicated region
        $region41: #{_odelstm_sequence_pallas.1} parent=11 // pred_check
          %p392 = pneg %p249
        $region42: #{_odelstm_sequence_pallas.1} parent=11 // pred_check_branch
          %394 = sbr.rel (%p392) target = $region44
        $region43: #{_odelstm_sequence_pallas.1} parent=11 // pred_region
          %s396 = ssub.s32 512, 512
          %397 = vsyncadd [#allocation11], %s396
          %s398 = sshll.u32 [#allocation12], 4
          %s399 = int_to_ptr.vmem [resolvable:$true] %s398
          %404 = dma.hbm_to_vmem [thread:$0]  %s9, 512, %s399, [#allocation11], 128, 128, 8
        $region44: #{_odelstm_sequence_pallas.1} parent=11 // pred_fallthru
          _
        // Predicated region
        $region45: #{_odelstm_sequence_pallas.1} parent=11 // pred_check
          %p405 = pneg %p270
        $region46: #{_odelstm_sequence_pallas.1} parent=11 // pred_check_branch
          %407 = sbr.rel (%p405) target = $region48
        $region47: #{_odelstm_sequence_pallas.1} parent=11 // pred_region
          %s409 = ssub.s32 16, 16
          %410 = vsyncadd [#allocation14], %s409
          %s412 = sshll.u32 [#allocation13], 4
          %s413 = int_to_ptr.vmem [resolvable:$true] %s412
          %415 = dma.hbm_to_vmem [thread:$0]  %s10, 16, %s413, [#allocation14]
        $region48: #{_odelstm_sequence_pallas.1} parent=11 // pred_fallthru
          _
      $region12: #{_odelstm_sequence_pallas.1} parent=5 // pred_fallthru
        _
      %p416 = scmp.lt.s32.totalorder %s29, 8
      // Predicated region
      $region49: #{_odelstm_sequence_pallas.1} parent=5 // pred_check
        %p417 = pneg %p416
      $region50: #{_odelstm_sequence_pallas.1} parent=5 // pred_check_branch
        %419 = sbr.rel (%p417) target = $region52
      $region51: #{_odelstm_sequence_pallas.1} parent=5 // pred_region
        // Predicated region
        $region53: #{_odelstm_sequence_pallas.1} parent=51 // pred_check
          %p420 = pneg %p49
        $region54: #{_odelstm_sequence_pallas.1} parent=51 // pred_check_branch
          %422 = sbr.rel (%p420) target = $region56
        $region55: #{_odelstm_sequence_pallas.1} parent=51 // pred_region
          %p423 = scmp.lt.s32.totalorder %s29, 7
          %s424 = scalar_select %p423, %s29, 7
          %s425 = smul.addr %s424, 8
          %s426 = scalar_lea.vmem %s0, %s425
        $region56: #{_odelstm_sequence_pallas.1} parent=51 // pred_fallthru
          _
        // Predicated region
        $region57: #{_odelstm_sequence_pallas.1} parent=51 // pred_check
          %p427 = pneg %p75
        $region58: #{_odelstm_sequence_pallas.1} parent=51 // pred_check_branch
          %429 = sbr.rel (%p427) target = $region60
        $region59: #{_odelstm_sequence_pallas.1} parent=51 // pred_region
          %p430 = scmp.lt.s32.totalorder %s29, 7
          %s431 = scalar_select %p430, %s29, 7
          %s432 = smul.addr %s431, 8
          %s433 = scalar_lea.vmem %s1, %s432
        $region60: #{_odelstm_sequence_pallas.1} parent=51 // pred_fallthru
          _
      $region52: #{_odelstm_sequence_pallas.1} parent=5 // pred_fallthru
        _
      %p434 = scmp.le.s32.totalorder 1, %s29
      %p435 = scmp.lt.s32.totalorder %s29, 9
      %p436 = pnand %p434, %p435
      %p437 = pneg %p436
      // Predicated region
      $region61: #{_odelstm_sequence_pallas.1} parent=5 // pred_check
        _
      $region62: #{_odelstm_sequence_pallas.1} parent=5 // pred_check_branch
        %439 = sbr.rel (%p436) target = $region64
      $region63: #{_odelstm_sequence_pallas.1} parent=5 // pred_region
        %s440 = ssub.s32 %s29, 1
        // Predicated region
        $region65: #{_odelstm_sequence_pallas.1} parent=63 // pred_check
          %p441 = pneg %p102
        $region66: #{_odelstm_sequence_pallas.1} parent=63 // pred_check_branch
          %443 = sbr.rel (%p441) target = $region68
        $region67: #{_odelstm_sequence_pallas.1} parent=63 // pred_region
          %444 = dma.done [#allocation5], 128
        $region68: #{_odelstm_sequence_pallas.1} parent=63 // pred_fallthru
          _
        // Predicated region
        $region69: #{_odelstm_sequence_pallas.1} parent=63 // pred_check
          %p445 = pneg %p123
        $region70: #{_odelstm_sequence_pallas.1} parent=63 // pred_check_branch
          %447 = sbr.rel (%p445) target = $region72
        $region71: #{_odelstm_sequence_pallas.1} parent=63 // pred_region
          %448 = dma.done [#allocation8], 128
        $region72: #{_odelstm_sequence_pallas.1} parent=63 // pred_fallthru
          _
        // Predicated region
        $region73: #{_odelstm_sequence_pallas.1} parent=63 // pred_check
          %p449 = pneg %p207
        $region74: #{_odelstm_sequence_pallas.1} parent=63 // pred_check_branch
          %451 = sbr.rel (%p449) target = $region76
        $region75: #{_odelstm_sequence_pallas.1} parent=63 // pred_region
          %452 = dma.done [#allocation8], 512
        $region76: #{_odelstm_sequence_pallas.1} parent=63 // pred_fallthru
          _
        // Predicated region
        $region77: #{_odelstm_sequence_pallas.1} parent=63 // pred_check
          %p453 = pneg %p228
        $region78: #{_odelstm_sequence_pallas.1} parent=63 // pred_check_branch
          %455 = sbr.rel (%p453) target = $region80
        $region79: #{_odelstm_sequence_pallas.1} parent=63 // pred_region
          %456 = dma.done [#allocation11], 16
        $region80: #{_odelstm_sequence_pallas.1} parent=63 // pred_fallthru
          _
        // Predicated region
        $region81: #{_odelstm_sequence_pallas.1} parent=63 // pred_check
          %p457 = pneg %p249
        $region82: #{_odelstm_sequence_pallas.1} parent=63 // pred_check_branch
          %459 = sbr.rel (%p457) target = $region84
        $region83: #{_odelstm_sequence_pallas.1} parent=63 // pred_region
          %460 = dma.done [#allocation11], 512
        $region84: #{_odelstm_sequence_pallas.1} parent=63 // pred_fallthru
          _
        // Predicated region
        $region85: #{_odelstm_sequence_pallas.1} parent=63 // pred_check
          %p461 = pneg %p270
        $region86: #{_odelstm_sequence_pallas.1} parent=63 // pred_check_branch
          %463 = sbr.rel (%p461) target = $region88
        $region87: #{_odelstm_sequence_pallas.1} parent=63 // pred_region
          %464 = dma.done [#allocation14], 16
        $region88: #{_odelstm_sequence_pallas.1} parent=63 // pred_fallthru
          _
        %p465 = scmp.lt.s32.totalorder %s34, 7
        %s466 = scalar_select %p465, %s34, 7
        %s467 = smul.addr %s466, 8
        %s468 = scalar_lea.vmem %s0, %s467
        %p469 = pneg %p55
        %p470 = pneg %p52
        %p471 = scmp.lt.s32.totalorder %s34, 7
        %s472 = scalar_select %p471, %s34, 7
        %s473 = smul.addr %s472, 8
        %s474 = scalar_lea.vmem %s1, %s473
        %p475 = pneg %p81
        %p476 = pneg %p78
        %p477 = pneg %p102
        %p478 = pneg %p99
        %p479 = pneg %p123
        %p480 = pneg %p120
        %p481 = pneg %p144
        %p482 = pneg %p141
        %p483 = pneg %p165
        %p484 = pneg %p162
        %p485 = pneg %p186
        %p486 = pneg %p183
        %p487 = pneg %p207
        %p488 = pneg %p204
        %p489 = pneg %p228
        %p490 = pneg %p225
        %p491 = pneg %p249
        %p492 = pneg %p246
        %p493 = pneg %p270
        %p494 = pneg %p267
        %p495 = pneg %p296
        %p496 = pneg %p293
        %s497 = sand.u32 %s283, 1
        %s498 = scalar_lea.sflag [#allocation6], %s497
        %s499 = sand.u32 %s283, 1
        %s500 = smul.addr %s499, 8
        %s501 = scalar_lea.vmem [#allocation15], %s500
        %p502 = pneg %p322
        %p503 = pneg %p319
        %s504 = sand.u32 %s309, 1
        %s505 = scalar_lea.sflag [#allocation17], %s504
        %s506 = sand.u32 %s309, 1
        %s507 = smul.addr %s506, 8
        %s508 = scalar_lea.vmem [#allocation16], %s507
        %p509 = scmp.lt.s32.totalorder %s34, 7
        %s510 = scalar_select %p509, %s34, 7
        %s511 = smul.addr %s510, 8
        %s512 = scalar_lea.vmem %s0, %s511
        %p513 = scmp.lt.s32.totalorder %s34, 7
        %s514 = scalar_select %p513, %s34, 7
        %s515 = smul.addr %s514, 8
        %s516 = scalar_lea.vmem %s1, %s515
        %p517 = scmp.eq.s32.totalorder %s34, 0
        // Predicated region
        $region89: #{_odelstm_sequence_pallas.1} parent=63 // pred_check
          %p518 = pneg %p517
        $region90: #{_odelstm_sequence_pallas.1} parent=63 // pred_check_branch
          %520 = sbr.rel (%p518) target = $region92
        $region91: #{_odelstm_sequence_pallas.1} parent=63 // pred_region
          %v521 = vld [vmem:[#allocation4] sm:$0xff]
          %vm522 = vcmask 261120
          %523 = vst.msk [vmem:[#allocation2] sm:$0xff] %vm522, %v521
          %v524 = vld [vmem:[#allocation7] sm:$0xff]
          %525 = vst.msk [vmem:[#allocation3] sm:$0xff] %vm522, %v524
        $region92: #{_odelstm_sequence_pallas.1} parent=63 // pred_fallthru
          _
        %v526 = vld [vmem:[#allocation2] sm:$0xff]
        %v527 = vld [vmem:[#allocation3] sm:$0xff]
        %v528 = vld [vmem:[%s512] sm:$0xff]
        %v529 = vld [vmem:[%s4] sm:$0xff]
        %v530 = vld [vmem:[%s4 + $0x8] sm:$0xff]
        %v531 = vld [vmem:[%s5] sm:$0xff]
        %v532 = vld [vmem:[%s5 + $0x8] sm:$0xff]
        %v533 = vld [vmem:[%s5 + $0x10] sm:$0xff]
        %v534 = vld [vmem:[%s5 + $0x18] sm:$0xff]
        %vm535 = vcmask 261120
        %v537 = vsel %vm535, %v526, 0
        %539 = vmatprep.subr.mxu0 0.0
        %540 = vmatpush1.msra.mxu0 %v531
        %541 = vmatprep.subr.mxu0 0.0
        %542 = vmatpush1.msra.mxu0 %v532
        %543 = vmatprep.subr.mxu0 0.0
        %544 = vmatpush1.msra.mxu0 %v533
        %545 = vmatprep.subr.mxu0 0.0
        %546 = vmatpush1.msra.mxu0 %v534
        %547 = vmatprep.subr.mxu0 0.0
        %548 = vmatpush1.msra.mxu0 0.0
        %549 = vmatprep.subr.mxu0 0.0
        %550 = vmatpush1.msra.mxu0 0.0
        %551 = vmatprep.subr.mxu0 0.0
        %552 = vmatpush1.msra.mxu0 0.0
        %553 = vmatprep.subr.mxu0 0.0
        %554 = vmatpush1.msra.mxu0 0.0
        %555 = vmatprep.subr.mxu0 0.0
        %556 = vmatpush1.msra.mxu0 0.0
        %557 = vmatprep.subr.mxu0 0.0
        %558 = vmatpush1.msra.mxu0 0.0
        %559 = vmatprep.subr.mxu0 0.0
        %560 = vmatpush1.msra.mxu0 0.0
        %561 = vmatprep.subr.mxu0 0.0
        %562 = vmatpush1.msra.mxu0 0.0
        %563 = vmatprep.subr.mxu0 0.0
        %564 = vmatpush1.msra.mxu0 0.0
        %565 = vmatprep.subr.mxu0 0.0
        %566 = vmatpush1.msra.mxu0 0.0
        %567 = vmatprep.subr.mxu0 0.0
        %568 = vmatpush1.msra.mxu0 0.0
        %569 = vmatprep.subr.mxu0 0.0
        %570 = vmatpush1.msra.mxu0 0.0
        %571 = vmatprep.subr.mxu0 0.0
        %572 = vmatpush1.msra.mxu0 0.0
        %573 = vmatprep.subr.mxu0 0.0
        %574 = vmatpush1.msra.mxu0 0.0
        %575 = vmatprep.subr.mxu0 0.0
        %576 = vmatpush1.msra.mxu0 0.0
        %577 = vmatprep.subr.mxu0 0.0
        %578 = vmatpush1.msra.mxu0 0.0
        %579 = vmatprep.subr.mxu0 0.0
        %580 = vmatpush1.msra.mxu0 0.0
        %581 = vmatprep.subr.mxu0 0.0
        %582 = vmatpush1.msra.mxu0 0.0
        %583 = vmatprep.subr.mxu0 0.0
        %584 = vmatpush1.msra.mxu0 0.0
        %585 = vmatprep.subr.mxu0 0.0
        %586 = vmatpush1.msra.mxu0 0.0
        %587 = vmatprep.subr.mxu0 0.0
        %588 = vmatpush1.msra.mxu0 0.0
        %589 = vmatprep.subr.mxu0 0.0
        %590 = vmatpush1.msra.mxu0 0.0
        %591 = vmatprep.subr.mxu0 0.0
        %592 = vmatpush1.msra.mxu0 0.0
        %593 = vmatprep.subr.mxu0 0.0
        %594 = vmatpush1.msra.mxu0 0.0
        %595 = vmatprep.subr.mxu0 0.0
        %596 = vmatpush1.msra.mxu0 0.0
        %597 = vmatprep.subr.mxu0 0.0
        %598 = vmatpush1.msra.mxu0 0.0
        %599 = vmatprep.subr.mxu0 0.0
        %600 = vmatpush1.msra.mxu0 0.0
        %601 = vmatprep.subr.mxu0 0.0
        %602 = vmatpush1.msra.mxu0 0.0
        %603 = vmatprep.mubr.f32.mxu0 0.0
        %604 = vmatmul.mubr.f32.gmra.mrb[0].mxu0 %v537
        %v605 = vpop.f32.mrb[0].mxu0
        %v606 = vadd.f32 0.0, %v605
        %v607 = vpop.f32.mrb[0].mxu0
        %608 = vdwg.mxu0
        %vm609 = vcmask 130048
        %v611 = vsel %vm609, %v528, 0
        %613 = vmatprep.subr.mxu0 0.0
        %614 = vmatpush1.msra.mxu0 %v529
        %615 = vmatprep.subr.mxu0 0.0
        %616 = vmatpush1.msra.mxu0 %v530
        %617 = vmatprep.subr.mxu0 0.0
        %618 = vmatpush1.msra.mxu0 0.0
        %619 = vmatprep.subr.mxu0 0.0
        %620 = vmatpush1.msra.mxu0 0.0
        %621 = vmatprep.subr.mxu0 0.0
        %622 = vmatpush1.msra.mxu0 0.0
        %623 = vmatprep.subr.mxu0 0.0
        %624 = vmatpush1.msra.mxu0 0.0
        %625 = vmatprep.subr.mxu0 0.0
        %626 = vmatpush1.msra.mxu0 0.0
        %627 = vmatprep.subr.mxu0 0.0
        %628 = vmatpush1.msra.mxu0 0.0
        %629 = vmatprep.subr.mxu0 0.0
        %630 = vmatpush1.msra.mxu0 0.0
        %631 = vmatprep.subr.mxu0 0.0
        %632 = vmatpush1.msra.mxu0 0.0
        %633 = vmatprep.subr.mxu0 0.0
        %634 = vmatpush1.msra.mxu0 0.0
        %635 = vmatprep.subr.mxu0 0.0
        %636 = vmatpush1.msra.mxu0 0.0
        %637 = vmatprep.subr.mxu0 0.0
        %638 = vmatpush1.msra.mxu0 0.0
        %639 = vmatprep.subr.mxu0 0.0
        %640 = vmatpush1.msra.mxu0 0.0
        %641 = vmatprep.subr.mxu0 0.0
        %642 = vmatpush1.msra.mxu0 0.0
        %643 = vmatprep.subr.mxu0 0.0
        %644 = vmatpush1.msra.mxu0 0.0
        %645 = vmatprep.subr.mxu0 0.0
        %646 = vmatpush1.msra.mxu0 0.0
        %647 = vmatprep.subr.mxu0 0.0
        %648 = vmatpush1.msra.mxu0 0.0
        %649 = vmatprep.subr.mxu0 0.0
        %650 = vmatpush1.msra.mxu0 0.0
        %651 = vmatprep.subr.mxu0 0.0
        %652 = vmatpush1.msra.mxu0 0.0
        %653 = vmatprep.subr.mxu0 0.0
        %654 = vmatpush1.msra.mxu0 0.0
        %655 = vmatprep.subr.mxu0 0.0
        %656 = vmatpush1.msra.mxu0 0.0
        %657 = vmatprep.subr.mxu0 0.0
        %658 = vmatpush1.msra.mxu0 0.0
        %659 = vmatprep.subr.mxu0 0.0
        %660 = vmatpush1.msra.mxu0 0.0
        %661 = vmatprep.subr.mxu0 0.0
        %662 = vmatpush1.msra.mxu0 0.0
        %663 = vmatprep.subr.mxu0 0.0
        %664 = vmatpush1.msra.mxu0 0.0
        %665 = vmatprep.subr.mxu0 0.0
        %666 = vmatpush1.msra.mxu0 0.0
        %667 = vmatprep.subr.mxu0 0.0
        %668 = vmatpush1.msra.mxu0 0.0
        %669 = vmatprep.subr.mxu0 0.0
        %670 = vmatpush1.msra.mxu0 0.0
        %671 = vmatprep.subr.mxu0 0.0
        %672 = vmatpush1.msra.mxu0 0.0
        %673 = vmatprep.subr.mxu0 0.0
        %674 = vmatpush1.msra.mxu0 0.0
        %675 = vmatprep.subr.mxu0 0.0
        %676 = vmatpush1.msra.mxu0 0.0
        %677 = vmatprep.mubr.f32.mxu0 0.0
        %678 = vmatmul.mubr.f32.gmra.mrb[0].mxu0 %v611
        %v679 = vpop.f32.mrb[0].mxu0
        %v680 = vadd.f32 %v606, %v679
        %v681 = vpop.f32.mrb[0].mxu0
        %682 = vdwg.mxu0
        %v683 = vld [vmem:[%s6] sm:$0x1]
        %v685 = vlaneseq
        %v686 = vshrl.u32 %v685, 7
        %v687 = vsub.s32 0, %v686
        %v688 = vrot.slane %v683, %v687
        %v690 = vadd.f32 %v680, %v688
        %v691 = vlaneseq
        %v692 = vand.u32 %v691, 127
        %vm693 = vcmp.ge.s32.totalorder %v692, 64
        %vm694 = vcmp.lt.s32.totalorder %v692, 96
        %vm695 = vmand %vm693, %vm694
        %v696 = vmul.f32 %v690, 0.5
        %v697 = vsel %vm695, %v690, %v696
        %v698 = vtanh.pop %v697
        %v699 = vmul.f32 %v698, 0.5
        %v700 = vadd.f32 %v699, 0.5
        %v701 = vsel %vm695, %v698, %v700
        %703 = vrot.lane.b32.xlu0 %v527, 32
        %v704 = vpop.permute.xlu0 %703
        %v706 = vmul.f32 %v701, %v704
        %708 = vrot.lane.b32.xlu0 %v701, 64
        %v709 = vpop.permute.xlu0 %708
        %v711 = vmul.f32 %v701, %v709
        %713 = vrot.lane.b32.xlu0 %v711, 32
        %v714 = vpop.permute.xlu0 %713
        %v716 = vadd.f32 %v706, %v714
        %v717 = vtanh.pop %v716
        %719 = vrot.lane.b32.xlu0 %v717, 64
        %v720 = vpop.permute.xlu0 %719
        %v722 = vmul.f32 %v701, %v720
        %724 = vrot.lane.b32.xlu0 %v716, 96
        %v725 = vpop.permute.xlu0 %724
        %727 = vst.msk [vmem:[#allocation3] sm:$0xff] %vm535, %v725
        %728 = vst.msk [vmem:[%s508] sm:$0xff] %vm535, %v725
        %v729 = vld [vmem:[#allocation9] sm:$0xff]
        %v730 = vld [vmem:[#allocation9 + $0x8] sm:$0xff]
        %v731 = vld [vmem:[#allocation9 + $0x10] sm:$0xff]
        %v732 = vld [vmem:[#allocation9 + $0x18] sm:$0xff]
        %v733 = vld [vmem:[#allocation12] sm:$0xff]
        %v734 = vld [vmem:[#allocation12 + $0x8] sm:$0xff]
        %v735 = vld [vmem:[#allocation12 + $0x10] sm:$0xff]
        %v736 = vld [vmem:[#allocation12 + $0x18] sm:$0xff]
        %v737 = vld [vmem:[#allocation10] sm:$0x1]
        %v739 = vlaneseq
        %v740 = vshrl.u32 %v739, 7
        %v741 = vsub.s32 0, %v740
        %v742 = vrot.slane %v737, %v741
        %v744 = vld [vmem:[#allocation13] sm:$0x1]
        %v746 = vlaneseq
        %v747 = vshrl.u32 %v746, 7
        %v748 = vsub.s32 0, %v747
        %v749 = vrot.slane %v744, %v748
        %v751 = vld [vmem:[%s516] sm:$0xff]
        %v752 = vmul.f32 %v751, 0.33333334
        %754 = vset.pattern.permute.xlu0 0
        %755 = vperm.xlu0 %754, %v752
        %v756 = vpop.permute.xlu0 %755
        %v758 = vmul.f32 %v756, 0.5
        %v759 = vmul.f32 %v756, 0.16666667
        %761 = vrot.lane.b32.xlu0 %v722, 32
        %v762 = vpop.permute.xlu0 %761
        %v763 = vsel %vm535, %v762, 0
        %765 = vmatprep.subr.mxu0 0.0
        %766 = vmatpush1.msra.mxu0 %v729
        %767 = vmatprep.subr.mxu0 0.0
        %768 = vmatpush1.msra.mxu0 %v730
        %769 = vmatprep.subr.mxu0 0.0
        %770 = vmatpush1.msra.mxu0 %v731
        %771 = vmatprep.subr.mxu0 0.0
        %772 = vmatpush1.msra.mxu0 %v732
        %773 = vmatprep.subr.mxu0 0.0
        %774 = vmatpush1.msra.mxu0 0.0
        %775 = vmatprep.subr.mxu0 0.0
        %776 = vmatpush1.msra.mxu0 0.0
        %777 = vmatprep.subr.mxu0 0.0
        %778 = vmatpush1.msra.mxu0 0.0
        %779 = vmatprep.subr.mxu0 0.0
        %780 = vmatpush1.msra.mxu0 0.0
        %781 = vmatprep.subr.mxu0 0.0
        %782 = vmatpush1.msra.mxu0 0.0
        %783 = vmatprep.subr.mxu0 0.0
        %784 = vmatpush1.msra.mxu0 0.0
        %785 = vmatprep.subr.mxu0 0.0
        %786 = vmatpush1.msra.mxu0 0.0
        %787 = vmatprep.subr.mxu0 0.0
        %788 = vmatpush1.msra.mxu0 0.0
        %789 = vmatprep.subr.mxu0 0.0
        %790 = vmatpush1.msra.mxu0 0.0
        %791 = vmatprep.subr.mxu0 0.0
        %792 = vmatpush1.msra.mxu0 0.0
        %793 = vmatprep.subr.mxu0 0.0
        %794 = vmatpush1.msra.mxu0 0.0
        %795 = vmatprep.subr.mxu0 0.0
        %796 = vmatpush1.msra.mxu0 0.0
        %797 = vmatprep.subr.mxu0 0.0
        %798 = vmatpush1.msra.mxu0 0.0
        %799 = vmatprep.subr.mxu0 0.0
        %800 = vmatpush1.msra.mxu0 0.0
        %801 = vmatprep.subr.mxu0 0.0
        %802 = vmatpush1.msra.mxu0 0.0
        %803 = vmatprep.subr.mxu0 0.0
        %804 = vmatpush1.msra.mxu0 0.0
        %805 = vmatprep.subr.mxu0 0.0
        %806 = vmatpush1.msra.mxu0 0.0
        %807 = vmatprep.subr.mxu0 0.0
        %808 = vmatpush1.msra.mxu0 0.0
        %809 = vmatprep.subr.mxu0 0.0
        %810 = vmatpush1.msra.mxu0 0.0
        %811 = vmatprep.subr.mxu0 0.0
        %812 = vmatpush1.msra.mxu0 0.0
        %813 = vmatprep.subr.mxu0 0.0
        %814 = vmatpush1.msra.mxu0 0.0
        %815 = vmatprep.subr.mxu0 0.0
        %816 = vmatpush1.msra.mxu0 0.0
        %817 = vmatprep.subr.mxu0 0.0
        %818 = vmatpush1.msra.mxu0 0.0
        %819 = vmatprep.subr.mxu0 0.0
        %820 = vmatpush1.msra.mxu0 0.0
        %821 = vmatprep.subr.mxu0 0.0
        %822 = vmatpush1.msra.mxu0 0.0
        %823 = vmatprep.subr.mxu0 0.0
        %824 = vmatpush1.msra.mxu0 0.0
        %825 = vmatprep.subr.mxu0 0.0
        %826 = vmatpush1.msra.mxu0 0.0
        %827 = vmatprep.subr.mxu0 0.0
        %828 = vmatpush1.msra.mxu0 0.0
        %829 = vmatprep.mubr.f32.mxu0 0.0
        %830 = vmatmul.mubr.f32.gmra.mrb[0].mxu0 %v763
        %v831 = vpop.f32.mrb[0].mxu0
        %v832 = vadd.f32 %v742, %v831
        %v833 = vpop.f32.mrb[0].mxu0
        %834 = vdwg.mxu0
        %v835 = vtanh.pop %v832
        %v837 = vsel %vm535, %v835, 0
        %839 = vmatprep.subr.mxu0 0.0
        %840 = vmatpush1.msra.mxu0 %v733
        %841 = vmatprep.subr.mxu0 0.0
        %842 = vmatpush1.msra.mxu0 %v734
        %843 = vmatprep.subr.mxu0 0.0
        %844 = vmatpush1.msra.mxu0 %v735
        %845 = vmatprep.subr.mxu0 0.0
        %846 = vmatpush1.msra.mxu0 %v736
        %847 = vmatprep.subr.mxu0 0.0
        %848 = vmatpush1.msra.mxu0 0.0
        %849 = vmatprep.subr.mxu0 0.0
        %850 = vmatpush1.msra.mxu0 0.0
        %851 = vmatprep.subr.mxu0 0.0
        %852 = vmatpush1.msra.mxu0 0.0
        %853 = vmatprep.subr.mxu0 0.0
        %854 = vmatpush1.msra.mxu0 0.0
        %855 = vmatprep.subr.mxu0 0.0
        %856 = vmatpush1.msra.mxu0 0.0
        %857 = vmatprep.subr.mxu0 0.0
        %858 = vmatpush1.msra.mxu0 0.0
        %859 = vmatprep.subr.mxu0 0.0
        %860 = vmatpush1.msra.mxu0 0.0
        %861 = vmatprep.subr.mxu0 0.0
        %862 = vmatpush1.msra.mxu0 0.0
        %863 = vmatprep.subr.mxu0 0.0
        %864 = vmatpush1.msra.mxu0 0.0
        %865 = vmatprep.subr.mxu0 0.0
        %866 = vmatpush1.msra.mxu0 0.0
        %867 = vmatprep.subr.mxu0 0.0
        %868 = vmatpush1.msra.mxu0 0.0
        %869 = vmatprep.subr.mxu0 0.0
        %870 = vmatpush1.msra.mxu0 0.0
        %871 = vmatprep.subr.mxu0 0.0
        %872 = vmatpush1.msra.mxu0 0.0
        %873 = vmatprep.subr.mxu0 0.0
        %874 = vmatpush1.msra.mxu0 0.0
        %875 = vmatprep.subr.mxu0 0.0
        %876 = vmatpush1.msra.mxu0 0.0
        %877 = vmatprep.subr.mxu0 0.0
        %878 = vmatpush1.msra.mxu0 0.0
        %879 = vmatprep.subr.mxu0 0.0
        %880 = vmatpush1.msra.mxu0 0.0
        %881 = vmatprep.subr.mxu0 0.0
        %882 = vmatpush1.msra.mxu0 0.0
        %883 = vmatprep.subr.mxu0 0.0
        %884 = vmatpush1.msra.mxu0 0.0
        %885 = vmatprep.subr.mxu0 0.0
        %886 = vmatpush1.msra.mxu0 0.0
        %887 = vmatprep.subr.mxu0 0.0
        %888 = vmatpush1.msra.mxu0 0.0
        %889 = vmatprep.subr.mxu0 0.0
        %890 = vmatpush1.msra.mxu0 0.0
        %891 = vmatprep.subr.mxu0 0.0
        %892 = vmatpush1.msra.mxu0 0.0
        %893 = vmatprep.subr.mxu0 0.0
        %894 = vmatpush1.msra.mxu0 0.0
        %895 = vmatprep.subr.mxu0 0.0
        %896 = vmatpush1.msra.mxu0 0.0
        %897 = vmatprep.subr.mxu0 0.0
        %898 = vmatpush1.msra.mxu0 0.0
        %899 = vmatprep.subr.mxu0 0.0
        %900 = vmatpush1.msra.mxu0 0.0
        %901 = vmatprep.subr.mxu0 0.0
        %902 = vmatpush1.msra.mxu0 0.0
        %903 = vmatprep.mubr.f32.mxu0 0.0
        %904 = vmatmul.mubr.f32.gmra.mrb[0].mxu0 %v837
        %v905 = vpop.f32.mrb[0].mxu0
        %v906 = vadd.f32 %v749, %v905
        %v907 = vpop.f32.mrb[0].mxu0
        %908 = vdwg.mxu0
        %v909 = vmul.f32 %v906, %v758
        %911 = vrot.lane.b32.xlu0 %v909, 96
        %v912 = vpop.permute.xlu0 %911
        %v914 = vadd.f32 %v722, %v912
        %916 = vrot.lane.b32.xlu0 %v914, 32
        %v917 = vpop.permute.xlu0 %916
        %v918 = vsel %vm535, %v917, 0
        %920 = vmatprep.subr.mxu0 0.0
        %921 = vmatpush1.msra.mxu0 %v729
        %922 = vmatprep.subr.mxu0 0.0
        %923 = vmatpush1.msra.mxu0 %v730
        %924 = vmatprep.subr.mxu0 0.0
        %925 = vmatpush1.msra.mxu0 %v731
        %926 = vmatprep.subr.mxu0 0.0
        %927 = vmatpush1.msra.mxu0 %v732
        %928 = vmatprep.subr.mxu0 0.0
        %929 = vmatpush1.msra.mxu0 0.0
        %930 = vmatprep.subr.mxu0 0.0
        %931 = vmatpush1.msra.mxu0 0.0
        %932 = vmatprep.subr.mxu0 0.0
        %933 = vmatpush1.msra.mxu0 0.0
        %934 = vmatprep.subr.mxu0 0.0
        %935 = vmatpush1.msra.mxu0 0.0
        %936 = vmatprep.subr.mxu0 0.0
        %937 = vmatpush1.msra.mxu0 0.0
        %938 = vmatprep.subr.mxu0 0.0
        %939 = vmatpush1.msra.mxu0 0.0
        %940 = vmatprep.subr.mxu0 0.0
        %941 = vmatpush1.msra.mxu0 0.0
        %942 = vmatprep.subr.mxu0 0.0
        %943 = vmatpush1.msra.mxu0 0.0
        %944 = vmatprep.subr.mxu0 0.0
        %945 = vmatpush1.msra.mxu0 0.0
        %946 = vmatprep.subr.mxu0 0.0
        %947 = vmatpush1.msra.mxu0 0.0
        %948 = vmatprep.subr.mxu0 0.0
        %949 = vmatpush1.msra.mxu0 0.0
        %950 = vmatprep.subr.mxu0 0.0
        %951 = vmatpush1.msra.mxu0 0.0
        %952 = vmatprep.subr.mxu0 0.0
        %953 = vmatpush1.msra.mxu0 0.0
        %954 = vmatprep.subr.mxu0 0.0
        %955 = vmatpush1.msra.mxu0 0.0
        %956 = vmatprep.subr.mxu0 0.0
        %957 = vmatpush1.msra.mxu0 0.0
        %958 = vmatprep.subr.mxu0 0.0
        %959 = vmatpush1.msra.mxu0 0.0
        %960 = vmatprep.subr.mxu0 0.0
        %961 = vmatpush1.msra.mxu0 0.0
        %962 = vmatprep.subr.mxu0 0.0
        %963 = vmatpush1.msra.mxu0 0.0
        %964 = vmatprep.subr.mxu0 0.0
        %965 = vmatpush1.msra.mxu0 0.0
        %966 = vmatprep.subr.mxu0 0.0
        %967 = vmatpush1.msra.mxu0 0.0
        %968 = vmatprep.subr.mxu0 0.0
        %969 = vmatpush1.msra.mxu0 0.0
        %970 = vmatprep.subr.mxu0 0.0
        %971 = vmatpush1.msra.mxu0 0.0
        %972 = vmatprep.subr.mxu0 0.0
        %973 = vmatpush1.msra.mxu0 0.0
        %974 = vmatprep.subr.mxu0 0.0
        %975 = vmatpush1.msra.mxu0 0.0
        %976 = vmatprep.subr.mxu0 0.0
        %977 = vmatpush1.msra.mxu0 0.0
        %978 = vmatprep.subr.mxu0 0.0
        %979 = vmatpush1.msra.mxu0 0.0
        %980 = vmatprep.subr.mxu0 0.0
        %981 = vmatpush1.msra.mxu0 0.0
        %982 = vmatprep.subr.mxu0 0.0
        %983 = vmatpush1.msra.mxu0 0.0
        %984 = vmatprep.mubr.f32.mxu0 0.0
        %985 = vmatmul.mubr.f32.gmra.mrb[0].mxu0 %v918
        %v986 = vpop.f32.mrb[0].mxu0
        %v987 = vadd.f32 %v742, %v986
        %v988 = vpop.f32.mrb[0].mxu0
        %989 = vdwg.mxu0
        %v990 = vtanh.pop %v987
        %v992 = vsel %vm535, %v990, 0
        %994 = vmatprep.subr.mxu0 0.0
        %995 = vmatpush1.msra.mxu0 %v733
        %996 = vmatprep.subr.mxu0 0.0
        %997 = vmatpush1.msra.mxu0 %v734
        %998 = vmatprep.subr.mxu0 0.0
        %999 = vmatpush1.msra.mxu0 %v735
        %1000 = vmatprep.subr.mxu0 0.0
        %1001 = vmatpush1.msra.mxu0 %v736
        %1002 = vmatprep.subr.mxu0 0.0
        %1003 = vmatpush1.msra.mxu0 0.0
        %1004 = vmatprep.subr.mxu0 0.0
        %1005 = vmatpush1.msra.mxu0 0.0
        %1006 = vmatprep.subr.mxu0 0.0
        %1007 = vmatpush1.msra.mxu0 0.0
        %1008 = vmatprep.subr.mxu0 0.0
        %1009 = vmatpush1.msra.mxu0 0.0
        %1010 = vmatprep.subr.mxu0 0.0
        %1011 = vmatpush1.msra.mxu0 0.0
        %1012 = vmatprep.subr.mxu0 0.0
        %1013 = vmatpush1.msra.mxu0 0.0
        %1014 = vmatprep.subr.mxu0 0.0
        %1015 = vmatpush1.msra.mxu0 0.0
        %1016 = vmatprep.subr.mxu0 0.0
        %1017 = vmatpush1.msra.mxu0 0.0
        %1018 = vmatprep.subr.mxu0 0.0
        %1019 = vmatpush1.msra.mxu0 0.0
        %1020 = vmatprep.subr.mxu0 0.0
        %1021 = vmatpush1.msra.mxu0 0.0
        %1022 = vmatprep.subr.mxu0 0.0
        %1023 = vmatpush1.msra.mxu0 0.0
        %1024 = vmatprep.subr.mxu0 0.0
        %1025 = vmatpush1.msra.mxu0 0.0
        %1026 = vmatprep.subr.mxu0 0.0
        %1027 = vmatpush1.msra.mxu0 0.0
        %1028 = vmatprep.subr.mxu0 0.0
        %1029 = vmatpush1.msra.mxu0 0.0
        %1030 = vmatprep.subr.mxu0 0.0
        %1031 = vmatpush1.msra.mxu0 0.0
        %1032 = vmatprep.subr.mxu0 0.0
        %1033 = vmatpush1.msra.mxu0 0.0
        %1034 = vmatprep.subr.mxu0 0.0
        %1035 = vmatpush1.msra.mxu0 0.0
        %1036 = vmatprep.subr.mxu0 0.0
        %1037 = vmatpush1.msra.mxu0 0.0
        %1038 = vmatprep.subr.mxu0 0.0
        %1039 = vmatpush1.msra.mxu0 0.0
        %1040 = vmatprep.subr.mxu0 0.0
        %1041 = vmatpush1.msra.mxu0 0.0
        %1042 = vmatprep.subr.mxu0 0.0
        %1043 = vmatpush1.msra.mxu0 0.0
        %1044 = vmatprep.subr.mxu0 0.0
        %1045 = vmatpush1.msra.mxu0 0.0
        %1046 = vmatprep.subr.mxu0 0.0
        %1047 = vmatpush1.msra.mxu0 0.0
        %1048 = vmatprep.subr.mxu0 0.0
        %1049 = vmatpush1.msra.mxu0 0.0
        %1050 = vmatprep.subr.mxu0 0.0
        %1051 = vmatpush1.msra.mxu0 0.0
        %1052 = vmatprep.subr.mxu0 0.0
        %1053 = vmatpush1.msra.mxu0 0.0
        %1054 = vmatprep.subr.mxu0 0.0
        %1055 = vmatpush1.msra.mxu0 0.0
        %1056 = vmatprep.subr.mxu0 0.0
        %1057 = vmatpush1.msra.mxu0 0.0
        %1058 = vmatprep.mubr.f32.mxu0 0.0
        %1059 = vmatmul.mubr.f32.gmra.mrb[0].mxu0 %v992
        %v1060 = vpop.f32.mrb[0].mxu0
        %v1061 = vadd.f32 %v749, %v1060
        %v1062 = vpop.f32.mrb[0].mxu0
        %1063 = vdwg.mxu0
        %v1064 = vmul.f32 %v1061, %v758
        %1066 = vrot.lane.b32.xlu0 %v1064, 96
        %v1067 = vpop.permute.xlu0 %1066
        %v1069 = vadd.f32 %v722, %v1067
        %1071 = vrot.lane.b32.xlu0 %v1069, 32
        %v1072 = vpop.permute.xlu0 %1071
        %v1073 = vsel %vm535, %v1072, 0
        %1075 = vmatprep.subr.mxu0 0.0
        %1076 = vmatpush1.msra.mxu0 %v729
        %1077 = vmatprep.subr.mxu0 0.0
        %1078 = vmatpush1.msra.mxu0 %v730
        %1079 = vmatprep.subr.mxu0 0.0
        %1080 = vmatpush1.msra.mxu0 %v731
        %1081 = vmatprep.subr.mxu0 0.0
        %1082 = vmatpush1.msra.mxu0 %v732
        %1083 = vmatprep.subr.mxu0 0.0
        %1084 = vmatpush1.msra.mxu0 0.0
        %1085 = vmatprep.subr.mxu0 0.0
        %1086 = vmatpush1.msra.mxu0 0.0
        %1087 = vmatprep.subr.mxu0 0.0
        %1088 = vmatpush1.msra.mxu0 0.0
        %1089 = vmatprep.subr.mxu0 0.0
        %1090 = vmatpush1.msra.mxu0 0.0
        %1091 = vmatprep.subr.mxu0 0.0
        %1092 = vmatpush1.msra.mxu0 0.0
        %1093 = vmatprep.subr.mxu0 0.0
        %1094 = vmatpush1.msra.mxu0 0.0
        %1095 = vmatprep.subr.mxu0 0.0
        %1096 = vmatpush1.msra.mxu0 0.0
        %1097 = vmatprep.subr.mxu0 0.0
        %1098 = vmatpush1.msra.mxu0 0.0
        %1099 = vmatprep.subr.mxu0 0.0
        %1100 = vmatpush1.msra.mxu0 0.0
        %1101 = vmatprep.subr.mxu0 0.0
        %1102 = vmatpush1.msra.mxu0 0.0
        %1103 = vmatprep.subr.mxu0 0.0
        %1104 = vmatpush1.msra.mxu0 0.0
        %1105 = vmatprep.subr.mxu0 0.0
        %1106 = vmatpush1.msra.mxu0 0.0
        %1107 = vmatprep.subr.mxu0 0.0
        %1108 = vmatpush1.msra.mxu0 0.0
        %1109 = vmatprep.subr.mxu0 0.0
        %1110 = vmatpush1.msra.mxu0 0.0
        %1111 = vmatprep.subr.mxu0 0.0
        %1112 = vmatpush1.msra.mxu0 0.0
        %1113 = vmatprep.subr.mxu0 0.0
        %1114 = vmatpush1.msra.mxu0 0.0
        %1115 = vmatprep.subr.mxu0 0.0
        %1116 = vmatpush1.msra.mxu0 0.0
        %1117 = vmatprep.subr.mxu0 0.0
        %1118 = vmatpush1.msra.mxu0 0.0
        %1119 = vmatprep.subr.mxu0 0.0
        %1120 = vmatpush1.msra.mxu0 0.0
        %1121 = vmatprep.subr.mxu0 0.0
        %1122 = vmatpush1.msra.mxu0 0.0
        %1123 = vmatprep.subr.mxu0 0.0
        %1124 = vmatpush1.msra.mxu0 0.0
        %1125 = vmatprep.subr.mxu0 0.0
        %1126 = vmatpush1.msra.mxu0 0.0
        %1127 = vmatprep.subr.mxu0 0.0
        %1128 = vmatpush1.msra.mxu0 0.0
        %1129 = vmatprep.subr.mxu0 0.0
        %1130 = vmatpush1.msra.mxu0 0.0
        %1131 = vmatprep.subr.mxu0 0.0
        %1132 = vmatpush1.msra.mxu0 0.0
        %1133 = vmatprep.subr.mxu0 0.0
        %1134 = vmatpush1.msra.mxu0 0.0
        %1135 = vmatprep.subr.mxu0 0.0
        %1136 = vmatpush1.msra.mxu0 0.0
        %1137 = vmatprep.subr.mxu0 0.0
        %1138 = vmatpush1.msra.mxu0 0.0
        %1139 = vmatprep.mubr.f32.mxu0 0.0
        %1140 = vmatmul.mubr.f32.gmra.mrb[0].mxu0 %v1073
        %v1141 = vpop.f32.mrb[0].mxu0
        %v1142 = vadd.f32 %v742, %v1141
        %v1143 = vpop.f32.mrb[0].mxu0
        %1144 = vdwg.mxu0
        %v1145 = vtanh.pop %v1142
        %v1147 = vsel %vm535, %v1145, 0
        %1149 = vmatprep.subr.mxu0 0.0
        %1150 = vmatpush1.msra.mxu0 %v733
        %1151 = vmatprep.subr.mxu0 0.0
        %1152 = vmatpush1.msra.mxu0 %v734
        %1153 = vmatprep.subr.mxu0 0.0
        %1154 = vmatpush1.msra.mxu0 %v735
        %1155 = vmatprep.subr.mxu0 0.0
        %1156 = vmatpush1.msra.mxu0 %v736
        %1157 = vmatprep.subr.mxu0 0.0
        %1158 = vmatpush1.msra.mxu0 0.0
        %1159 = vmatprep.subr.mxu0 0.0
        %1160 = vmatpush1.msra.mxu0 0.0
        %1161 = vmatprep.subr.mxu0 0.0
        %1162 = vmatpush1.msra.mxu0 0.0
        %1163 = vmatprep.subr.mxu0 0.0
        %1164 = vmatpush1.msra.mxu0 0.0
        %1165 = vmatprep.subr.mxu0 0.0
        %1166 = vmatpush1.msra.mxu0 0.0
        %1167 = vmatprep.subr.mxu0 0.0
        %1168 = vmatpush1.msra.mxu0 0.0
        %1169 = vmatprep.subr.mxu0 0.0
        %1170 = vmatpush1.msra.mxu0 0.0
        %1171 = vmatprep.subr.mxu0 0.0
        %1172 = vmatpush1.msra.mxu0 0.0
        %1173 = vmatprep.subr.mxu0 0.0
        %1174 = vmatpush1.msra.mxu0 0.0
        %1175 = vmatprep.subr.mxu0 0.0
        %1176 = vmatpush1.msra.mxu0 0.0
        %1177 = vmatprep.subr.mxu0 0.0
        %1178 = vmatpush1.msra.mxu0 0.0
        %1179 = vmatprep.subr.mxu0 0.0
        %1180 = vmatpush1.msra.mxu0 0.0
        %1181 = vmatprep.subr.mxu0 0.0
        %1182 = vmatpush1.msra.mxu0 0.0
        %1183 = vmatprep.subr.mxu0 0.0
        %1184 = vmatpush1.msra.mxu0 0.0
        %1185 = vmatprep.subr.mxu0 0.0
        %1186 = vmatpush1.msra.mxu0 0.0
        %1187 = vmatprep.subr.mxu0 0.0
        %1188 = vmatpush1.msra.mxu0 0.0
        %1189 = vmatprep.subr.mxu0 0.0
        %1190 = vmatpush1.msra.mxu0 0.0
        %1191 = vmatprep.subr.mxu0 0.0
        %1192 = vmatpush1.msra.mxu0 0.0
        %1193 = vmatprep.subr.mxu0 0.0
        %1194 = vmatpush1.msra.mxu0 0.0
        %1195 = vmatprep.subr.mxu0 0.0
        %1196 = vmatpush1.msra.mxu0 0.0
        %1197 = vmatprep.subr.mxu0 0.0
        %1198 = vmatpush1.msra.mxu0 0.0
        %1199 = vmatprep.subr.mxu0 0.0
        %1200 = vmatpush1.msra.mxu0 0.0
        %1201 = vmatprep.subr.mxu0 0.0
        %1202 = vmatpush1.msra.mxu0 0.0
        %1203 = vmatprep.subr.mxu0 0.0
        %1204 = vmatpush1.msra.mxu0 0.0
        %1205 = vmatprep.subr.mxu0 0.0
        %1206 = vmatpush1.msra.mxu0 0.0
        %1207 = vmatprep.subr.mxu0 0.0
        %1208 = vmatpush1.msra.mxu0 0.0
        %1209 = vmatprep.subr.mxu0 0.0
        %1210 = vmatpush1.msra.mxu0 0.0
        %1211 = vmatprep.subr.mxu0 0.0
        %1212 = vmatpush1.msra.mxu0 0.0
        %1213 = vmatprep.mubr.f32.mxu0 0.0
        %1214 = vmatmul.mubr.f32.gmra.mrb[0].mxu0 %v1147
        %v1215 = vpop.f32.mrb[0].mxu0
        %v1216 = vadd.f32 %v749, %v1215
        %v1217 = vpop.f32.mrb[0].mxu0
        %1218 = vdwg.mxu0
        %v1219 = vmul.f32 %v1216, %v756
        %1221 = vrot.lane.b32.xlu0 %v1219, 96
        %v1222 = vpop.permute.xlu0 %1221
        %v1224 = vadd.f32 %v722, %v1222
        %1226 = vrot.lane.b32.xlu0 %v1224, 32
        %v1227 = vpop.permute.xlu0 %1226
        %v1228 = vsel %vm535, %v1227, 0
        %1230 = vmatprep.subr.mxu0 0.0
        %1231 = vmatpush1.msra.mxu0 %v729
        %1232 = vmatprep.subr.mxu0 0.0
        %1233 = vmatpush1.msra.mxu0 %v730
        %1234 = vmatprep.subr.mxu0 0.0
        %1235 = vmatpush1.msra.mxu0 %v731
        %1236 = vmatprep.subr.mxu0 0.0
        %1237 = vmatpush1.msra.mxu0 %v732
        %1238 = vmatprep.subr.mxu0 0.0
        %1239 = vmatpush1.msra.mxu0 0.0
        %1240 = vmatprep.subr.mxu0 0.0
        %1241 = vmatpush1.msra.mxu0 0.0
        %1242 = vmatprep.subr.mxu0 0.0
        %1243 = vmatpush1.msra.mxu0 0.0
        %1244 = vmatprep.subr.mxu0 0.0
        %1245 = vmatpush1.msra.mxu0 0.0
        %1246 = vmatprep.subr.mxu0 0.0
        %1247 = vmatpush1.msra.mxu0 0.0
        %1248 = vmatprep.subr.mxu0 0.0
        %1249 = vmatpush1.msra.mxu0 0.0
        %1250 = vmatprep.subr.mxu0 0.0
        %1251 = vmatpush1.msra.mxu0 0.0
        %1252 = vmatprep.subr.mxu0 0.0
        %1253 = vmatpush1.msra.mxu0 0.0
        %1254 = vmatprep.subr.mxu0 0.0
        %1255 = vmatpush1.msra.mxu0 0.0
        %1256 = vmatprep.subr.mxu0 0.0
        %1257 = vmatpush1.msra.mxu0 0.0
        %1258 = vmatprep.subr.mxu0 0.0
        %1259 = vmatpush1.msra.mxu0 0.0
        %1260 = vmatprep.subr.mxu0 0.0
        %1261 = vmatpush1.msra.mxu0 0.0
        %1262 = vmatprep.subr.mxu0 0.0
        %1263 = vmatpush1.msra.mxu0 0.0
        %1264 = vmatprep.subr.mxu0 0.0
        %1265 = vmatpush1.msra.mxu0 0.0
        %1266 = vmatprep.subr.mxu0 0.0
        %1267 = vmatpush1.msra.mxu0 0.0
        %1268 = vmatprep.subr.mxu0 0.0
        %1269 = vmatpush1.msra.mxu0 0.0
        %1270 = vmatprep.subr.mxu0 0.0
        %1271 = vmatpush1.msra.mxu0 0.0
        %1272 = vmatprep.subr.mxu0 0.0
        %1273 = vmatpush1.msra.mxu0 0.0
        %1274 = vmatprep.subr.mxu0 0.0
        %1275 = vmatpush1.msra.mxu0 0.0
        %1276 = vmatprep.subr.mxu0 0.0
        %1277 = vmatpush1.msra.mxu0 0.0
        %1278 = vmatprep.subr.mxu0 0.0
        %1279 = vmatpush1.msra.mxu0 0.0
        %1280 = vmatprep.subr.mxu0 0.0
        %1281 = vmatpush1.msra.mxu0 0.0
        %1282 = vmatprep.subr.mxu0 0.0
        %1283 = vmatpush1.msra.mxu0 0.0
        %1284 = vmatprep.subr.mxu0 0.0
        %1285 = vmatpush1.msra.mxu0 0.0
        %1286 = vmatprep.subr.mxu0 0.0
        %1287 = vmatpush1.msra.mxu0 0.0
        %1288 = vmatprep.subr.mxu0 0.0
        %1289 = vmatpush1.msra.mxu0 0.0
        %1290 = vmatprep.subr.mxu0 0.0
        %1291 = vmatpush1.msra.mxu0 0.0
        %1292 = vmatprep.subr.mxu0 0.0
        %1293 = vmatpush1.msra.mxu0 0.0
        %1294 = vmatprep.mubr.f32.mxu0 0.0
        %1295 = vmatmul.mubr.f32.gmra.mrb[0].mxu0 %v1228
        %v1296 = vpop.f32.mrb[0].mxu0
        %v1297 = vadd.f32 %v742, %v1296
        %v1298 = vpop.f32.mrb[0].mxu0
        %1299 = vdwg.mxu0
        %v1300 = vtanh.pop %v1297
        %v1302 = vsel %vm535, %v1300, 0
        %1304 = vmatprep.subr.mxu0 0.0
        %1305 = vmatpush1.msra.mxu0 %v733
        %1306 = vmatprep.subr.mxu0 0.0
        %1307 = vmatpush1.msra.mxu0 %v734
        %1308 = vmatprep.subr.mxu0 0.0
        %1309 = vmatpush1.msra.mxu0 %v735
        %1310 = vmatprep.subr.mxu0 0.0
        %1311 = vmatpush1.msra.mxu0 %v736
        %1312 = vmatprep.subr.mxu0 0.0
        %1313 = vmatpush1.msra.mxu0 0.0
        %1314 = vmatprep.subr.mxu0 0.0
        %1315 = vmatpush1.msra.mxu0 0.0
        %1316 = vmatprep.subr.mxu0 0.0
        %1317 = vmatpush1.msra.mxu0 0.0
        %1318 = vmatprep.subr.mxu0 0.0
        %1319 = vmatpush1.msra.mxu0 0.0
        %1320 = vmatprep.subr.mxu0 0.0
        %1321 = vmatpush1.msra.mxu0 0.0
        %1322 = vmatprep.subr.mxu0 0.0
        %1323 = vmatpush1.msra.mxu0 0.0
        %1324 = vmatprep.subr.mxu0 0.0
        %1325 = vmatpush1.msra.mxu0 0.0
        %1326 = vmatprep.subr.mxu0 0.0
        %1327 = vmatpush1.msra.mxu0 0.0
        %1328 = vmatprep.subr.mxu0 0.0
        %1329 = vmatpush1.msra.mxu0 0.0
        %1330 = vmatprep.subr.mxu0 0.0
        %1331 = vmatpush1.msra.mxu0 0.0
        %1332 = vmatprep.subr.mxu0 0.0
        %1333 = vmatpush1.msra.mxu0 0.0
        %1334 = vmatprep.subr.mxu0 0.0
        %1335 = vmatpush1.msra.mxu0 0.0
        %1336 = vmatprep.subr.mxu0 0.0
        %1337 = vmatpush1.msra.mxu0 0.0
        %1338 = vmatprep.subr.mxu0 0.0
        %1339 = vmatpush1.msra.mxu0 0.0
        %1340 = vmatprep.subr.mxu0 0.0
        %1341 = vmatpush1.msra.mxu0 0.0
        %1342 = vmatprep.subr.mxu0 0.0
        %1343 = vmatpush1.msra.mxu0 0.0
        %1344 = vmatprep.subr.mxu0 0.0
        %1345 = vmatpush1.msra.mxu0 0.0
        %1346 = vmatprep.subr.mxu0 0.0
        %1347 = vmatpush1.msra.mxu0 0.0
        %1348 = vmatprep.subr.mxu0 0.0
        %1349 = vmatpush1.msra.mxu0 0.0
        %1350 = vmatprep.subr.mxu0 0.0
        %1351 = vmatpush1.msra.mxu0 0.0
        %1352 = vmatprep.subr.mxu0 0.0
        %1353 = vmatpush1.msra.mxu0 0.0
        %1354 = vmatprep.subr.mxu0 0.0
        %1355 = vmatpush1.msra.mxu0 0.0
        %1356 = vmatprep.subr.mxu0 0.0
        %1357 = vmatpush1.msra.mxu0 0.0
        %1358 = vmatprep.subr.mxu0 0.0
        %1359 = vmatpush1.msra.mxu0 0.0
        %1360 = vmatprep.subr.mxu0 0.0
        %1361 = vmatpush1.msra.mxu0 0.0
        %1362 = vmatprep.subr.mxu0 0.0
        %1363 = vmatpush1.msra.mxu0 0.0
        %1364 = vmatprep.subr.mxu0 0.0
        %1365 = vmatpush1.msra.mxu0 0.0
        %1366 = vmatprep.subr.mxu0 0.0
        %1367 = vmatpush1.msra.mxu0 0.0
        %1368 = vmatprep.mubr.f32.mxu0 0.0
        %1369 = vmatmul.mubr.f32.gmra.mrb[0].mxu0 %v1302
        %v1370 = vpop.f32.mrb[0].mxu0
        %v1371 = vadd.f32 %v749, %v1370
        %v1372 = vpop.f32.mrb[0].mxu0
        %1373 = vdwg.mxu0
        %v1374 = vadd.f32 %v1061, %v1216
        %v1375 = vmul.f32 %v1374, 2.0
        %v1376 = vadd.f32 %v906, %v1375
        %v1377 = vadd.f32 %v1376, %v1371
        %v1378 = vmul.f32 %v759, %v1377
        %1380 = vrot.lane.b32.xlu0 %v1378, 96
        %v1381 = vpop.permute.xlu0 %1380
        %v1383 = vadd.f32 %v722, %v1381
        %1385 = vrot.lane.b32.xlu0 %v1383, 32
        %v1386 = vpop.permute.xlu0 %1385
        %v1387 = vsel %vm535, %v1386, 0
        %1389 = vmatprep.subr.mxu0 0.0
        %1390 = vmatpush1.msra.mxu0 %v729
        %1391 = vmatprep.subr.mxu0 0.0
        %1392 = vmatpush1.msra.mxu0 %v730
        %1393 = vmatprep.subr.mxu0 0.0
        %1394 = vmatpush1.msra.mxu0 %v731
        %1395 = vmatprep.subr.mxu0 0.0
        %1396 = vmatpush1.msra.mxu0 %v732
        %1397 = vmatprep.subr.mxu0 0.0
        %1398 = vmatpush1.msra.mxu0 0.0
        %1399 = vmatprep.subr.mxu0 0.0
        %1400 = vmatpush1.msra.mxu0 0.0
        %1401 = vmatprep.subr.mxu0 0.0
        %1402 = vmatpush1.msra.mxu0 0.0
        %1403 = vmatprep.subr.mxu0 0.0
        %1404 = vmatpush1.msra.mxu0 0.0
        %1405 = vmatprep.subr.mxu0 0.0
        %1406 = vmatpush1.msra.mxu0 0.0
        %1407 = vmatprep.subr.mxu0 0.0
        %1408 = vmatpush1.msra.mxu0 0.0
        %1409 = vmatprep.subr.mxu0 0.0
        %1410 = vmatpush1.msra.mxu0 0.0
        %1411 = vmatprep.subr.mxu0 0.0
        %1412 = vmatpush1.msra.mxu0 0.0
        %1413 = vmatprep.subr.mxu0 0.0
        %1414 = vmatpush1.msra.mxu0 0.0
        %1415 = vmatprep.subr.mxu0 0.0
        %1416 = vmatpush1.msra.mxu0 0.0
        %1417 = vmatprep.subr.mxu0 0.0
        %1418 = vmatpush1.msra.mxu0 0.0
        %1419 = vmatprep.subr.mxu0 0.0
        %1420 = vmatpush1.msra.mxu0 0.0
        %1421 = vmatprep.subr.mxu0 0.0
        %1422 = vmatpush1.msra.mxu0 0.0
        %1423 = vmatprep.subr.mxu0 0.0
        %1424 = vmatpush1.msra.mxu0 0.0
        %1425 = vmatprep.subr.mxu0 0.0
        %1426 = vmatpush1.msra.mxu0 0.0
        %1427 = vmatprep.subr.mxu0 0.0
        %1428 = vmatpush1.msra.mxu0 0.0
        %1429 = vmatprep.subr.mxu0 0.0
        %1430 = vmatpush1.msra.mxu0 0.0
        %1431 = vmatprep.subr.mxu0 0.0
        %1432 = vmatpush1.msra.mxu0 0.0
        %1433 = vmatprep.subr.mxu0 0.0
        %1434 = vmatpush1.msra.mxu0 0.0
        %1435 = vmatprep.subr.mxu0 0.0
        %1436 = vmatpush1.msra.mxu0 0.0
        %1437 = vmatprep.subr.mxu0 0.0
        %1438 = vmatpush1.msra.mxu0 0.0
        %1439 = vmatprep.subr.mxu0 0.0
        %1440 = vmatpush1.msra.mxu0 0.0
        %1441 = vmatprep.subr.mxu0 0.0
        %1442 = vmatpush1.msra.mxu0 0.0
        %1443 = vmatprep.subr.mxu0 0.0
        %1444 = vmatpush1.msra.mxu0 0.0
        %1445 = vmatprep.subr.mxu0 0.0
        %1446 = vmatpush1.msra.mxu0 0.0
        %1447 = vmatprep.subr.mxu0 0.0
        %1448 = vmatpush1.msra.mxu0 0.0
        %1449 = vmatprep.subr.mxu0 0.0
        %1450 = vmatpush1.msra.mxu0 0.0
        %1451 = vmatprep.subr.mxu0 0.0
        %1452 = vmatpush1.msra.mxu0 0.0
        %1453 = vmatprep.mubr.f32.mxu0 0.0
        %1454 = vmatmul.mubr.f32.gmra.mrb[0].mxu0 %v1387
        %v1455 = vpop.f32.mrb[0].mxu0
        %v1456 = vadd.f32 %v742, %v1455
        %v1457 = vpop.f32.mrb[0].mxu0
        %1458 = vdwg.mxu0
        %v1459 = vtanh.pop %v1456
        %v1461 = vsel %vm535, %v1459, 0
        %1463 = vmatprep.subr.mxu0 0.0
        %1464 = vmatpush1.msra.mxu0 %v733
        %1465 = vmatprep.subr.mxu0 0.0
        %1466 = vmatpush1.msra.mxu0 %v734
        %1467 = vmatprep.subr.mxu0 0.0
        %1468 = vmatpush1.msra.mxu0 %v735
        %1469 = vmatprep.subr.mxu0 0.0
        %1470 = vmatpush1.msra.mxu0 %v736
        %1471 = vmatprep.subr.mxu0 0.0
        %1472 = vmatpush1.msra.mxu0 0.0
        %1473 = vmatprep.subr.mxu0 0.0
        %1474 = vmatpush1.msra.mxu0 0.0
        %1475 = vmatprep.subr.mxu0 0.0
        %1476 = vmatpush1.msra.mxu0 0.0
        %1477 = vmatprep.subr.mxu0 0.0
        %1478 = vmatpush1.msra.mxu0 0.0
        %1479 = vmatprep.subr.mxu0 0.0
        %1480 = vmatpush1.msra.mxu0 0.0
        %1481 = vmatprep.subr.mxu0 0.0
        %1482 = vmatpush1.msra.mxu0 0.0
        %1483 = vmatprep.subr.mxu0 0.0
        %1484 = vmatpush1.msra.mxu0 0.0
        %1485 = vmatprep.subr.mxu0 0.0
        %1486 = vmatpush1.msra.mxu0 0.0
        %1487 = vmatprep.subr.mxu0 0.0
        %1488 = vmatpush1.msra.mxu0 0.0
        %1489 = vmatprep.subr.mxu0 0.0
        %1490 = vmatpush1.msra.mxu0 0.0
        %1491 = vmatprep.subr.mxu0 0.0
        %1492 = vmatpush1.msra.mxu0 0.0
        %1493 = vmatprep.subr.mxu0 0.0
        %1494 = vmatpush1.msra.mxu0 0.0
        %1495 = vmatprep.subr.mxu0 0.0
        %1496 = vmatpush1.msra.mxu0 0.0
        %1497 = vmatprep.subr.mxu0 0.0
        %1498 = vmatpush1.msra.mxu0 0.0
        %1499 = vmatprep.subr.mxu0 0.0
        %1500 = vmatpush1.msra.mxu0 0.0
        %1501 = vmatprep.subr.mxu0 0.0
        %1502 = vmatpush1.msra.mxu0 0.0
        %1503 = vmatprep.subr.mxu0 0.0
        %1504 = vmatpush1.msra.mxu0 0.0
        %1505 = vmatprep.subr.mxu0 0.0
        %1506 = vmatpush1.msra.mxu0 0.0
        %1507 = vmatprep.subr.mxu0 0.0
        %1508 = vmatpush1.msra.mxu0 0.0
        %1509 = vmatprep.subr.mxu0 0.0
        %1510 = vmatpush1.msra.mxu0 0.0
        %1511 = vmatprep.subr.mxu0 0.0
        %1512 = vmatpush1.msra.mxu0 0.0
        %1513 = vmatprep.subr.mxu0 0.0
        %1514 = vmatpush1.msra.mxu0 0.0
        %1515 = vmatprep.subr.mxu0 0.0
        %1516 = vmatpush1.msra.mxu0 0.0
        %1517 = vmatprep.subr.mxu0 0.0
        %1518 = vmatpush1.msra.mxu0 0.0
        %1519 = vmatprep.subr.mxu0 0.0
        %1520 = vmatpush1.msra.mxu0 0.0
        %1521 = vmatprep.subr.mxu0 0.0
        %1522 = vmatpush1.msra.mxu0 0.0
        %1523 = vmatprep.subr.mxu0 0.0
        %1524 = vmatpush1.msra.mxu0 0.0
        %1525 = vmatprep.subr.mxu0 0.0
        %1526 = vmatpush1.msra.mxu0 0.0
        %1527 = vmatprep.mubr.f32.mxu0 0.0
        %1528 = vmatmul.mubr.f32.gmra.mrb[0].mxu0 %v1461
        %v1529 = vpop.f32.mrb[0].mxu0
        %v1530 = vadd.f32 %v749, %v1529
        %v1531 = vpop.f32.mrb[0].mxu0
        %1532 = vdwg.mxu0
        %v1533 = vmul.f32 %v1530, %v758
        %1535 = vrot.lane.b32.xlu0 %v1533, 96
        %v1536 = vpop.permute.xlu0 %1535
        %v1538 = vadd.f32 %v1383, %v1536
        %1540 = vrot.lane.b32.xlu0 %v1538, 32
        %v1541 = vpop.permute.xlu0 %1540
        %v1542 = vsel %vm535, %v1541, 0
        %1544 = vmatprep.subr.mxu0 0.0
        %1545 = vmatpush1.msra.mxu0 %v729
        %1546 = vmatprep.subr.mxu0 0.0
        %1547 = vmatpush1.msra.mxu0 %v730
        %1548 = vmatprep.subr.mxu0 0.0
        %1549 = vmatpush1.msra.mxu0 %v731
        %1550 = vmatprep.subr.mxu0 0.0
        %1551 = vmatpush1.msra.mxu0 %v732
        %1552 = vmatprep.subr.mxu0 0.0
        %1553 = vmatpush1.msra.mxu0 0.0
        %1554 = vmatprep.subr.mxu0 0.0
        %1555 = vmatpush1.msra.mxu0 0.0
        %1556 = vmatprep.subr.mxu0 0.0
        %1557 = vmatpush1.msra.mxu0 0.0
        %1558 = vmatprep.subr.mxu0 0.0
        %1559 = vmatpush1.msra.mxu0 0.0
        %1560 = vmatprep.subr.mxu0 0.0
        %1561 = vmatpush1.msra.mxu0 0.0
        %1562 = vmatprep.subr.mxu0 0.0
        %1563 = vmatpush1.msra.mxu0 0.0
        %1564 = vmatprep.subr.mxu0 0.0
        %1565 = vmatpush1.msra.mxu0 0.0
        %1566 = vmatprep.subr.mxu0 0.0
        %1567 = vmatpush1.msra.mxu0 0.0
        %1568 = vmatprep.subr.mxu0 0.0
        %1569 = vmatpush1.msra.mxu0 0.0
        %1570 = vmatprep.subr.mxu0 0.0
        %1571 = vmatpush1.msra.mxu0 0.0
        %1572 = vmatprep.subr.mxu0 0.0
        %1573 = vmatpush1.msra.mxu0 0.0
        %1574 = vmatprep.subr.mxu0 0.0
        %1575 = vmatpush1.msra.mxu0 0.0
        %1576 = vmatprep.subr.mxu0 0.0
        %1577 = vmatpush1.msra.mxu0 0.0
        %1578 = vmatprep.subr.mxu0 0.0
        %1579 = vmatpush1.msra.mxu0 0.0
        %1580 = vmatprep.subr.mxu0 0.0
        %1581 = vmatpush1.msra.mxu0 0.0
        %1582 = vmatprep.subr.mxu0 0.0
        %1583 = vmatpush1.msra.mxu0 0.0
        %1584 = vmatprep.subr.mxu0 0.0
        %1585 = vmatpush1.msra.mxu0 0.0
        %1586 = vmatprep.subr.mxu0 0.0
        %1587 = vmatpush1.msra.mxu0 0.0
        %1588 = vmatprep.subr.mxu0 0.0
        %1589 = vmatpush1.msra.mxu0 0.0
        %1590 = vmatprep.subr.mxu0 0.0
        %1591 = vmatpush1.msra.mxu0 0.0
        %1592 = vmatprep.subr.mxu0 0.0
        %1593 = vmatpush1.msra.mxu0 0.0
        %1594 = vmatprep.subr.mxu0 0.0
        %1595 = vmatpush1.msra.mxu0 0.0
        %1596 = vmatprep.subr.mxu0 0.0
        %1597 = vmatpush1.msra.mxu0 0.0
        %1598 = vmatprep.subr.mxu0 0.0
        %1599 = vmatpush1.msra.mxu0 0.0
        %1600 = vmatprep.subr.mxu0 0.0
        %1601 = vmatpush1.msra.mxu0 0.0
        %1602 = vmatprep.subr.mxu0 0.0
        %1603 = vmatpush1.msra.mxu0 0.0
        %1604 = vmatprep.subr.mxu0 0.0
        %1605 = vmatpush1.msra.mxu0 0.0
        %1606 = vmatprep.subr.mxu0 0.0
        %1607 = vmatpush1.msra.mxu0 0.0
        %1608 = vmatprep.mubr.f32.mxu0 0.0
        %1609 = vmatmul.mubr.f32.gmra.mrb[0].mxu0 %v1542
        %v1610 = vpop.f32.mrb[0].mxu0
        %v1611 = vadd.f32 %v742, %v1610
        %v1612 = vpop.f32.mrb[0].mxu0
        %1613 = vdwg.mxu0
        %v1614 = vtanh.pop %v1611
        %v1616 = vsel %vm535, %v1614, 0
        %1618 = vmatprep.subr.mxu0 0.0
        %1619 = vmatpush1.msra.mxu0 %v733
        %1620 = vmatprep.subr.mxu0 0.0
        %1621 = vmatpush1.msra.mxu0 %v734
        %1622 = vmatprep.subr.mxu0 0.0
        %1623 = vmatpush1.msra.mxu0 %v735
        %1624 = vmatprep.subr.mxu0 0.0
        %1625 = vmatpush1.msra.mxu0 %v736
        %1626 = vmatprep.subr.mxu0 0.0
        %1627 = vmatpush1.msra.mxu0 0.0
        %1628 = vmatprep.subr.mxu0 0.0
        %1629 = vmatpush1.msra.mxu0 0.0
        %1630 = vmatprep.subr.mxu0 0.0
        %1631 = vmatpush1.msra.mxu0 0.0
        %1632 = vmatprep.subr.mxu0 0.0
        %1633 = vmatpush1.msra.mxu0 0.0
        %1634 = vmatprep.subr.mxu0 0.0
        %1635 = vmatpush1.msra.mxu0 0.0
        %1636 = vmatprep.subr.mxu0 0.0
        %1637 = vmatpush1.msra.mxu0 0.0
        %1638 = vmatprep.subr.mxu0 0.0
        %1639 = vmatpush1.msra.mxu0 0.0
        %1640 = vmatprep.subr.mxu0 0.0
        %1641 = vmatpush1.msra.mxu0 0.0
        %1642 = vmatprep.subr.mxu0 0.0
        %1643 = vmatpush1.msra.mxu0 0.0
        %1644 = vmatprep.subr.mxu0 0.0
        %1645 = vmatpush1.msra.mxu0 0.0
        %1646 = vmatprep.subr.mxu0 0.0
        %1647 = vmatpush1.msra.mxu0 0.0
        %1648 = vmatprep.subr.mxu0 0.0
        %1649 = vmatpush1.msra.mxu0 0.0
        %1650 = vmatprep.subr.mxu0 0.0
        %1651 = vmatpush1.msra.mxu0 0.0
        %1652 = vmatprep.subr.mxu0 0.0
        %1653 = vmatpush1.msra.mxu0 0.0
        %1654 = vmatprep.subr.mxu0 0.0
        %1655 = vmatpush1.msra.mxu0 0.0
        %1656 = vmatprep.subr.mxu0 0.0
        %1657 = vmatpush1.msra.mxu0 0.0
        %1658 = vmatprep.subr.mxu0 0.0
        %1659 = vmatpush1.msra.mxu0 0.0
        %1660 = vmatprep.subr.mxu0 0.0
        %1661 = vmatpush1.msra.mxu0 0.0
        %1662 = vmatprep.subr.mxu0 0.0
        %1663 = vmatpush1.msra.mxu0 0.0
        %1664 = vmatprep.subr.mxu0 0.0
        %1665 = vmatpush1.msra.mxu0 0.0
        %1666 = vmatprep.subr.mxu0 0.0
        %1667 = vmatpush1.msra.mxu0 0.0
        %1668 = vmatprep.subr.mxu0 0.0
        %1669 = vmatpush1.msra.mxu0 0.0
        %1670 = vmatprep.subr.mxu0 0.0
        %1671 = vmatpush1.msra.mxu0 0.0
        %1672 = vmatprep.subr.mxu0 0.0
        %1673 = vmatpush1.msra.mxu0 0.0
        %1674 = vmatprep.subr.mxu0 0.0
        %1675 = vmatpush1.msra.mxu0 0.0
        %1676 = vmatprep.subr.mxu0 0.0
        %1677 = vmatpush1.msra.mxu0 0.0
        %1678 = vmatprep.subr.mxu0 0.0
        %1679 = vmatpush1.msra.mxu0 0.0
        %1680 = vmatprep.subr.mxu0 0.0
        %1681 = vmatpush1.msra.mxu0 0.0
        %1682 = vmatprep.mubr.f32.mxu0 0.0
        %1683 = vmatmul.mubr.f32.gmra.mrb[0].mxu0 %v1616
        %v1684 = vpop.f32.mrb[0].mxu0
        %v1685 = vadd.f32 %v749, %v1684
        %v1686 = vpop.f32.mrb[0].mxu0
        %1687 = vdwg.mxu0
        %v1688 = vmul.f32 %v1685, %v758
        %1690 = vrot.lane.b32.xlu0 %v1688, 96
        %v1691 = vpop.permute.xlu0 %1690
        %v1693 = vadd.f32 %v1383, %v1691
        %1695 = vrot.lane.b32.xlu0 %v1693, 32
        %v1696 = vpop.permute.xlu0 %1695
        %v1697 = vsel %vm535, %v1696, 0
        %1699 = vmatprep.subr.mxu0 0.0
        %1700 = vmatpush1.msra.mxu0 %v729
        %1701 = vmatprep.subr.mxu0 0.0
        %1702 = vmatpush1.msra.mxu0 %v730
        %1703 = vmatprep.subr.mxu0 0.0
        %1704 = vmatpush1.msra.mxu0 %v731
        %1705 = vmatprep.subr.mxu0 0.0
        %1706 = vmatpush1.msra.mxu0 %v732
        %1707 = vmatprep.subr.mxu0 0.0
        %1708 = vmatpush1.msra.mxu0 0.0
        %1709 = vmatprep.subr.mxu0 0.0
        %1710 = vmatpush1.msra.mxu0 0.0
        %1711 = vmatprep.subr.mxu0 0.0
        %1712 = vmatpush1.msra.mxu0 0.0
        %1713 = vmatprep.subr.mxu0 0.0
        %1714 = vmatpush1.msra.mxu0 0.0
        %1715 = vmatprep.subr.mxu0 0.0
        %1716 = vmatpush1.msra.mxu0 0.0
        %1717 = vmatprep.subr.mxu0 0.0
        %1718 = vmatpush1.msra.mxu0 0.0
        %1719 = vmatprep.subr.mxu0 0.0
        %1720 = vmatpush1.msra.mxu0 0.0
        %1721 = vmatprep.subr.mxu0 0.0
        %1722 = vmatpush1.msra.mxu0 0.0
        %1723 = vmatprep.subr.mxu0 0.0
        %1724 = vmatpush1.msra.mxu0 0.0
        %1725 = vmatprep.subr.mxu0 0.0
        %1726 = vmatpush1.msra.mxu0 0.0
        %1727 = vmatprep.subr.mxu0 0.0
        %1728 = vmatpush1.msra.mxu0 0.0
        %1729 = vmatprep.subr.mxu0 0.0
        %1730 = vmatpush1.msra.mxu0 0.0
        %1731 = vmatprep.subr.mxu0 0.0
        %1732 = vmatpush1.msra.mxu0 0.0
        %1733 = vmatprep.subr.mxu0 0.0
        %1734 = vmatpush1.msra.mxu0 0.0
        %1735 = vmatprep.subr.mxu0 0.0
        %1736 = vmatpush1.msra.mxu0 0.0
        %1737 = vmatprep.subr.mxu0 0.0
        %1738 = vmatpush1.msra.mxu0 0.0
        %1739 = vmatprep.subr.mxu0 0.0
        %1740 = vmatpush1.msra.mxu0 0.0
        %1741 = vmatprep.subr.mxu0 0.0
        %1742 = vmatpush1.msra.mxu0 0.0
        %1743 = vmatprep.subr.mxu0 0.0
        %1744 = vmatpush1.msra.mxu0 0.0
        %1745 = vmatprep.subr.mxu0 0.0
        %1746 = vmatpush1.msra.mxu0 0.0
        %1747 = vmatprep.subr.mxu0 0.0
        %1748 = vmatpush1.msra.mxu0 0.0
        %1749 = vmatprep.subr.mxu0 0.0
        %1750 = vmatpush1.msra.mxu0 0.0
        %1751 = vmatprep.subr.mxu0 0.0
        %1752 = vmatpush1.msra.mxu0 0.0
        %1753 = vmatprep.subr.mxu0 0.0
        %1754 = vmatpush1.msra.mxu0 0.0
        %1755 = vmatprep.subr.mxu0 0.0
        %1756 = vmatpush1.msra.mxu0 0.0
        %1757 = vmatprep.subr.mxu0 0.0
        %1758 = vmatpush1.msra.mxu0 0.0
        %1759 = vmatprep.subr.mxu0 0.0
        %1760 = vmatpush1.msra.mxu0 0.0
        %1761 = vmatprep.subr.mxu0 0.0
        %1762 = vmatpush1.msra.mxu0 0.0
        %1763 = vmatprep.mubr.f32.mxu0 0.0
        %1764 = vmatmul.mubr.f32.gmra.mrb[0].mxu0 %v1697
        %v1765 = vpop.f32.mrb[0].mxu0
        %v1766 = vadd.f32 %v742, %v1765
        %v1767 = vpop.f32.mrb[0].mxu0
        %1768 = vdwg.mxu0
        %v1769 = vtanh.pop %v1766
        %v1771 = vsel %vm535, %v1769, 0
        %1773 = vmatprep.subr.mxu0 0.0
        %1774 = vmatpush1.msra.mxu0 %v733
        %1775 = vmatprep.subr.mxu0 0.0
        %1776 = vmatpush1.msra.mxu0 %v734
        %1777 = vmatprep.subr.mxu0 0.0
        %1778 = vmatpush1.msra.mxu0 %v735
        %1779 = vmatprep.subr.mxu0 0.0
        %1780 = vmatpush1.msra.mxu0 %v736
        %1781 = vmatprep.subr.mxu0 0.0
        %1782 = vmatpush1.msra.mxu0 0.0
        %1783 = vmatprep.subr.mxu0 0.0
        %1784 = vmatpush1.msra.mxu0 0.0
        %1785 = vmatprep.subr.mxu0 0.0
        %1786 = vmatpush1.msra.mxu0 0.0
        %1787 = vmatprep.subr.mxu0 0.0
        %1788 = vmatpush1.msra.mxu0 0.0
        %1789 = vmatprep.subr.mxu0 0.0
        %1790 = vmatpush1.msra.mxu0 0.0
        %1791 = vmatprep.subr.mxu0 0.0
        %1792 = vmatpush1.msra.mxu0 0.0
        %1793 = vmatprep.subr.mxu0 0.0
        %1794 = vmatpush1.msra.mxu0 0.0
        %1795 = vmatprep.subr.mxu0 0.0
        %1796 = vmatpush1.msra.mxu0 0.0
        %1797 = vmatprep.subr.mxu0 0.0
        %1798 = vmatpush1.msra.mxu0 0.0
        %1799 = vmatprep.subr.mxu0 0.0
        %1800 = vmatpush1.msra.mxu0 0.0
        %1801 = vmatprep.subr.mxu0 0.0
        %1802 = vmatpush1.msra.mxu0 0.0
        %1803 = vmatprep.subr.mxu0 0.0
        %1804 = vmatpush1.msra.mxu0 0.0
        %1805 = vmatprep.subr.mxu0 0.0
        %1806 = vmatpush1.msra.mxu0 0.0
        %1807 = vmatprep.subr.mxu0 0.0
        %1808 = vmatpush1.msra.mxu0 0.0
        %1809 = vmatprep.subr.mxu0 0.0
        %1810 = vmatpush1.msra.mxu0 0.0
        %1811 = vmatprep.subr.mxu0 0.0
        %1812 = vmatpush1.msra.mxu0 0.0
        %1813 = vmatprep.subr.mxu0 0.0
        %1814 = vmatpush1.msra.mxu0 0.0
        %1815 = vmatprep.subr.mxu0 0.0
        %1816 = vmatpush1.msra.mxu0 0.0
        %1817 = vmatprep.subr.mxu0 0.0
        %1818 = vmatpush1.msra.mxu0 0.0
        %1819 = vmatprep.subr.mxu0 0.0
        %1820 = vmatpush1.msra.mxu0 0.0
        %1821 = vmatprep.subr.mxu0 0.0
        %1822 = vmatpush1.msra.mxu0 0.0
        %1823 = vmatprep.subr.mxu0 0.0
        %1824 = vmatpush1.msra.mxu0 0.0
        %1825 = vmatprep.subr.mxu0 0.0
        %1826 = vmatpush1.msra.mxu0 0.0
        %1827 = vmatprep.subr.mxu0 0.0
        %1828 = vmatpush1.msra.mxu0 0.0
        %1829 = vmatprep.subr.mxu0 0.0
        %1830 = vmatpush1.msra.mxu0 0.0
        %1831 = vmatprep.subr.mxu0 0.0
        %1832 = vmatpush1.msra.mxu0 0.0
        %1833 = vmatprep.subr.mxu0 0.0
        %1834 = vmatpush1.msra.mxu0 0.0
        %1835 = vmatprep.subr.mxu0 0.0
        %1836 = vmatpush1.msra.mxu0 0.0
        %1837 = vmatprep.mubr.f32.mxu0 0.0
        %1838 = vmatmul.mubr.f32.gmra.mrb[0].mxu0 %v1771
        %v1839 = vpop.f32.mrb[0].mxu0
        %v1840 = vadd.f32 %v749, %v1839
        %v1841 = vpop.f32.mrb[0].mxu0
        %1842 = vdwg.mxu0
        %v1843 = vmul.f32 %v1840, %v756
        %1845 = vrot.lane.b32.xlu0 %v1843, 96
        %v1846 = vpop.permute.xlu0 %1845
        %v1848 = vadd.f32 %v1383, %v1846
        %1850 = vrot.lane.b32.xlu0 %v1848, 32
        %v1851 = vpop.permute.xlu0 %1850
        %v1852 = vsel %vm535, %v1851, 0
        %1854 = vmatprep.subr.mxu0 0.0
        %1855 = vmatpush1.msra.mxu0 %v729
        %1856 = vmatprep.subr.mxu0 0.0
        %1857 = vmatpush1.msra.mxu0 %v730
        %1858 = vmatprep.subr.mxu0 0.0
        %1859 = vmatpush1.msra.mxu0 %v731
        %1860 = vmatprep.subr.mxu0 0.0
        %1861 = vmatpush1.msra.mxu0 %v732
        %1862 = vmatprep.subr.mxu0 0.0
        %1863 = vmatpush1.msra.mxu0 0.0
        %1864 = vmatprep.subr.mxu0 0.0
        %1865 = vmatpush1.msra.mxu0 0.0
        %1866 = vmatprep.subr.mxu0 0.0
        %1867 = vmatpush1.msra.mxu0 0.0
        %1868 = vmatprep.subr.mxu0 0.0
        %1869 = vmatpush1.msra.mxu0 0.0
        %1870 = vmatprep.subr.mxu0 0.0
        %1871 = vmatpush1.msra.mxu0 0.0
        %1872 = vmatprep.subr.mxu0 0.0
        %1873 = vmatpush1.msra.mxu0 0.0
        %1874 = vmatprep.subr.mxu0 0.0
        %1875 = vmatpush1.msra.mxu0 0.0
        %1876 = vmatprep.subr.mxu0 0.0
        %1877 = vmatpush1.msra.mxu0 0.0
        %1878 = vmatprep.subr.mxu0 0.0
        %1879 = vmatpush1.msra.mxu0 0.0
        %1880 = vmatprep.subr.mxu0 0.0
        %1881 = vmatpush1.msra.mxu0 0.0
        %1882 = vmatprep.subr.mxu0 0.0
        %1883 = vmatpush1.msra.mxu0 0.0
        %1884 = vmatprep.subr.mxu0 0.0
        %1885 = vmatpush1.msra.mxu0 0.0
        %1886 = vmatprep.subr.mxu0 0.0
        %1887 = vmatpush1.msra.mxu0 0.0
        %1888 = vmatprep.subr.mxu0 0.0
        %1889 = vmatpush1.msra.mxu0 0.0
        %1890 = vmatprep.subr.mxu0 0.0
        %1891 = vmatpush1.msra.mxu0 0.0
        %1892 = vmatprep.subr.mxu0 0.0
        %1893 = vmatpush1.msra.mxu0 0.0
        %1894 = vmatprep.subr.mxu0 0.0
        %1895 = vmatpush1.msra.mxu0 0.0
        %1896 = vmatprep.subr.mxu0 0.0
        %1897 = vmatpush1.msra.mxu0 0.0
        %1898 = vmatprep.subr.mxu0 0.0
        %1899 = vmatpush1.msra.mxu0 0.0
        %1900 = vmatprep.subr.mxu0 0.0
        %1901 = vmatpush1.msra.mxu0 0.0
        %1902 = vmatprep.subr.mxu0 0.0
        %1903 = vmatpush1.msra.mxu0 0.0
        %1904 = vmatprep.subr.mxu0 0.0
        %1905 = vmatpush1.msra.mxu0 0.0
        %1906 = vmatprep.subr.mxu0 0.0
        %1907 = vmatpush1.msra.mxu0 0.0
        %1908 = vmatprep.subr.mxu0 0.0
        %1909 = vmatpush1.msra.mxu0 0.0
        %1910 = vmatprep.subr.mxu0 0.0
        %1911 = vmatpush1.msra.mxu0 0.0
        %1912 = vmatprep.subr.mxu0 0.0
        %1913 = vmatpush1.msra.mxu0 0.0
        %1914 = vmatprep.subr.mxu0 0.0
        %1915 = vmatpush1.msra.mxu0 0.0
        %1916 = vmatprep.subr.mxu0 0.0
        %1917 = vmatpush1.msra.mxu0 0.0
        %1918 = vmatprep.mubr.f32.mxu0 0.0
        %1919 = vmatmul.mubr.f32.gmra.mrb[0].mxu0 %v1852
        %v1920 = vpop.f32.mrb[0].mxu0
        %v1921 = vadd.f32 %v742, %v1920
        %v1922 = vpop.f32.mrb[0].mxu0
        %1923 = vdwg.mxu0
        %v1924 = vtanh.pop %v1921
        %v1926 = vsel %vm535, %v1924, 0
        %1928 = vmatprep.subr.mxu0 0.0
        %1929 = vmatpush1.msra.mxu0 %v733
        %1930 = vmatprep.subr.mxu0 0.0
        %1931 = vmatpush1.msra.mxu0 %v734
        %1932 = vmatprep.subr.mxu0 0.0
        %1933 = vmatpush1.msra.mxu0 %v735
        %1934 = vmatprep.subr.mxu0 0.0
        %1935 = vmatpush1.msra.mxu0 %v736
        %1936 = vmatprep.subr.mxu0 0.0
        %1937 = vmatpush1.msra.mxu0 0.0
        %1938 = vmatprep.subr.mxu0 0.0
        %1939 = vmatpush1.msra.mxu0 0.0
        %1940 = vmatprep.subr.mxu0 0.0
        %1941 = vmatpush1.msra.mxu0 0.0
        %1942 = vmatprep.subr.mxu0 0.0
        %1943 = vmatpush1.msra.mxu0 0.0
        %1944 = vmatprep.subr.mxu0 0.0
        %1945 = vmatpush1.msra.mxu0 0.0
        %1946 = vmatprep.subr.mxu0 0.0
        %1947 = vmatpush1.msra.mxu0 0.0
        %1948 = vmatprep.subr.mxu0 0.0
        %1949 = vmatpush1.msra.mxu0 0.0
        %1950 = vmatprep.subr.mxu0 0.0
        %1951 = vmatpush1.msra.mxu0 0.0
        %1952 = vmatprep.subr.mxu0 0.0
        %1953 = vmatpush1.msra.mxu0 0.0
        %1954 = vmatprep.subr.mxu0 0.0
        %1955 = vmatpush1.msra.mxu0 0.0
        %1956 = vmatprep.subr.mxu0 0.0
        %1957 = vmatpush1.msra.mxu0 0.0
        %1958 = vmatprep.subr.mxu0 0.0
        %1959 = vmatpush1.msra.mxu0 0.0
        %1960 = vmatprep.subr.mxu0 0.0
        %1961 = vmatpush1.msra.mxu0 0.0
        %1962 = vmatprep.subr.mxu0 0.0
        %1963 = vmatpush1.msra.mxu0 0.0
        %1964 = vmatprep.subr.mxu0 0.0
        %1965 = vmatpush1.msra.mxu0 0.0
        %1966 = vmatprep.subr.mxu0 0.0
        %1967 = vmatpush1.msra.mxu0 0.0
        %1968 = vmatprep.subr.mxu0 0.0
        %1969 = vmatpush1.msra.mxu0 0.0
        %1970 = vmatprep.subr.mxu0 0.0
        %1971 = vmatpush1.msra.mxu0 0.0
        %1972 = vmatprep.subr.mxu0 0.0
        %1973 = vmatpush1.msra.mxu0 0.0
        %1974 = vmatprep.subr.mxu0 0.0
        %1975 = vmatpush1.msra.mxu0 0.0
        %1976 = vmatprep.subr.mxu0 0.0
        %1977 = vmatpush1.msra.mxu0 0.0
        %1978 = vmatprep.subr.mxu0 0.0
        %1979 = vmatpush1.msra.mxu0 0.0
        %1980 = vmatprep.subr.mxu0 0.0
        %1981 = vmatpush1.msra.mxu0 0.0
        %1982 = vmatprep.subr.mxu0 0.0
        %1983 = vmatpush1.msra.mxu0 0.0
        %1984 = vmatprep.subr.mxu0 0.0
        %1985 = vmatpush1.msra.mxu0 0.0
        %1986 = vmatprep.subr.mxu0 0.0
        %1987 = vmatpush1.msra.mxu0 0.0
        %1988 = vmatprep.subr.mxu0 0.0
        %1989 = vmatpush1.msra.mxu0 0.0
        %1990 = vmatprep.subr.mxu0 0.0
        %1991 = vmatpush1.msra.mxu0 0.0
        %1992 = vmatprep.mubr.f32.mxu0 0.0
        %1993 = vmatmul.mubr.f32.gmra.mrb[0].mxu0 %v1926
        %v1994 = vpop.f32.mrb[0].mxu0
        %v1995 = vadd.f32 %v749, %v1994
        %v1996 = vpop.f32.mrb[0].mxu0
        %1997 = vdwg.mxu0
        %v1998 = vadd.f32 %v1685, %v1840
        %v1999 = vmul.f32 %v1998, 2.0
        %v2000 = vadd.f32 %v1530, %v1999
        %v2001 = vadd.f32 %v2000, %v1995
        %v2002 = vmul.f32 %v759, %v2001
        %2004 = vrot.lane.b32.xlu0 %v2002, 96
        %v2005 = vpop.permute.xlu0 %2004
        %v2007 = vadd.f32 %v1383, %v2005
        %2009 = vrot.lane.b32.xlu0 %v2007, 32
        %v2010 = vpop.permute.xlu0 %2009
        %v2011 = vsel %vm535, %v2010, 0
        %2013 = vmatprep.subr.mxu0 0.0
        %2014 = vmatpush1.msra.mxu0 %v729
        %2015 = vmatprep.subr.mxu0 0.0
        %2016 = vmatpush1.msra.mxu0 %v730
        %2017 = vmatprep.subr.mxu0 0.0
        %2018 = vmatpush1.msra.mxu0 %v731
        %2019 = vmatprep.subr.mxu0 0.0
        %2020 = vmatpush1.msra.mxu0 %v732
        %2021 = vmatprep.subr.mxu0 0.0
        %2022 = vmatpush1.msra.mxu0 0.0
        %2023 = vmatprep.subr.mxu0 0.0
        %2024 = vmatpush1.msra.mxu0 0.0
        %2025 = vmatprep.subr.mxu0 0.0
        %2026 = vmatpush1.msra.mxu0 0.0
        %2027 = vmatprep.subr.mxu0 0.0
        %2028 = vmatpush1.msra.mxu0 0.0
        %2029 = vmatprep.subr.mxu0 0.0
        %2030 = vmatpush1.msra.mxu0 0.0
        %2031 = vmatprep.subr.mxu0 0.0
        %2032 = vmatpush1.msra.mxu0 0.0
        %2033 = vmatprep.subr.mxu0 0.0
        %2034 = vmatpush1.msra.mxu0 0.0
        %2035 = vmatprep.subr.mxu0 0.0
        %2036 = vmatpush1.msra.mxu0 0.0
        %2037 = vmatprep.subr.mxu0 0.0
        %2038 = vmatpush1.msra.mxu0 0.0
        %2039 = vmatprep.subr.mxu0 0.0
        %2040 = vmatpush1.msra.mxu0 0.0
        %2041 = vmatprep.subr.mxu0 0.0
        %2042 = vmatpush1.msra.mxu0 0.0
        %2043 = vmatprep.subr.mxu0 0.0
        %2044 = vmatpush1.msra.mxu0 0.0
        %2045 = vmatprep.subr.mxu0 0.0
        %2046 = vmatpush1.msra.mxu0 0.0
        %2047 = vmatprep.subr.mxu0 0.0
        %2048 = vmatpush1.msra.mxu0 0.0
        %2049 = vmatprep.subr.mxu0 0.0
        %2050 = vmatpush1.msra.mxu0 0.0
        %2051 = vmatprep.subr.mxu0 0.0
        %2052 = vmatpush1.msra.mxu0 0.0
        %2053 = vmatprep.subr.mxu0 0.0
        %2054 = vmatpush1.msra.mxu0 0.0
        %2055 = vmatprep.subr.mxu0 0.0
        %2056 = vmatpush1.msra.mxu0 0.0
        %2057 = vmatprep.subr.mxu0 0.0
        %2058 = vmatpush1.msra.mxu0 0.0
        %2059 = vmatprep.subr.mxu0 0.0
        %2060 = vmatpush1.msra.mxu0 0.0
        %2061 = vmatprep.subr.mxu0 0.0
        %2062 = vmatpush1.msra.mxu0 0.0
        %2063 = vmatprep.subr.mxu0 0.0
        %2064 = vmatpush1.msra.mxu0 0.0
        %2065 = vmatprep.subr.mxu0 0.0
        %2066 = vmatpush1.msra.mxu0 0.0
        %2067 = vmatprep.subr.mxu0 0.0
        %2068 = vmatpush1.msra.mxu0 0.0
        %2069 = vmatprep.subr.mxu0 0.0
        %2070 = vmatpush1.msra.mxu0 0.0
        %2071 = vmatprep.subr.mxu0 0.0
        %2072 = vmatpush1.msra.mxu0 0.0
        %2073 = vmatprep.subr.mxu0 0.0
        %2074 = vmatpush1.msra.mxu0 0.0
        %2075 = vmatprep.subr.mxu0 0.0
        %2076 = vmatpush1.msra.mxu0 0.0
        %2077 = vmatprep.mubr.f32.mxu0 0.0
        %2078 = vmatmul.mubr.f32.gmra.mrb[0].mxu0 %v2011
        %v2079 = vpop.f32.mrb[0].mxu0
        %v2080 = vadd.f32 %v742, %v2079
        %v2081 = vpop.f32.mrb[0].mxu0
        %2082 = vdwg.mxu0
        %v2083 = vtanh.pop %v2080
        %v2085 = vsel %vm535, %v2083, 0
        %2087 = vmatprep.subr.mxu0 0.0
        %2088 = vmatpush1.msra.mxu0 %v733
        %2089 = vmatprep.subr.mxu0 0.0
        %2090 = vmatpush1.msra.mxu0 %v734
        %2091 = vmatprep.subr.mxu0 0.0
        %2092 = vmatpush1.msra.mxu0 %v735
        %2093 = vmatprep.subr.mxu0 0.0
        %2094 = vmatpush1.msra.mxu0 %v736
        %2095 = vmatprep.subr.mxu0 0.0
        %2096 = vmatpush1.msra.mxu0 0.0
        %2097 = vmatprep.subr.mxu0 0.0
        %2098 = vmatpush1.msra.mxu0 0.0
        %2099 = vmatprep.subr.mxu0 0.0
        %2100 = vmatpush1.msra.mxu0 0.0
        %2101 = vmatprep.subr.mxu0 0.0
        %2102 = vmatpush1.msra.mxu0 0.0
        %2103 = vmatprep.subr.mxu0 0.0
        %2104 = vmatpush1.msra.mxu0 0.0
        %2105 = vmatprep.subr.mxu0 0.0
        %2106 = vmatpush1.msra.mxu0 0.0
        %2107 = vmatprep.subr.mxu0 0.0
        %2108 = vmatpush1.msra.mxu0 0.0
        %2109 = vmatprep.subr.mxu0 0.0
        %2110 = vmatpush1.msra.mxu0 0.0
        %2111 = vmatprep.subr.mxu0 0.0
        %2112 = vmatpush1.msra.mxu0 0.0
        %2113 = vmatprep.subr.mxu0 0.0
        %2114 = vmatpush1.msra.mxu0 0.0
        %2115 = vmatprep.subr.mxu0 0.0
        %2116 = vmatpush1.msra.mxu0 0.0
        %2117 = vmatprep.subr.mxu0 0.0
        %2118 = vmatpush1.msra.mxu0 0.0
        %2119 = vmatprep.subr.mxu0 0.0
        %2120 = vmatpush1.msra.mxu0 0.0
        %2121 = vmatprep.subr.mxu0 0.0
        %2122 = vmatpush1.msra.mxu0 0.0
        %2123 = vmatprep.subr.mxu0 0.0
        %2124 = vmatpush1.msra.mxu0 0.0
        %2125 = vmatprep.subr.mxu0 0.0
        %2126 = vmatpush1.msra.mxu0 0.0
        %2127 = vmatprep.subr.mxu0 0.0
        %2128 = vmatpush1.msra.mxu0 0.0
        %2129 = vmatprep.subr.mxu0 0.0
        %2130 = vmatpush1.msra.mxu0 0.0
        %2131 = vmatprep.subr.mxu0 0.0
        %2132 = vmatpush1.msra.mxu0 0.0
        %2133 = vmatprep.subr.mxu0 0.0
        %2134 = vmatpush1.msra.mxu0 0.0
        %2135 = vmatprep.subr.mxu0 0.0
        %2136 = vmatpush1.msra.mxu0 0.0
        %2137 = vmatprep.subr.mxu0 0.0
        %2138 = vmatpush1.msra.mxu0 0.0
        %2139 = vmatprep.subr.mxu0 0.0
        %2140 = vmatpush1.msra.mxu0 0.0
        %2141 = vmatprep.subr.mxu0 0.0
        %2142 = vmatpush1.msra.mxu0 0.0
        %2143 = vmatprep.subr.mxu0 0.0
        %2144 = vmatpush1.msra.mxu0 0.0
        %2145 = vmatprep.subr.mxu0 0.0
        %2146 = vmatpush1.msra.mxu0 0.0
        %2147 = vmatprep.subr.mxu0 0.0
        %2148 = vmatpush1.msra.mxu0 0.0
        %2149 = vmatprep.subr.mxu0 0.0
        %2150 = vmatpush1.msra.mxu0 0.0
        %2151 = vmatprep.mubr.f32.mxu0 0.0
        %2152 = vmatmul.mubr.f32.gmra.mrb[0].mxu0 %v2085
        %v2153 = vpop.f32.mrb[0].mxu0
        %v2154 = vadd.f32 %v749, %v2153
        %v2155 = vpop.f32.mrb[0].mxu0
        %2156 = vdwg.mxu0
        %v2157 = vmul.f32 %v2154, %v758
        %2159 = vrot.lane.b32.xlu0 %v2157, 96
        %v2160 = vpop.permute.xlu0 %2159
        %v2162 = vadd.f32 %v2007, %v2160
        %2164 = vrot.lane.b32.xlu0 %v2162, 32
        %v2165 = vpop.permute.xlu0 %2164
        %v2166 = vsel %vm535, %v2165, 0
        %2168 = vmatprep.subr.mxu0 0.0
        %2169 = vmatpush1.msra.mxu0 %v729
        %2170 = vmatprep.subr.mxu0 0.0
        %2171 = vmatpush1.msra.mxu0 %v730
        %2172 = vmatprep.subr.mxu0 0.0
        %2173 = vmatpush1.msra.mxu0 %v731
        %2174 = vmatprep.subr.mxu0 0.0
        %2175 = vmatpush1.msra.mxu0 %v732
        %2176 = vmatprep.subr.mxu0 0.0
        %2177 = vmatpush1.msra.mxu0 0.0
        %2178 = vmatprep.subr.mxu0 0.0
        %2179 = vmatpush1.msra.mxu0 0.0
        %2180 = vmatprep.subr.mxu0 0.0
        %2181 = vmatpush1.msra.mxu0 0.0
        %2182 = vmatprep.subr.mxu0 0.0
        %2183 = vmatpush1.msra.mxu0 0.0
        %2184 = vmatprep.subr.mxu0 0.0
        %2185 = vmatpush1.msra.mxu0 0.0
        %2186 = vmatprep.subr.mxu0 0.0
        %2187 = vmatpush1.msra.mxu0 0.0
        %2188 = vmatprep.subr.mxu0 0.0
        %2189 = vmatpush1.msra.mxu0 0.0
        %2190 = vmatprep.subr.mxu0 0.0
        %2191 = vmatpush1.msra.mxu0 0.0
        %2192 = vmatprep.subr.mxu0 0.0
        %2193 = vmatpush1.msra.mxu0 0.0
        %2194 = vmatprep.subr.mxu0 0.0
        %2195 = vmatpush1.msra.mxu0 0.0
        %2196 = vmatprep.subr.mxu0 0.0
        %2197 = vmatpush1.msra.mxu0 0.0
        %2198 = vmatprep.subr.mxu0 0.0
        %2199 = vmatpush1.msra.mxu0 0.0
        %2200 = vmatprep.subr.mxu0 0.0
        %2201 = vmatpush1.msra.mxu0 0.0
        %2202 = vmatprep.subr.mxu0 0.0
        %2203 = vmatpush1.msra.mxu0 0.0
        %2204 = vmatprep.subr.mxu0 0.0
        %2205 = vmatpush1.msra.mxu0 0.0
        %2206 = vmatprep.subr.mxu0 0.0
        %2207 = vmatpush1.msra.mxu0 0.0
        %2208 = vmatprep.subr.mxu0 0.0
        %2209 = vmatpush1.msra.mxu0 0.0
        %2210 = vmatprep.subr.mxu0 0.0
        %2211 = vmatpush1.msra.mxu0 0.0
        %2212 = vmatprep.subr.mxu0 0.0
        %2213 = vmatpush1.msra.mxu0 0.0
        %2214 = vmatprep.subr.mxu0 0.0
        %2215 = vmatpush1.msra.mxu0 0.0
        %2216 = vmatprep.subr.mxu0 0.0
        %2217 = vmatpush1.msra.mxu0 0.0
        %2218 = vmatprep.subr.mxu0 0.0
        %2219 = vmatpush1.msra.mxu0 0.0
        %2220 = vmatprep.subr.mxu0 0.0
        %2221 = vmatpush1.msra.mxu0 0.0
        %2222 = vmatprep.subr.mxu0 0.0
        %2223 = vmatpush1.msra.mxu0 0.0
        %2224 = vmatprep.subr.mxu0 0.0
        %2225 = vmatpush1.msra.mxu0 0.0
        %2226 = vmatprep.subr.mxu0 0.0
        %2227 = vmatpush1.msra.mxu0 0.0
        %2228 = vmatprep.subr.mxu0 0.0
        %2229 = vmatpush1.msra.mxu0 0.0
        %2230 = vmatprep.subr.mxu0 0.0
        %2231 = vmatpush1.msra.mxu0 0.0
        %2232 = vmatprep.mubr.f32.mxu0 0.0
        %2233 = vmatmul.mubr.f32.gmra.mrb[0].mxu0 %v2166
        %v2234 = vpop.f32.mrb[0].mxu0
        %v2235 = vadd.f32 %v742, %v2234
        %v2236 = vpop.f32.mrb[0].mxu0
        %2237 = vdwg.mxu0
        %v2238 = vtanh.pop %v2235
        %v2240 = vsel %vm535, %v2238, 0
        %2242 = vmatprep.subr.mxu0 0.0
        %2243 = vmatpush1.msra.mxu0 %v733
        %2244 = vmatprep.subr.mxu0 0.0
        %2245 = vmatpush1.msra.mxu0 %v734
        %2246 = vmatprep.subr.mxu0 0.0
        %2247 = vmatpush1.msra.mxu0 %v735
        %2248 = vmatprep.subr.mxu0 0.0
        %2249 = vmatpush1.msra.mxu0 %v736
        %2250 = vmatprep.subr.mxu0 0.0
        %2251 = vmatpush1.msra.mxu0 0.0
        %2252 = vmatprep.subr.mxu0 0.0
        %2253 = vmatpush1.msra.mxu0 0.0
        %2254 = vmatprep.subr.mxu0 0.0
        %2255 = vmatpush1.msra.mxu0 0.0
        %2256 = vmatprep.subr.mxu0 0.0
        %2257 = vmatpush1.msra.mxu0 0.0
        %2258 = vmatprep.subr.mxu0 0.0
        %2259 = vmatpush1.msra.mxu0 0.0
        %2260 = vmatprep.subr.mxu0 0.0
        %2261 = vmatpush1.msra.mxu0 0.0
        %2262 = vmatprep.subr.mxu0 0.0
        %2263 = vmatpush1.msra.mxu0 0.0
        %2264 = vmatprep.subr.mxu0 0.0
        %2265 = vmatpush1.msra.mxu0 0.0
        %2266 = vmatprep.subr.mxu0 0.0
        %2267 = vmatpush1.msra.mxu0 0.0
        %2268 = vmatprep.subr.mxu0 0.0
        %2269 = vmatpush1.msra.mxu0 0.0
        %2270 = vmatprep.subr.mxu0 0.0
        %2271 = vmatpush1.msra.mxu0 0.0
        %2272 = vmatprep.subr.mxu0 0.0
        %2273 = vmatpush1.msra.mxu0 0.0
        %2274 = vmatprep.subr.mxu0 0.0
        %2275 = vmatpush1.msra.mxu0 0.0
        %2276 = vmatprep.subr.mxu0 0.0
        %2277 = vmatpush1.msra.mxu0 0.0
        %2278 = vmatprep.subr.mxu0 0.0
        %2279 = vmatpush1.msra.mxu0 0.0
        %2280 = vmatprep.subr.mxu0 0.0
        %2281 = vmatpush1.msra.mxu0 0.0
        %2282 = vmatprep.subr.mxu0 0.0
        %2283 = vmatpush1.msra.mxu0 0.0
        %2284 = vmatprep.subr.mxu0 0.0
        %2285 = vmatpush1.msra.mxu0 0.0
        %2286 = vmatprep.subr.mxu0 0.0
        %2287 = vmatpush1.msra.mxu0 0.0
        %2288 = vmatprep.subr.mxu0 0.0
        %2289 = vmatpush1.msra.mxu0 0.0
        %2290 = vmatprep.subr.mxu0 0.0
        %2291 = vmatpush1.msra.mxu0 0.0
        %2292 = vmatprep.subr.mxu0 0.0
        %2293 = vmatpush1.msra.mxu0 0.0
        %2294 = vmatprep.subr.mxu0 0.0
        %2295 = vmatpush1.msra.mxu0 0.0
        %2296 = vmatprep.subr.mxu0 0.0
        %2297 = vmatpush1.msra.mxu0 0.0
        %2298 = vmatprep.subr.mxu0 0.0
        %2299 = vmatpush1.msra.mxu0 0.0
        %2300 = vmatprep.subr.mxu0 0.0
        %2301 = vmatpush1.msra.mxu0 0.0
        %2302 = vmatprep.subr.mxu0 0.0
        %2303 = vmatpush1.msra.mxu0 0.0
        %2304 = vmatprep.subr.mxu0 0.0
        %2305 = vmatpush1.msra.mxu0 0.0
        %2306 = vmatprep.mubr.f32.mxu0 0.0
        %2307 = vmatmul.mubr.f32.gmra.mrb[0].mxu0 %v2240
        %v2308 = vpop.f32.mrb[0].mxu0
        %v2309 = vadd.f32 %v749, %v2308
        %v2310 = vpop.f32.mrb[0].mxu0
        %2311 = vdwg.mxu0
        %v2312 = vmul.f32 %v2309, %v758
        %2314 = vrot.lane.b32.xlu0 %v2312, 96
        %v2315 = vpop.permute.xlu0 %2314
        %v2317 = vadd.f32 %v2007, %v2315
        %2319 = vrot.lane.b32.xlu0 %v2317, 32
        %v2320 = vpop.permute.xlu0 %2319
        %v2321 = vsel %vm535, %v2320, 0
        %2323 = vmatprep.subr.mxu0 0.0
        %2324 = vmatpush1.msra.mxu0 %v729
        %2325 = vmatprep.subr.mxu0 0.0
        %2326 = vmatpush1.msra.mxu0 %v730
        %2327 = vmatprep.subr.mxu0 0.0
        %2328 = vmatpush1.msra.mxu0 %v731
        %2329 = vmatprep.subr.mxu0 0.0
        %2330 = vmatpush1.msra.mxu0 %v732
        %2331 = vmatprep.subr.mxu0 0.0
        %2332 = vmatpush1.msra.mxu0 0.0
        %2333 = vmatprep.subr.mxu0 0.0
        %2334 = vmatpush1.msra.mxu0 0.0
        %2335 = vmatprep.subr.mxu0 0.0
        %2336 = vmatpush1.msra.mxu0 0.0
        %2337 = vmatprep.subr.mxu0 0.0
        %2338 = vmatpush1.msra.mxu0 0.0
        %2339 = vmatprep.subr.mxu0 0.0
        %2340 = vmatpush1.msra.mxu0 0.0
        %2341 = vmatprep.subr.mxu0 0.0
        %2342 = vmatpush1.msra.mxu0 0.0
        %2343 = vmatprep.subr.mxu0 0.0
        %2344 = vmatpush1.msra.mxu0 0.0
        %2345 = vmatprep.subr.mxu0 0.0
        %2346 = vmatpush1.msra.mxu0 0.0
        %2347 = vmatprep.subr.mxu0 0.0
        %2348 = vmatpush1.msra.mxu0 0.0
        %2349 = vmatprep.subr.mxu0 0.0
        %2350 = vmatpush1.msra.mxu0 0.0
        %2351 = vmatprep.subr.mxu0 0.0
        %2352 = vmatpush1.msra.mxu0 0.0
        %2353 = vmatprep.subr.mxu0 0.0
        %2354 = vmatpush1.msra.mxu0 0.0
        %2355 = vmatprep.subr.mxu0 0.0
        %2356 = vmatpush1.msra.mxu0 0.0
        %2357 = vmatprep.subr.mxu0 0.0
        %2358 = vmatpush1.msra.mxu0 0.0
        %2359 = vmatprep.subr.mxu0 0.0
        %2360 = vmatpush1.msra.mxu0 0.0
        %2361 = vmatprep.subr.mxu0 0.0
        %2362 = vmatpush1.msra.mxu0 0.0
        %2363 = vmatprep.subr.mxu0 0.0
        %2364 = vmatpush1.msra.mxu0 0.0
        %2365 = vmatprep.subr.mxu0 0.0
        %2366 = vmatpush1.msra.mxu0 0.0
        %2367 = vmatprep.subr.mxu0 0.0
        %2368 = vmatpush1.msra.mxu0 0.0
        %2369 = vmatprep.subr.mxu0 0.0
        %2370 = vmatpush1.msra.mxu0 0.0
        %2371 = vmatprep.subr.mxu0 0.0
        %2372 = vmatpush1.msra.mxu0 0.0
        %2373 = vmatprep.subr.mxu0 0.0
        %2374 = vmatpush1.msra.mxu0 0.0
        %2375 = vmatprep.subr.mxu0 0.0
        %2376 = vmatpush1.msra.mxu0 0.0
        %2377 = vmatprep.subr.mxu0 0.0
        %2378 = vmatpush1.msra.mxu0 0.0
        %2379 = vmatprep.subr.mxu0 0.0
        %2380 = vmatpush1.msra.mxu0 0.0
        %2381 = vmatprep.subr.mxu0 0.0
        %2382 = vmatpush1.msra.mxu0 0.0
        %2383 = vmatprep.subr.mxu0 0.0
        %2384 = vmatpush1.msra.mxu0 0.0
        %2385 = vmatprep.subr.mxu0 0.0
        %2386 = vmatpush1.msra.mxu0 0.0
        %2387 = vmatprep.mubr.f32.mxu0 0.0
        %2388 = vmatmul.mubr.f32.gmra.mrb[0].mxu0 %v2321
        %v2389 = vpop.f32.mrb[0].mxu0
        %v2390 = vadd.f32 %v742, %v2389
        %v2391 = vpop.f32.mrb[0].mxu0
        %2392 = vdwg.mxu0
        %v2393 = vtanh.pop %v2390
        %v2395 = vsel %vm535, %v2393, 0
        %2397 = vmatprep.subr.mxu0 0.0
        %2398 = vmatpush1.msra.mxu0 %v733
        %2399 = vmatprep.subr.mxu0 0.0
        %2400 = vmatpush1.msra.mxu0 %v734
        %2401 = vmatprep.subr.mxu0 0.0
        %2402 = vmatpush1.msra.mxu0 %v735
        %2403 = vmatprep.subr.mxu0 0.0
        %2404 = vmatpush1.msra.mxu0 %v736
        %2405 = vmatprep.subr.mxu0 0.0
        %2406 = vmatpush1.msra.mxu0 0.0
        %2407 = vmatprep.subr.mxu0 0.0
        %2408 = vmatpush1.msra.mxu0 0.0
        %2409 = vmatprep.subr.mxu0 0.0
        %2410 = vmatpush1.msra.mxu0 0.0
        %2411 = vmatprep.subr.mxu0 0.0
        %2412 = vmatpush1.msra.mxu0 0.0
        %2413 = vmatprep.subr.mxu0 0.0
        %2414 = vmatpush1.msra.mxu0 0.0
        %2415 = vmatprep.subr.mxu0 0.0
        %2416 = vmatpush1.msra.mxu0 0.0
        %2417 = vmatprep.subr.mxu0 0.0
        %2418 = vmatpush1.msra.mxu0 0.0
        %2419 = vmatprep.subr.mxu0 0.0
        %2420 = vmatpush1.msra.mxu0 0.0
        %2421 = vmatprep.subr.mxu0 0.0
        %2422 = vmatpush1.msra.mxu0 0.0
        %2423 = vmatprep.subr.mxu0 0.0
        %2424 = vmatpush1.msra.mxu0 0.0
        %2425 = vmatprep.subr.mxu0 0.0
        %2426 = vmatpush1.msra.mxu0 0.0
        %2427 = vmatprep.subr.mxu0 0.0
        %2428 = vmatpush1.msra.mxu0 0.0
        %2429 = vmatprep.subr.mxu0 0.0
        %2430 = vmatpush1.msra.mxu0 0.0
        %2431 = vmatprep.subr.mxu0 0.0
        %2432 = vmatpush1.msra.mxu0 0.0
        %2433 = vmatprep.subr.mxu0 0.0
        %2434 = vmatpush1.msra.mxu0 0.0
        %2435 = vmatprep.subr.mxu0 0.0
        %2436 = vmatpush1.msra.mxu0 0.0
        %2437 = vmatprep.subr.mxu0 0.0
        %2438 = vmatpush1.msra.mxu0 0.0
        %2439 = vmatprep.subr.mxu0 0.0
        %2440 = vmatpush1.msra.mxu0 0.0
        %2441 = vmatprep.subr.mxu0 0.0
        %2442 = vmatpush1.msra.mxu0 0.0
        %2443 = vmatprep.subr.mxu0 0.0
        %2444 = vmatpush1.msra.mxu0 0.0
        %2445 = vmatprep.subr.mxu0 0.0
        %2446 = vmatpush1.msra.mxu0 0.0
        %2447 = vmatprep.subr.mxu0 0.0
        %2448 = vmatpush1.msra.mxu0 0.0
        %2449 = vmatprep.subr.mxu0 0.0
        %2450 = vmatpush1.msra.mxu0 0.0
        %2451 = vmatprep.subr.mxu0 0.0
        %2452 = vmatpush1.msra.mxu0 0.0
        %2453 = vmatprep.subr.mxu0 0.0
        %2454 = vmatpush1.msra.mxu0 0.0
        %2455 = vmatprep.subr.mxu0 0.0
        %2456 = vmatpush1.msra.mxu0 0.0
        %2457 = vmatprep.subr.mxu0 0.0
        %2458 = vmatpush1.msra.mxu0 0.0
        %2459 = vmatprep.subr.mxu0 0.0
        %2460 = vmatpush1.msra.mxu0 0.0
        %2461 = vmatprep.mubr.f32.mxu0 0.0
        %2462 = vmatmul.mubr.f32.gmra.mrb[0].mxu0 %v2395
        %v2463 = vpop.f32.mrb[0].mxu0
        %v2464 = vadd.f32 %v749, %v2463
        %v2465 = vpop.f32.mrb[0].mxu0
        %2466 = vdwg.mxu0
        %v2467 = vmul.f32 %v2464, %v756
        %2469 = vrot.lane.b32.xlu0 %v2467, 96
        %v2470 = vpop.permute.xlu0 %2469
        %v2472 = vadd.f32 %v2007, %v2470
        %2474 = vrot.lane.b32.xlu0 %v2472, 32
        %v2475 = vpop.permute.xlu0 %2474
        %v2476 = vsel %vm535, %v2475, 0
        %2478 = vmatprep.subr.mxu0 0.0
        %2479 = vmatpush1.msra.mxu0 %v729
        %2480 = vmatprep.subr.mxu0 0.0
        %2481 = vmatpush1.msra.mxu0 %v730
        %2482 = vmatprep.subr.mxu0 0.0
        %2483 = vmatpush1.msra.mxu0 %v731
        %2484 = vmatprep.subr.mxu0 0.0
        %2485 = vmatpush1.msra.mxu0 %v732
        %2486 = vmatprep.subr.mxu0 0.0
        %2487 = vmatpush1.msra.mxu0 0.0
        %2488 = vmatprep.subr.mxu0 0.0
        %2489 = vmatpush1.msra.mxu0 0.0
        %2490 = vmatprep.subr.mxu0 0.0
        %2491 = vmatpush1.msra.mxu0 0.0
        %2492 = vmatprep.subr.mxu0 0.0
        %2493 = vmatpush1.msra.mxu0 0.0
        %2494 = vmatprep.subr.mxu0 0.0
        %2495 = vmatpush1.msra.mxu0 0.0
        %2496 = vmatprep.subr.mxu0 0.0
        %2497 = vmatpush1.msra.mxu0 0.0
        %2498 = vmatprep.subr.mxu0 0.0
        %2499 = vmatpush1.msra.mxu0 0.0
        %2500 = vmatprep.subr.mxu0 0.0
        %2501 = vmatpush1.msra.mxu0 0.0
        %2502 = vmatprep.subr.mxu0 0.0
        %2503 = vmatpush1.msra.mxu0 0.0
        %2504 = vmatprep.subr.mxu0 0.0
        %2505 = vmatpush1.msra.mxu0 0.0
        %2506 = vmatprep.subr.mxu0 0.0
        %2507 = vmatpush1.msra.mxu0 0.0
        %2508 = vmatprep.subr.mxu0 0.0
        %2509 = vmatpush1.msra.mxu0 0.0
        %2510 = vmatprep.subr.mxu0 0.0
        %2511 = vmatpush1.msra.mxu0 0.0
        %2512 = vmatprep.subr.mxu0 0.0
        %2513 = vmatpush1.msra.mxu0 0.0
        %2514 = vmatprep.subr.mxu0 0.0
        %2515 = vmatpush1.msra.mxu0 0.0
        %2516 = vmatprep.subr.mxu0 0.0
        %2517 = vmatpush1.msra.mxu0 0.0
        %2518 = vmatprep.subr.mxu0 0.0
        %2519 = vmatpush1.msra.mxu0 0.0
        %2520 = vmatprep.subr.mxu0 0.0
        %2521 = vmatpush1.msra.mxu0 0.0
        %2522 = vmatprep.subr.mxu0 0.0
        %2523 = vmatpush1.msra.mxu0 0.0
        %2524 = vmatprep.subr.mxu0 0.0
        %2525 = vmatpush1.msra.mxu0 0.0
        %2526 = vmatprep.subr.mxu0 0.0
        %2527 = vmatpush1.msra.mxu0 0.0
        %2528 = vmatprep.subr.mxu0 0.0
        %2529 = vmatpush1.msra.mxu0 0.0
        %2530 = vmatprep.subr.mxu0 0.0
        %2531 = vmatpush1.msra.mxu0 0.0
        %2532 = vmatprep.subr.mxu0 0.0
        %2533 = vmatpush1.msra.mxu0 0.0
        %2534 = vmatprep.subr.mxu0 0.0
        %2535 = vmatpush1.msra.mxu0 0.0
        %2536 = vmatprep.subr.mxu0 0.0
        %2537 = vmatpush1.msra.mxu0 0.0
        %2538 = vmatprep.subr.mxu0 0.0
        %2539 = vmatpush1.msra.mxu0 0.0
        %2540 = vmatprep.subr.mxu0 0.0
        %2541 = vmatpush1.msra.mxu0 0.0
        %2542 = vmatprep.mubr.f32.mxu0 0.0
        %2543 = vmatmul.mubr.f32.gmra.mrb[0].mxu0 %v2476
        %v2544 = vpop.f32.mrb[0].mxu0
        %v2545 = vadd.f32 %v742, %v2544
        %v2546 = vpop.f32.mrb[0].mxu0
        %2547 = vdwg.mxu0
        %v2548 = vtanh.pop %v2545
        %v2550 = vsel %vm535, %v2548, 0
        %2552 = vmatprep.subr.mxu0 0.0
        %2553 = vmatpush1.msra.mxu0 %v733
        %2554 = vmatprep.subr.mxu0 0.0
        %2555 = vmatpush1.msra.mxu0 %v734
        %2556 = vmatprep.subr.mxu0 0.0
        %2557 = vmatpush1.msra.mxu0 %v735
        %2558 = vmatprep.subr.mxu0 0.0
        %2559 = vmatpush1.msra.mxu0 %v736
        %2560 = vmatprep.subr.mxu0 0.0
        %2561 = vmatpush1.msra.mxu0 0.0
        %2562 = vmatprep.subr.mxu0 0.0
        %2563 = vmatpush1.msra.mxu0 0.0
        %2564 = vmatprep.subr.mxu0 0.0
        %2565 = vmatpush1.msra.mxu0 0.0
        %2566 = vmatprep.subr.mxu0 0.0
        %2567 = vmatpush1.msra.mxu0 0.0
        %2568 = vmatprep.subr.mxu0 0.0
        %2569 = vmatpush1.msra.mxu0 0.0
        %2570 = vmatprep.subr.mxu0 0.0
        %2571 = vmatpush1.msra.mxu0 0.0
        %2572 = vmatprep.subr.mxu0 0.0
        %2573 = vmatpush1.msra.mxu0 0.0
        %2574 = vmatprep.subr.mxu0 0.0
        %2575 = vmatpush1.msra.mxu0 0.0
        %2576 = vmatprep.subr.mxu0 0.0
        %2577 = vmatpush1.msra.mxu0 0.0
        %2578 = vmatprep.subr.mxu0 0.0
        %2579 = vmatpush1.msra.mxu0 0.0
        %2580 = vmatprep.subr.mxu0 0.0
        %2581 = vmatpush1.msra.mxu0 0.0
        %2582 = vmatprep.subr.mxu0 0.0
        %2583 = vmatpush1.msra.mxu0 0.0
        %2584 = vmatprep.subr.mxu0 0.0
        %2585 = vmatpush1.msra.mxu0 0.0
        %2586 = vmatprep.subr.mxu0 0.0
        %2587 = vmatpush1.msra.mxu0 0.0
        %2588 = vmatprep.subr.mxu0 0.0
        %2589 = vmatpush1.msra.mxu0 0.0
        %2590 = vmatprep.subr.mxu0 0.0
        %2591 = vmatpush1.msra.mxu0 0.0
        %2592 = vmatprep.subr.mxu0 0.0
        %2593 = vmatpush1.msra.mxu0 0.0
        %2594 = vmatprep.subr.mxu0 0.0
        %2595 = vmatpush1.msra.mxu0 0.0
        %2596 = vmatprep.subr.mxu0 0.0
        %2597 = vmatpush1.msra.mxu0 0.0
        %2598 = vmatprep.subr.mxu0 0.0
        %2599 = vmatpush1.msra.mxu0 0.0
        %2600 = vmatprep.subr.mxu0 0.0
        %2601 = vmatpush1.msra.mxu0 0.0
        %2602 = vmatprep.subr.mxu0 0.0
        %2603 = vmatpush1.msra.mxu0 0.0
        %2604 = vmatprep.subr.mxu0 0.0
        %2605 = vmatpush1.msra.mxu0 0.0
        %2606 = vmatprep.subr.mxu0 0.0
        %2607 = vmatpush1.msra.mxu0 0.0
        %2608 = vmatprep.subr.mxu0 0.0
        %2609 = vmatpush1.msra.mxu0 0.0
        %2610 = vmatprep.subr.mxu0 0.0
        %2611 = vmatpush1.msra.mxu0 0.0
        %2612 = vmatprep.subr.mxu0 0.0
        %2613 = vmatpush1.msra.mxu0 0.0
        %2614 = vmatprep.subr.mxu0 0.0
        %2615 = vmatpush1.msra.mxu0 0.0
        %2616 = vmatprep.mubr.f32.mxu0 0.0
        %2617 = vmatmul.mubr.f32.gmra.mrb[0].mxu0 %v2550
        %v2618 = vpop.f32.mrb[0].mxu0
        %v2619 = vadd.f32 %v749, %v2618
        %v2620 = vpop.f32.mrb[0].mxu0
        %2621 = vdwg.mxu0
        %v2622 = vadd.f32 %v2309, %v2464
        %v2623 = vmul.f32 %v2622, 2.0
        %v2624 = vadd.f32 %v2154, %v2623
        %v2625 = vadd.f32 %v2624, %v2619
        %v2626 = vmul.f32 %v759, %v2625
        %2628 = vrot.lane.b32.xlu0 %v2626, 96
        %v2629 = vpop.permute.xlu0 %2628
        %v2631 = vadd.f32 %v2007, %v2629
        %2633 = vrot.lane.b32.xlu0 %v2631, 32
        %v2634 = vpop.permute.xlu0 %2633
        %2636 = vst.msk [vmem:[#allocation2] sm:$0xff] %vm535, %v2634
        %2637 = vst.msk [vmem:[%s501] sm:$0xff] %vm535, %v2634
        %s2638 = sand.u32 %s283, 1
        %s2639 = scalar_lea.sflag [#allocation6], %s2638
        %s2640 = sand.u32 %s283, 1
        %s2641 = smul.addr %s2640, 8
        %s2642 = scalar_lea.vmem [#allocation15], %s2641
        %s2643 = sand.u32 %s309, 1
        %s2644 = scalar_lea.sflag [#allocation17], %s2643
        %s2645 = sand.u32 %s309, 1
        %s2646 = smul.addr %s2645, 8
        %s2647 = scalar_lea.vmem [#allocation16], %s2646
        // Predicated region
        $region93: #{_odelstm_sequence_pallas.1} parent=63 // pred_check
          %p2648 = pneg %p293
        $region94: #{_odelstm_sequence_pallas.1} parent=63 // pred_check_branch
          %2650 = sbr.rel (%p2648) target = $region96
        $region95: #{_odelstm_sequence_pallas.1} parent=63 // pred_region
          %s2652 = ssub.s32 128, 128
          %2653 = vsyncadd %s2639, %s2652
          %s2654 = smul.addr %s34, 128
          %s2655 = scalar_lea.hbm %s11, %s2654
          %s2657 = sshll.u32 %s2642, 4
          %s2658 = int_to_ptr.vmem [resolvable:$true] %s2657
          %2660 = dma.vmem_to_hbm [thread:$0]  %s2658, 128, %s2655, %s2639
        $region96: #{_odelstm_sequence_pallas.1} parent=63 // pred_fallthru
          _
        // Predicated region
        $region97: #{_odelstm_sequence_pallas.1} parent=63 // pred_check
          %p2661 = pneg %p319
        $region98: #{_odelstm_sequence_pallas.1} parent=63 // pred_check_branch
          %2663 = sbr.rel (%p2661) target = $region100
        $region99: #{_odelstm_sequence_pallas.1} parent=63 // pred_region
          %s2665 = ssub.s32 128, 128
          %2666 = vsyncadd %s2644, %s2665
          %s2667 = smul.addr %s34, 128
          %s2668 = scalar_lea.hbm %s12, %s2667
          %s2670 = sshll.u32 %s2647, 4
          %s2671 = int_to_ptr.vmem [resolvable:$true] %s2670
          %2673 = dma.vmem_to_hbm [thread:$0]  %s2671, 128, %s2668, %s2644
        $region100: #{_odelstm_sequence_pallas.1} parent=63 // pred_fallthru
          _
      $region64: #{_odelstm_sequence_pallas.1} parent=5 // pred_fallthru
        _
      %p2674 = scmp.le.s32.totalorder 2, %s29
      // Predicated region
      $region101: #{_odelstm_sequence_pallas.1} parent=5 // pred_check
        %p2675 = pneg %p2674
      $region102: #{_odelstm_sequence_pallas.1} parent=5 // pred_check_branch
        %2677 = sbr.rel (%p2675) target = $region104
      $region103: #{_odelstm_sequence_pallas.1} parent=5 // pred_region
        %s2678 = ssub.s32 %s29, 2
        // Predicated region
        $region105: #{_odelstm_sequence_pallas.1} parent=103 // pred_check
          %p2679 = pneg %p299
        $region106: #{_odelstm_sequence_pallas.1} parent=103 // pred_check_branch
          %2681 = sbr.rel (%p2679) target = $region108
        $region107: #{_odelstm_sequence_pallas.1} parent=103 // pred_region
          %s2682 = sand.u32 %s284, 1
          %s2683 = scalar_lea.sflag [#allocation6], %s2682
          %s2684 = sand.u32 %s284, 1
          %s2685 = smul.addr %s2684, 8
          %s2686 = scalar_lea.vmem [#allocation15], %s2685
          %2687 = dma.done %s2683, 128
        $region108: #{_odelstm_sequence_pallas.1} parent=103 // pred_fallthru
          _
        // Predicated region
        $region109: #{_odelstm_sequence_pallas.1} parent=103 // pred_check
          %p2688 = pneg %p325
        $region110: #{_odelstm_sequence_pallas.1} parent=103 // pred_check_branch
          %2690 = sbr.rel (%p2688) target = $region112
        $region111: #{_odelstm_sequence_pallas.1} parent=103 // pred_region
          %s2691 = sand.u32 %s310, 1
          %s2692 = scalar_lea.sflag [#allocation17], %s2691
          %s2693 = sand.u32 %s310, 1
          %s2694 = smul.addr %s2693, 8
          %s2695 = scalar_lea.vmem [#allocation16], %s2694
          %2696 = dma.done %s2692, 128
        $region112: #{_odelstm_sequence_pallas.1} parent=103 // pred_fallthru
          _
      $region104: #{_odelstm_sequence_pallas.1} parent=5 // pred_fallthru
        _
    $region6: #{_odelstm_sequence_pallas.1} parent=1 // loop_footer
      %s33 = sadd.s32 1, %s29
    $region7: #{_odelstm_sequence_pallas.1} parent=1 // loop_footer_branch
      %28 = sbr.rel target = $region3
    $region8: #{_odelstm_sequence_pallas.1} parent=1 // loop_exit
      _
    %2697 = vsyncpa [#allocation5], 1
    %s2698 = scalar_lea.sflag [#allocation5], 1
    %2699 = vsyncpa %s2698, 1
    %2700 = vsyncpa [#allocation8], 1
    %2701 = vsyncpa [#allocation11], 1
    %2702 = vsyncpa [#allocation14], 1
    %2703 = vsyncpa [#allocation6], 1
    %s2704 = scalar_lea.sflag [#allocation6], 1
    %2705 = vsyncpa %s2704, 1
    %2706 = vsyncpa [#allocation17], 1
    %s2707 = scalar_lea.sflag [#allocation17], 1
    %2708 = vsyncpa %s2707, 1

</llo_original>
